<compile_context>
chip_gen: v6e
topology: v6e:2x2x1
jax: 0.10.0
libtpu: 0.0.40
codegen_flags: <defaults>
</compile_context>

<pallas_src>
import functools
import math

import jax
import jax.numpy as jnp
from jax.experimental import pallas as pl
from jax.experimental.pallas import tpu as pltpu


_INV_SQRT2 = 0.7071067811865476


def _full_spec(shape):
    """Full-array block for a grid=(1,) call."""
    zeros = (0,) * len(shape)
    return pl.BlockSpec(shape, lambda i: zeros)


def _vit_kernel(patches_ref, we_ref, be_ref, clspos_ref, posr_ref,
                seg_eh_ref, seg_he_ref, clssel_ref,
                wqkv_ref, bqkv_ref, wo_ref, bo_ref, ln1g_ref, ln1b_ref,
                w1_ref, b1_ref, w2_ref, b2_ref, ln2g_ref, ln2b_ref,
                fcw_ref, fcb_ref,
                o_ref, h_scr,
                *, B, Tp, NP, E, n_layers, eps, scale):
    f32 = jnp.float32
    BT = B * Tp

    def layer_norm(z, g, c):
        mu = jnp.mean(z, axis=-1, keepdims=True)
        var = jnp.mean(jnp.square(z - mu), axis=-1, keepdims=True)
        return (z - mu) * jax.lax.rsqrt(var + eps) * g + c

    # ---- EmbedLayer: Conv2d(kernel=stride=P) == patch matmul; add cls + pos.
    emb = jnp.dot(patches_ref[...], we_ref[...],
                  preferred_element_type=f32) + be_ref[...]          # (B*NP, E)
    cls_row = clspos_ref[...]                                        # (1, E) = cls + pos[0]
    pos_rest = posr_ref[...]                                         # (NP, E) = pos[1:]

    # One-time assembly into a VMEM scratch (pad rows zeroed; they stay zero
    # through every layer since tokens are a pure batch axis here).
    h_scr[...] = jnp.zeros_like(h_scr)
    for b in range(B):
        h_scr[b * Tp:b * Tp + 1, :] = cls_row
        h_scr[b * Tp + 1:b * Tp + 1 + NP, :] = emb[b * NP:(b + 1) * NP, :] + pos_rest
    h = h_scr[...]          # (B*Tp, E) — carried in vregs from here on.

    seg_eh = seg_eh_ref[...]        # (E, Hh) one-hot: lane e -> its head
    seg_he = seg_he_ref[...]        # (Hh, E) transpose: head -> its Dh lanes

    # ---- Transformer encoder (post-LN; attention over the batch axis). ----
    for l in range(n_layers):
        wqkv, bqkv = wqkv_ref[l], bqkv_ref[l]
        wo, bo = wo_ref[l], bo_ref[l]
        g1, c1 = ln1g_ref[l], ln1b_ref[l]
        w1, b1 = w1_ref[l], b1_ref[l]
        w2, b2 = w2_ref[l], b2_ref[l]
        g2, c2 = ln2g_ref[l], ln2b_ref[l]

        # Fused QKV: ONE matmul for all batch elements and all 3 projections.
        qkv = jnp.dot(h, wqkv, preferred_element_type=f32) + bqkv     # (B*Tp, 3E)
        q = qkv[:, 0:E]
        k = qkv[:, E:2 * E]
        v = qkv[:, 2 * E:3 * E]

        # Stack all (key j, query i) pairs j-major (aligned 24/48-row pieces)
        # so scores and the probability expand each need a single matmul.
        k_rep, v_rep = [], []
        for j in range(B):
            kj = k[j * Tp:(j + 1) * Tp, :]
            vj = v[j * Tp:(j + 1) * Tp, :]
            k_rep.extend([kj] * B)
            v_rep.extend([vj] * B)
        k_rep = jnp.concatenate(k_rep, axis=0)                        # (B*B*Tp, E)
        v_rep = jnp.concatenate(v_rep, axis=0)                        # (B*B*Tp, E)
        q_tile = jnp.concatenate([q] * B, axis=0)                     # (B*B*Tp, E)

        # Per-head segment sum of Q_i * K_j over that head's lanes.
        scores = jnp.dot(q_tile * k_rep, seg_eh,
                         preferred_element_type=f32) * scale          # (B*B*Tp, Hh)

        # Softmax over the key index j (contiguous chunks of B*Tp rows).
        chunks = [scores[j * BT:(j + 1) * BT, :] for j in range(B)]
        m = chunks[0]
        for j in range(1, B):
            m = jnp.maximum(m, chunks[j])
        es = [jnp.exp(chunks[j] - m) for j in range(B)]
        den = es[0]
        for j in range(1, B):
            den = den + es[j]
        inv = 1.0 / den                      # exact divide (PyTorch parity)
        p = jnp.concatenate([es[j] * inv for j in range(B)], axis=0)  # (B*B*Tp, Hh)

        # Expand per-head probs back to E lanes, weight values, reduce over j.
        weighted = jnp.dot(p, seg_he, preferred_element_type=f32) * v_rep
        attn = weighted[0:BT, :]
        for j in range(1, B):
            attn = attn + weighted[j * BT:(j + 1) * BT, :]            # (B*Tp, E)

        # out-proj + residual + LN1, FFN (exact erf-GELU) + residual + LN2;
        # all batched over the stacked B*Tp rows in single matmuls.
        y = jnp.dot(attn, wo, preferred_element_type=f32) + bo
        z = layer_norm(h + y, g1, c1)
        f = jnp.dot(z, w1, preferred_element_type=f32) + b1
        f = 0.5 * f * (1.0 + jax.lax.erf(f * _INV_SQRT2))             # erf GELU
        f = jnp.dot(f, w2, preferred_element_type=f32) + b2
        h = layer_norm(z + f, g2, c2)

    # ---- Classifier: one-hot gather of every cls row (MXU), one matmul,
    # single lane-dense store of the (B, n_classes) output block.
    cls_rows = jnp.dot(clssel_ref[...], h, preferred_element_type=f32)  # (B, E)
    logits = jnp.dot(cls_rows, fcw_ref[...], preferred_element_type=f32) + fcb_ref[...]
    o_ref[...] = logits.astype(o_ref.dtype)


# ------------------------------ model glue ---------------------------------

class Args:
    n_channels = 4
    img_size = 16
    patch_size = 4
    embed_dim = 32
    n_attention_heads = 4
    forward_mul = 2
    n_layers = 2
    n_classes = 10
    dropout = 0.0   # dropout is identity (eval / p=0)


def init_params(key, args):
    E = args.embed_dim
    C = args.n_channels
    P = args.patch_size
    NP = (args.img_size // P) ** 2
    T = NP + 1
    F = args.forward_mul * E
    L = args.n_layers
    NC = args.n_classes

    def w(k, shape, scale=0.02):
        return scale * jax.random.normal(k, shape, jnp.float32)

    ks = jax.random.split(key, 6)
    # All matmul weights are stored pre-transposed as (K, N), stacked over
    # layers; Q/K/V are fused into a single in-projection (like PyTorch's
    # MultiheadAttention.in_proj_weight), so the forward has no transposes.
    return {
        "w_embed": w(ks[0], (C * P * P, E)),      # Conv2d (E,C,P,P) as matmul
        "b_embed": jnp.zeros((1, E), jnp.float32),
        "cls": jnp.zeros((1, E), jnp.float32),    # torch.zeros per __init__
        "pos": jnp.zeros((T, E), jnp.float32),    # torch.zeros per __init__
        "wqkv": w(ks[1], (L, E, 3 * E)),          # fused Q|K|V, pre-transposed
        "bqkv": jnp.zeros((L, 1, 3 * E), jnp.float32),
        "wo": w(ks[2], (L, E, E)),
        "bo": jnp.zeros((L, 1, E), jnp.float32),
        "ln1_g": jnp.ones((L, 1, E), jnp.float32),
        "ln1_b": jnp.zeros((L, 1, E), jnp.float32),
        "w1": w(ks[3], (L, E, F)),
        "b1": jnp.zeros((L, 1, F), jnp.float32),
        "w2": w(ks[4], (L, F, E)),
        "b2": jnp.zeros((L, 1, E), jnp.float32),
        "ln2_g": jnp.ones((L, 1, E), jnp.float32),
        "ln2_b": jnp.zeros((L, 1, E), jnp.float32),
        "fc_w": w(ks[5], (E, NC)),
        "fc_b": jnp.zeros((1, NC), jnp.float32),
    }


def vit_forward(params, x, args):
    B, C, H, W = x.shape                  # NCHW, like the PyTorch module
    P = args.patch_size
    E = args.embed_dim
    Hh = args.n_attention_heads
    Dh = E // Hh
    NP = (H // P) * (W // P)
    T = NP + 1
    Tp = ((T + 7) // 8) * 8               # pad tokens to a sublane multiple
    NC = args.n_classes
    L = args.n_layers

    # Conv2d(kernel=stride=P) == patch extraction (pure data movement, one XLA
    # reshape/transpose) + a matmul that runs inside the fused kernel.
    # TODO(synk): if real PyTorch Conv2d weights are ever loaded, flatten the
    # (E,C,P,P) weight to (C*P*P, E) in this same (c, ph, pw) feature order.
    patches = x.reshape(B, C, H // P, P, W // P, P)
    patches = patches.transpose(0, 2, 4, 1, 3, 5).reshape(B * NP, C * P * P)

    # cls + pos[0] pre-combined and pos pre-split outside the kernel (no
    # sublane-offset-1 slices inside).  Constant folded by XLA.
    cls_pos0 = params["cls"] + params["pos"][0:1, :]
    pos_rest = params["pos"][1:T, :]

    # One-hot (lane <-> head) matrices for per-head segment sums / broadcasts,
    # and the cls-row selection matrix for the classifier gather.
    head_of_lane = jnp.arange(E, dtype=jnp.int32) // Dh
    heads = jnp.arange(Hh, dtype=jnp.int32)
    seg_eh = (head_of_lane[:, None] == heads[None, :]).astype(jnp.float32)
    seg_he = (heads[:, None] == head_of_lane[None, :]).astype(jnp.float32)
    cols = jnp.arange(B * Tp, dtype=jnp.int32)
    rows = jnp.arange(B, dtype=jnp.int32)
    cls_sel = (cols[None, :] == rows[:, None] * Tp).astype(jnp.float32)  # (B, B*Tp)

    inputs = (patches, params["w_embed"], params["b_embed"], cls_pos0, pos_rest,
              seg_eh, seg_he, cls_sel,
              params["wqkv"], params["bqkv"], params["wo"], params["bo"],
              params["ln1_g"], params["ln1_b"],
              params["w1"], params["b1"], params["w2"], params["b2"],
              params["ln2_g"], params["ln2_b"],
              params["fc_w"], params["fc_b"])

    kern = functools.partial(_vit_kernel, B=B, Tp=Tp, NP=NP, E=E, n_layers=L,
                             eps=1e-5, scale=1.0 / math.sqrt(Dh))

    # NOTE: at these tiny shapes the whole network fits in VMEM, so one fused
    # grid step is the fastest layout (launch/latency-bound regime).
    # TODO(synk): for v7x (2 TensorCores) or real ViT sizes, add a "parallel"
    # token-axis grid dimension and stream per-layer bf16 weights with
    # layer-indexed BlockSpecs instead of keeping all layers resident.
    return pl.pallas_call(
        kern,
        grid=(1,),
        in_specs=[_full_spec(a.shape) for a in inputs],
        out_specs=_full_spec((B, NC)),
        out_shape=jax.ShapeDtypeStruct((B, NC), jnp.float32),
        scratch_shapes=[pltpu.VMEM((B * Tp, E), jnp.float32)],  # embed assembly only
        compiler_params=pltpu.CompilerParams(
            dimension_semantics=("arbitrary",)),
    )(*inputs)


if __name__ == "__main__":
    args = Args()
    key = jax.random.PRNGKey(0)
    kp, kx = jax.random.split(key)
    params = init_params(kp, args)
    x = jax.random.normal(
        kx, (2, args.n_channels, args.img_size, args.img_size), jnp.float32)

    fwd = jax.jit(lambda p, xx: vit_forward(p, xx, args))
    out = jax.block_until_ready(fwd(params, x))

    assert out.shape == (2, args.n_classes), out.shape
    assert out.dtype == jnp.float32
    assert bool(jnp.all(jnp.isfinite(out)))
    print("KERNEL_OK")
</pallas_src>

<mosaic_0001>
module attributes {stable_mosaic.version = 11 : i64} {
  func.func @_vit_kernel(%arg0: i32, %arg1: memref<32x64xf32, #tpu.memory_space<vmem>>, %arg2: memref<64x32xf32, #tpu.memory_space<vmem>>, %arg3: memref<1x32xf32, #tpu.memory_space<vmem>>, %arg4: memref<1x32xf32, #tpu.memory_space<vmem>>, %arg5: memref<16x32xf32, #tpu.memory_space<vmem>>, %arg6: memref<32x4xf32, #tpu.memory_space<vmem>>, %arg7: memref<4x32xf32, #tpu.memory_space<vmem>>, %arg8: memref<2x48xf32, #tpu.memory_space<vmem>>, %arg9: memref<2x32x96xf32, #tpu.memory_space<vmem>>, %arg10: memref<2x1x96xf32, #tpu.memory_space<vmem>>, %arg11: memref<2x32x32xf32, #tpu.memory_space<vmem>>, %arg12: memref<2x1x32xf32, #tpu.memory_space<vmem>>, %arg13: memref<2x1x32xf32, #tpu.memory_space<vmem>>, %arg14: memref<2x1x32xf32, #tpu.memory_space<vmem>>, %arg15: memref<2x32x64xf32, #tpu.memory_space<vmem>>, %arg16: memref<2x1x64xf32, #tpu.memory_space<vmem>>, %arg17: memref<2x64x32xf32, #tpu.memory_space<vmem>>, %arg18: memref<2x1x32xf32, #tpu.memory_space<vmem>>, %arg19: memref<2x1x32xf32, #tpu.memory_space<vmem>>, %arg20: memref<2x1x32xf32, #tpu.memory_space<vmem>>, %arg21: memref<32x10xf32, #tpu.memory_space<vmem>>, %arg22: memref<1x10xf32, #tpu.memory_space<vmem>>, %arg23: memref<2x10xf32, #tpu.memory_space<vmem>>, %arg24: memref<48x32xf32, #tpu.memory_space<vmem>>) attributes {dimension_semantics = [#tpu.dimension_semantics<arbitrary>], iteration_bounds = array<i64: 1>, scalar_prefetch = 0 : i64, scratch_operands = 1 : i64, tpu.core_type = #tpu.core_type<tc>, window_params = [{pipeline_mode = #tpu.pipeline_mode<synchronous>, transform_indices = @transform_0, window_bounds = array<i64: 32, 64>}, {pipeline_mode = #tpu.pipeline_mode<synchronous>, transform_indices = @transform_1, window_bounds = array<i64: 64, 32>}, {pipeline_mode = #tpu.pipeline_mode<synchronous>, transform_indices = @transform_2, window_bounds = array<i64: 1, 32>}, {pipeline_mode = #tpu.pipeline_mode<synchronous>, transform_indices = @transform_3, window_bounds = array<i64: 1, 32>}, {pipeline_mode = #tpu.pipeline_mode<synchronous>, transform_indices = @transform_4, window_bounds = array<i64: 16, 32>}, {pipeline_mode = #tpu.pipeline_mode<synchronous>, transform_indices = @transform_5, window_bounds = array<i64: 32, 4>}, {pipeline_mode = #tpu.pipeline_mode<synchronous>, transform_indices = @transform_6, window_bounds = array<i64: 4, 32>}, {pipeline_mode = #tpu.pipeline_mode<synchronous>, transform_indices = @transform_7, window_bounds = array<i64: 2, 48>}, {pipeline_mode = #tpu.pipeline_mode<synchronous>, transform_indices = @transform_8, window_bounds = array<i64: 2, 32, 96>}, {pipeline_mode = #tpu.pipeline_mode<synchronous>, transform_indices = @transform_9, window_bounds = array<i64: 2, 1, 96>}, {pipeline_mode = #tpu.pipeline_mode<synchronous>, transform_indices = @transform_10, window_bounds = array<i64: 2, 32, 32>}, {pipeline_mode = #tpu.pipeline_mode<synchronous>, transform_indices = @transform_11, window_bounds = array<i64: 2, 1, 32>}, {pipeline_mode = #tpu.pipeline_mode<synchronous>, transform_indices = @transform_12, window_bounds = array<i64: 2, 1, 32>}, {pipeline_mode = #tpu.pipeline_mode<synchronous>, transform_indices = @transform_13, window_bounds = array<i64: 2, 1, 32>}, {pipeline_mode = #tpu.pipeline_mode<synchronous>, transform_indices = @transform_14, window_bounds = array<i64: 2, 32, 64>}, {pipeline_mode = #tpu.pipeline_mode<synchronous>, transform_indices = @transform_15, window_bounds = array<i64: 2, 1, 64>}, {pipeline_mode = #tpu.pipeline_mode<synchronous>, transform_indices = @transform_16, window_bounds = array<i64: 2, 64, 32>}, {pipeline_mode = #tpu.pipeline_mode<synchronous>, transform_indices = @transform_17, window_bounds = array<i64: 2, 1, 32>}, {pipeline_mode = #tpu.pipeline_mode<synchronous>, transform_indices = @transform_18, window_bounds = array<i64: 2, 1, 32>}, {pipeline_mode = #tpu.pipeline_mode<synchronous>, transform_indices = @transform_19, window_bounds = array<i64: 2, 1, 32>}, {pipeline_mode = #tpu.pipeline_mode<synchronous>, transform_indices = @transform_20, window_bounds = array<i64: 32, 10>}, {pipeline_mode = #tpu.pipeline_mode<synchronous>, transform_indices = @transform_21, window_bounds = array<i64: 1, 10>}, {pipeline_mode = #tpu.pipeline_mode<synchronous>, transform_indices = @transform_22, window_bounds = array<i64: 2, 10>}]} {
    %c0 = arith.constant 0 : index
    %c0_0 = arith.constant 0 : index
    %0 = vector.load %arg1[%c0, %c0_0] : memref<32x64xf32, #tpu.memory_space<vmem>>, vector<32x64xf32>
    %c0_1 = arith.constant 0 : index
    %c0_2 = arith.constant 0 : index
    %1 = vector.load %arg2[%c0_1, %c0_2] : memref<64x32xf32, #tpu.memory_space<vmem>>, vector<64x32xf32>
    %cst = arith.constant dense<0.000000e+00> : vector<32x32xf32>
    %2 = tpu.matmul %0, %1, %cst {dimension_numbers = #tpu.dot_dimension_numbers<[1], [0], [0], [1], [0, 0, 1, 1], [], []>} : vector<32x64xf32>, vector<64x32xf32>, vector<32x32xf32> -> vector<32x32xf32>
    %c0_3 = arith.constant 0 : index
    %c0_4 = arith.constant 0 : index
    %3 = vector.load %arg3[%c0_3, %c0_4] : memref<1x32xf32, #tpu.memory_space<vmem>>, vector<1x32xf32>
    %4 = vector.broadcast %3 : vector<1x32xf32> to vector<32x32xf32>
    %5 = arith.addf %2, %4 : vector<32x32xf32>
    %c0_5 = arith.constant 0 : index
    %c0_6 = arith.constant 0 : index
    %6 = vector.load %arg4[%c0_5, %c0_6] : memref<1x32xf32, #tpu.memory_space<vmem>>, vector<1x32xf32>
    %c0_7 = arith.constant 0 : index
    %c0_8 = arith.constant 0 : index
    %7 = vector.load %arg5[%c0_7, %c0_8] : memref<16x32xf32, #tpu.memory_space<vmem>>, vector<16x32xf32>
    %cst_9 = arith.constant 0.000000e+00 : f32
    %8 = vector.broadcast %cst_9 : f32 to vector<48x32xf32>
    %c0_10 = arith.constant 0 : index
    %c0_11 = arith.constant 0 : index
    %9 = vector.load %arg24[%c0_10, %c0_11] : memref<48x32xf32, #tpu.memory_space<vmem>>, vector<48x32xf32>
    tpu.vector_store %arg24[%c0_10, %c0_11], %8 {strides = array<i32>} : memref<48x32xf32, #tpu.memory_space<vmem>>, vector<48x32xf32>,
    %c0_12 = arith.constant 0 : index
    %c0_13 = arith.constant 0 : index
    %10 = vector.load %arg24[%c0_12, %c0_13] : memref<48x32xf32, #tpu.memory_space<vmem>>, vector<1x32xf32>
    tpu.vector_store %arg24[%c0_12, %c0_13], %6 {strides = array<i32>} : memref<48x32xf32, #tpu.memory_space<vmem>>, vector<1x32xf32>,
    %11 = vector.extract_strided_slice %5 {offsets = [0, 0], sizes = [16, 32], strides = [1, 1]} : vector<32x32xf32> to vector<16x32xf32>
    %12 = arith.addf %11, %7 : vector<16x32xf32>
    %c1 = arith.constant 1 : index
    %c0_14 = arith.constant 0 : index
    %13 = vector.load %arg24[%c1, %c0_14] : memref<48x32xf32, #tpu.memory_space<vmem>>, vector<16x32xf32>
    tpu.vector_store %arg24[%c1, %c0_14], %12 {strides = array<i32>} : memref<48x32xf32, #tpu.memory_space<vmem>>, vector<16x32xf32>,
    %c24 = arith.constant 24 : index
    %c0_15 = arith.constant 0 : index
    %14 = vector.load %arg24[%c24, %c0_15] : memref<48x32xf32, #tpu.memory_space<vmem>>, vector<1x32xf32>
    tpu.vector_store %arg24[%c24, %c0_15], %6 {strides = array<i32>} : memref<48x32xf32, #tpu.memory_space<vmem>>, vector<1x32xf32>,
    %15 = vector.extract_strided_slice %5 {offsets = [16, 0], sizes = [16, 32], strides = [1, 1]} : vector<32x32xf32> to vector<16x32xf32>
    %16 = arith.addf %15, %7 : vector<16x32xf32>
    %c25 = arith.constant 25 : index
    %c0_16 = arith.constant 0 : index
    %17 = vector.load %arg24[%c25, %c0_16] : memref<48x32xf32, #tpu.memory_space<vmem>>, vector<16x32xf32>
    tpu.vector_store %arg24[%c25, %c0_16], %16 {strides = array<i32>} : memref<48x32xf32, #tpu.memory_space<vmem>>, vector<16x32xf32>,
    %c0_17 = arith.constant 0 : index
    %c0_18 = arith.constant 0 : index
    %18 = vector.load %arg24[%c0_17, %c0_18] : memref<48x32xf32, #tpu.memory_space<vmem>>, vector<48x32xf32>
    %c0_19 = arith.constant 0 : index
    %c0_20 = arith.constant 0 : index
    %19 = vector.load %arg6[%c0_19, %c0_20] : memref<32x4xf32, #tpu.memory_space<vmem>>, vector<32x4xf32>
    %c0_21 = arith.constant 0 : index
    %c0_22 = arith.constant 0 : index
    %20 = vector.load %arg7[%c0_21, %c0_22] : memref<4x32xf32, #tpu.memory_space<vmem>>, vector<4x32xf32>
    %c0_23 = arith.constant 0 : index
    %c0_24 = arith.constant 0 : index
    %c0_25 = arith.constant 0 : index
    %21 = vector.load %arg9[%c0_23, %c0_24, %c0_25] : memref<2x32x96xf32, #tpu.memory_space<vmem>>, vector<1x32x96xf32>
    %22 = vector.shape_cast %21 : vector<1x32x96xf32> to vector<32x96xf32>
    %c0_26 = arith.constant 0 : index
    %c0_27 = arith.constant 0 : index
    %c0_28 = arith.constant 0 : index
    %23 = vector.load %arg10[%c0_26, %c0_27, %c0_28] : memref<2x1x96xf32, #tpu.memory_space<vmem>>, vector<1x1x96xf32>
    %24 = vector.shape_cast %23 : vector<1x1x96xf32> to vector<1x96xf32>
    %c0_29 = arith.constant 0 : index
    %c0_30 = arith.constant 0 : index
    %c0_31 = arith.constant 0 : index
    %25 = vector.load %arg11[%c0_29, %c0_30, %c0_31] : memref<2x32x32xf32, #tpu.memory_space<vmem>>, vector<1x32x32xf32>
    %26 = vector.shape_cast %25 : vector<1x32x32xf32> to vector<32x32xf32>
    %c0_32 = arith.constant 0 : index
    %c0_33 = arith.constant 0 : index
    %c0_34 = arith.constant 0 : index
    %27 = vector.load %arg12[%c0_32, %c0_33, %c0_34] : memref<2x1x32xf32, #tpu.memory_space<vmem>>, vector<1x1x32xf32>
    %28 = vector.shape_cast %27 : vector<1x1x32xf32> to vector<1x32xf32>
    %c0_35 = arith.constant 0 : index
    %c0_36 = arith.constant 0 : index
    %c0_37 = arith.constant 0 : index
    %29 = vector.load %arg13[%c0_35, %c0_36, %c0_37] : memref<2x1x32xf32, #tpu.memory_space<vmem>>, vector<1x1x32xf32>
    %30 = vector.shape_cast %29 : vector<1x1x32xf32> to vector<1x32xf32>
    %c0_38 = arith.constant 0 : index
    %c0_39 = arith.constant 0 : index
    %c0_40 = arith.constant 0 : index
    %31 = vector.load %arg14[%c0_38, %c0_39, %c0_40] : memref<2x1x32xf32, #tpu.memory_space<vmem>>, vector<1x1x32xf32>
    %32 = vector.shape_cast %31 : vector<1x1x32xf32> to vector<1x32xf32>
    %c0_41 = arith.constant 0 : index
    %c0_42 = arith.constant 0 : index
    %c0_43 = arith.constant 0 : index
    %33 = vector.load %arg15[%c0_41, %c0_42, %c0_43] : memref<2x32x64xf32, #tpu.memory_space<vmem>>, vector<1x32x64xf32>
    %34 = vector.shape_cast %33 : vector<1x32x64xf32> to vector<32x64xf32>
    %c0_44 = arith.constant 0 : index
    %c0_45 = arith.constant 0 : index
    %c0_46 = arith.constant 0 : index
    %35 = vector.load %arg16[%c0_44, %c0_45, %c0_46] : memref<2x1x64xf32, #tpu.memory_space<vmem>>, vector<1x1x64xf32>
    %36 = vector.shape_cast %35 : vector<1x1x64xf32> to vector<1x64xf32>
    %c0_47 = arith.constant 0 : index
    %c0_48 = arith.constant 0 : index
    %c0_49 = arith.constant 0 : index
    %37 = vector.load %arg17[%c0_47, %c0_48, %c0_49] : memref<2x64x32xf32, #tpu.memory_space<vmem>>, vector<1x64x32xf32>
    %38 = vector.shape_cast %37 : vector<1x64x32xf32> to vector<64x32xf32>
    %c0_50 = arith.constant 0 : index
    %c0_51 = arith.constant 0 : index
    %c0_52 = arith.constant 0 : index
    %39 = vector.load %arg18[%c0_50, %c0_51, %c0_52] : memref<2x1x32xf32, #tpu.memory_space<vmem>>, vector<1x1x32xf32>
    %40 = vector.shape_cast %39 : vector<1x1x32xf32> to vector<1x32xf32>
    %c0_53 = arith.constant 0 : index
    %c0_54 = arith.constant 0 : index
    %c0_55 = arith.constant 0 : index
    %41 = vector.load %arg19[%c0_53, %c0_54, %c0_55] : memref<2x1x32xf32, #tpu.memory_space<vmem>>, vector<1x1x32xf32>
    %42 = vector.shape_cast %41 : vector<1x1x32xf32> to vector<1x32xf32>
    %c0_56 = arith.constant 0 : index
    %c0_57 = arith.constant 0 : index
    %c0_58 = arith.constant 0 : index
    %43 = vector.load %arg20[%c0_56, %c0_57, %c0_58] : memref<2x1x32xf32, #tpu.memory_space<vmem>>, vector<1x1x32xf32>
    %44 = vector.shape_cast %43 : vector<1x1x32xf32> to vector<1x32xf32>
    %cst_59 = arith.constant dense<0.000000e+00> : vector<48x96xf32>
    %45 = tpu.matmul %18, %22, %cst_59 {dimension_numbers = #tpu.dot_dimension_numbers<[1], [0], [0], [1], [0, 0, 1, 1], [], []>} : vector<48x32xf32>, vector<32x96xf32>, vector<48x96xf32> -> vector<48x96xf32>
    %46 = vector.broadcast %24 : vector<1x96xf32> to vector<48x96xf32>
    %47 = arith.addf %45, %46 : vector<48x96xf32>
    %48 = vector.extract_strided_slice %47 {offsets = [0, 0], sizes = [48, 32], strides = [1, 1]} : vector<48x96xf32> to vector<48x32xf32>
    %49 = vector.extract_strided_slice %47 {offsets = [0, 32], sizes = [48, 32], strides = [1, 1]} : vector<48x96xf32> to vector<48x32xf32>
    %50 = vector.extract_strided_slice %47 {offsets = [0, 64], sizes = [48, 32], strides = [1, 1]} : vector<48x96xf32> to vector<48x32xf32>
    %51 = vector.extract_strided_slice %49 {offsets = [0, 0], sizes = [24, 32], strides = [1, 1]} : vector<48x32xf32> to vector<24x32xf32>
    %52 = vector.extract_strided_slice %50 {offsets = [0, 0], sizes = [24, 32], strides = [1, 1]} : vector<48x32xf32> to vector<24x32xf32>
    %53 = vector.extract_strided_slice %49 {offsets = [24, 0], sizes = [24, 32], strides = [1, 1]} : vector<48x32xf32> to vector<24x32xf32>
    %54 = vector.extract_strided_slice %50 {offsets = [24, 0], sizes = [24, 32], strides = [1, 1]} : vector<48x32xf32> to vector<24x32xf32>
    %55 = tpu.concatenate %51, %51, %53, %53 in 0 : vector<24x32xf32>, vector<24x32xf32>, vector<24x32xf32>, vector<24x32xf32> -> vector<96x32xf32>
    %56 = tpu.concatenate %52, %52, %54, %54 in 0 : vector<24x32xf32>, vector<24x32xf32>, vector<24x32xf32>, vector<24x32xf32> -> vector<96x32xf32>
    %57 = tpu.concatenate %48, %48 in 0 : vector<48x32xf32>, vector<48x32xf32> -> vector<96x32xf32>
    %58 = arith.mulf %57, %55 : vector<96x32xf32>
    %cst_60 = arith.constant dense<0.000000e+00> : vector<96x4xf32>
    %59 = tpu.matmul %58, %19, %cst_60 {dimension_numbers = #tpu.dot_dimension_numbers<[1], [0], [0], [1], [0, 0, 1, 1], [], []>} : vector<96x32xf32>, vector<32x4xf32>, vector<96x4xf32> -> vector<96x4xf32>
    %cst_61 = arith.constant 0.353553385 : f32
    %60 = vector.broadcast %cst_61 : f32 to vector<96x4xf32>
    %61 = arith.mulf %59, %60 : vector<96x4xf32>
    %62 = vector.extract_strided_slice %61 {offsets = [0, 0], sizes = [48, 4], strides = [1, 1]} : vector<96x4xf32> to vector<48x4xf32>
    %63 = vector.extract_strided_slice %61 {offsets = [48, 0], sizes = [48, 4], strides = [1, 1]} : vector<96x4xf32> to vector<48x4xf32>
    %64 = arith.maximumf %62, %63 : vector<48x4xf32>
    %65 = arith.subf %62, %64 : vector<48x4xf32>
    %66 = math.exp %65 : vector<48x4xf32>
    %67 = arith.subf %63, %64 : vector<48x4xf32>
    %68 = math.exp %67 : vector<48x4xf32>
    %69 = arith.addf %66, %68 : vector<48x4xf32>
    %cst_62 = arith.constant 1.000000e+00 : f32
    %70 = vector.broadcast %cst_62 : f32 to vector<48x4xf32>
    %71 = arith.divf %70, %69 : vector<48x4xf32>
    %72 = arith.mulf %66, %71 : vector<48x4xf32>
    %73 = arith.mulf %68, %71 : vector<48x4xf32>
    %74 = tpu.concatenate %72, %73 in 0 : vector<48x4xf32>, vector<48x4xf32> -> vector<96x4xf32>
    %cst_63 = arith.constant dense<0.000000e+00> : vector<96x32xf32>
    %75 = tpu.matmul %74, %20, %cst_63 {dimension_numbers = #tpu.dot_dimension_numbers<[1], [0], [0], [1], [0, 0, 1, 1], [], []>} : vector<96x4xf32>, vector<4x32xf32>, vector<96x32xf32> -> vector<96x32xf32>
    %76 = arith.mulf %75, %56 : vector<96x32xf32>
    %77 = vector.extract_strided_slice %76 {offsets = [0, 0], sizes = [48, 32], strides = [1, 1]} : vector<96x32xf32> to vector<48x32xf32>
    %78 = vector.extract_strided_slice %76 {offsets = [48, 0], sizes = [48, 32], strides = [1, 1]} : vector<96x32xf32> to vector<48x32xf32>
    %79 = arith.addf %77, %78 : vector<48x32xf32>
    %cst_64 = arith.constant dense<0.000000e+00> : vector<48x32xf32>
    %80 = tpu.matmul %79, %26, %cst_64 {dimension_numbers = #tpu.dot_dimension_numbers<[1], [0], [0], [1], [0, 0, 1, 1], [], []>} : vector<48x32xf32>, vector<32x32xf32>, vector<48x32xf32> -> vector<48x32xf32>
    %81 = vector.broadcast %28 : vector<1x32xf32> to vector<48x32xf32>
    %82 = arith.addf %80, %81 : vector<48x32xf32>
    %83 = arith.addf %18, %82 : vector<48x32xf32>
    %cst_65 = arith.constant dense<0.000000e+00> : vector<48xf32>
    %84 = vector.multi_reduction <add>, %83, %cst_65 [1] : vector<48x32xf32> to vector<48xf32>
    %85 = vector.shape_cast %84 : vector<48xf32> to vector<48x1xf32>
    %cst_66 = arith.constant 3.200000e+01 : f32
    %86 = vector.broadcast %cst_66 : f32 to vector<48x1xf32>
    %87 = arith.divf %85, %86 : vector<48x1xf32>
    %88 = vector.broadcast %87 : vector<48x1xf32> to vector<48x32xf32>
    %89 = arith.subf %83, %88 : vector<48x32xf32>
    %90 = arith.mulf %89, %89 : vector<48x32xf32>
    %cst_67 = arith.constant dense<0.000000e+00> : vector<48xf32>
    %91 = vector.multi_reduction <add>, %90, %cst_67 [1] : vector<48x32xf32> to vector<48xf32>
    %92 = vector.shape_cast %91 : vector<48xf32> to vector<48x1xf32>
    %cst_68 = arith.constant 3.200000e+01 : f32
    %93 = vector.broadcast %cst_68 : f32 to vector<48x1xf32>
    %94 = arith.divf %92, %93 : vector<48x1xf32>
    %95 = vector.broadcast %87 : vector<48x1xf32> to vector<48x32xf32>
    %96 = arith.subf %83, %95 : vector<48x32xf32>
    %cst_69 = arith.constant 9.99999974E-6 : f32
    %97 = vector.broadcast %cst_69 : f32 to vector<48x1xf32>
    %98 = arith.addf %94, %97 : vector<48x1xf32>
    %99 = math.rsqrt %98 : vector<48x1xf32>
    %100 = vector.broadcast %99 : vector<48x1xf32> to vector<48x32xf32>
    %101 = arith.mulf %96, %100 : vector<48x32xf32>
    %102 = vector.broadcast %30 : vector<1x32xf32> to vector<48x32xf32>
    %103 = arith.mulf %101, %102 : vector<48x32xf32>
    %104 = vector.broadcast %32 : vector<1x32xf32> to vector<48x32xf32>
    %105 = arith.addf %103, %104 : vector<48x32xf32>
    %cst_70 = arith.constant dense<0.000000e+00> : vector<48x64xf32>
    %106 = tpu.matmul %105, %34, %cst_70 {dimension_numbers = #tpu.dot_dimension_numbers<[1], [0], [0], [1], [0, 0, 1, 1], [], []>} : vector<48x32xf32>, vector<32x64xf32>, vector<48x64xf32> -> vector<48x64xf32>
    %107 = vector.broadcast %36 : vector<1x64xf32> to vector<48x64xf32>
    %108 = arith.addf %106, %107 : vector<48x64xf32>
    %cst_71 = arith.constant 5.000000e-01 : f32
    %109 = vector.broadcast %cst_71 : f32 to vector<48x64xf32>
    %110 = arith.mulf %109, %108 : vector<48x64xf32>
    %cst_72 = arith.constant 0.707106769 : f32
    %111 = vector.broadcast %cst_72 : f32 to vector<48x64xf32>
    %112 = arith.mulf %108, %111 : vector<48x64xf32>
    %113 = math.erf %112 : vector<48x64xf32>
    %cst_73 = arith.constant 1.000000e+00 : f32
    %114 = vector.broadcast %cst_73 : f32 to vector<48x64xf32>
    %115 = arith.addf %114, %113 : vector<48x64xf32>
    %116 = arith.mulf %110, %115 : vector<48x64xf32>
    %cst_74 = arith.constant dense<0.000000e+00> : vector<48x32xf32>
    %117 = tpu.matmul %116, %38, %cst_74 {dimension_numbers = #tpu.dot_dimension_numbers<[1], [0], [0], [1], [0, 0, 1, 1], [], []>} : vector<48x64xf32>, vector<64x32xf32>, vector<48x32xf32> -> vector<48x32xf32>
    %118 = vector.broadcast %40 : vector<1x32xf32> to vector<48x32xf32>
    %119 = arith.addf %117, %118 : vector<48x32xf32>
    %120 = arith.addf %105, %119 : vector<48x32xf32>
    %cst_75 = arith.constant dense<0.000000e+00> : vector<48xf32>
    %121 = vector.multi_reduction <add>, %120, %cst_75 [1] : vector<48x32xf32> to vector<48xf32>
    %122 = vector.shape_cast %121 : vector<48xf32> to vector<48x1xf32>
    %cst_76 = arith.constant 3.200000e+01 : f32
    %123 = vector.broadcast %cst_76 : f32 to vector<48x1xf32>
    %124 = arith.divf %122, %123 : vector<48x1xf32>
    %125 = vector.broadcast %124 : vector<48x1xf32> to vector<48x32xf32>
    %126 = arith.subf %120, %125 : vector<48x32xf32>
    %127 = arith.mulf %126, %126 : vector<48x32xf32>
    %cst_77 = arith.constant dense<0.000000e+00> : vector<48xf32>
    %128 = vector.multi_reduction <add>, %127, %cst_77 [1] : vector<48x32xf32> to vector<48xf32>
    %129 = vector.shape_cast %128 : vector<48xf32> to vector<48x1xf32>
    %cst_78 = arith.constant 3.200000e+01 : f32
    %130 = vector.broadcast %cst_78 : f32 to vector<48x1xf32>
    %131 = arith.divf %129, %130 : vector<48x1xf32>
    %132 = vector.broadcast %124 : vector<48x1xf32> to vector<48x32xf32>
    %133 = arith.subf %120, %132 : vector<48x32xf32>
    %cst_79 = arith.constant 9.99999974E-6 : f32
    %134 = vector.broadcast %cst_79 : f32 to vector<48x1xf32>
    %135 = arith.addf %131, %134 : vector<48x1xf32>
    %136 = math.rsqrt %135 : vector<48x1xf32>
    %137 = vector.broadcast %136 : vector<48x1xf32> to vector<48x32xf32>
    %138 = arith.mulf %133, %137 : vector<48x32xf32>
    %139 = vector.broadcast %42 : vector<1x32xf32> to vector<48x32xf32>
    %140 = arith.mulf %138, %139 : vector<48x32xf32>
    %141 = vector.broadcast %44 : vector<1x32xf32> to vector<48x32xf32>
    %142 = arith.addf %140, %141 : vector<48x32xf32>
    %c1_80 = arith.constant 1 : index
    %c0_81 = arith.constant 0 : index
    %c0_82 = arith.constant 0 : index
    %143 = vector.load %arg9[%c1_80, %c0_81, %c0_82] : memref<2x32x96xf32, #tpu.memory_space<vmem>>, vector<1x32x96xf32>
    %144 = vector.shape_cast %143 : vector<1x32x96xf32> to vector<32x96xf32>
    %c1_83 = arith.constant 1 : index
    %c0_84 = arith.constant 0 : index
    %c0_85 = arith.constant 0 : index
    %145 = vector.load %arg10[%c1_83, %c0_84, %c0_85] : memref<2x1x96xf32, #tpu.memory_space<vmem>>, vector<1x1x96xf32>
    %146 = vector.shape_cast %145 : vector<1x1x96xf32> to vector<1x96xf32>
    %c1_86 = arith.constant 1 : index
    %c0_87 = arith.constant 0 : index
    %c0_88 = arith.constant 0 : index
    %147 = vector.load %arg11[%c1_86, %c0_87, %c0_88] : memref<2x32x32xf32, #tpu.memory_space<vmem>>, vector<1x32x32xf32>
    %148 = vector.shape_cast %147 : vector<1x32x32xf32> to vector<32x32xf32>
    %c1_89 = arith.constant 1 : index
    %c0_90 = arith.constant 0 : index
    %c0_91 = arith.constant 0 : index
    %149 = vector.load %arg12[%c1_89, %c0_90, %c0_91] : memref<2x1x32xf32, #tpu.memory_space<vmem>>, vector<1x1x32xf32>
    %150 = vector.shape_cast %149 : vector<1x1x32xf32> to vector<1x32xf32>
    %c1_92 = arith.constant 1 : index
    %c0_93 = arith.constant 0 : index
    %c0_94 = arith.constant 0 : index
    %151 = vector.load %arg13[%c1_92, %c0_93, %c0_94] : memref<2x1x32xf32, #tpu.memory_space<vmem>>, vector<1x1x32xf32>
    %152 = vector.shape_cast %151 : vector<1x1x32xf32> to vector<1x32xf32>
    %c1_95 = arith.constant 1 : index
    %c0_96 = arith.constant 0 : index
    %c0_97 = arith.constant 0 : index
    %153 = vector.load %arg14[%c1_95, %c0_96, %c0_97] : memref<2x1x32xf32, #tpu.memory_space<vmem>>, vector<1x1x32xf32>
    %154 = vector.shape_cast %153 : vector<1x1x32xf32> to vector<1x32xf32>
    %c1_98 = arith.constant 1 : index
    %c0_99 = arith.constant 0 : index
    %c0_100 = arith.constant 0 : index
    %155 = vector.load %arg15[%c1_98, %c0_99, %c0_100] : memref<2x32x64xf32, #tpu.memory_space<vmem>>, vector<1x32x64xf32>
    %156 = vector.shape_cast %155 : vector<1x32x64xf32> to vector<32x64xf32>
    %c1_101 = arith.constant 1 : index
    %c0_102 = arith.constant 0 : index
    %c0_103 = arith.constant 0 : index
    %157 = vector.load %arg16[%c1_101, %c0_102, %c0_103] : memref<2x1x64xf32, #tpu.memory_space<vmem>>, vector<1x1x64xf32>
    %158 = vector.shape_cast %157 : vector<1x1x64xf32> to vector<1x64xf32>
    %c1_104 = arith.constant 1 : index
    %c0_105 = arith.constant 0 : index
    %c0_106 = arith.constant 0 : index
    %159 = vector.load %arg17[%c1_104, %c0_105, %c0_106] : memref<2x64x32xf32, #tpu.memory_space<vmem>>, vector<1x64x32xf32>
    %160 = vector.shape_cast %159 : vector<1x64x32xf32> to vector<64x32xf32>
    %c1_107 = arith.constant 1 : index
    %c0_108 = arith.constant 0 : index
    %c0_109 = arith.constant 0 : index
    %161 = vector.load %arg18[%c1_107, %c0_108, %c0_109] : memref<2x1x32xf32, #tpu.memory_space<vmem>>, vector<1x1x32xf32>
    %162 = vector.shape_cast %161 : vector<1x1x32xf32> to vector<1x32xf32>
    %c1_110 = arith.constant 1 : index
    %c0_111 = arith.constant 0 : index
    %c0_112 = arith.constant 0 : index
    %163 = vector.load %arg19[%c1_110, %c0_111, %c0_112] : memref<2x1x32xf32, #tpu.memory_space<vmem>>, vector<1x1x32xf32>
    %164 = vector.shape_cast %163 : vector<1x1x32xf32> to vector<1x32xf32>
    %c1_113 = arith.constant 1 : index
    %c0_114 = arith.constant 0 : index
    %c0_115 = arith.constant 0 : index
    %165 = vector.load %arg20[%c1_113, %c0_114, %c0_115] : memref<2x1x32xf32, #tpu.memory_space<vmem>>, vector<1x1x32xf32>
    %166 = vector.shape_cast %165 : vector<1x1x32xf32> to vector<1x32xf32>
    %cst_116 = arith.constant dense<0.000000e+00> : vector<48x96xf32>
    %167 = tpu.matmul %142, %144, %cst_116 {dimension_numbers = #tpu.dot_dimension_numbers<[1], [0], [0], [1], [0, 0, 1, 1], [], []>} : vector<48x32xf32>, vector<32x96xf32>, vector<48x96xf32> -> vector<48x96xf32>
    %168 = vector.broadcast %146 : vector<1x96xf32> to vector<48x96xf32>
    %169 = arith.addf %167, %168 : vector<48x96xf32>
    %170 = vector.extract_strided_slice %169 {offsets = [0, 0], sizes = [48, 32], strides = [1, 1]} : vector<48x96xf32> to vector<48x32xf32>
    %171 = vector.extract_strided_slice %169 {offsets = [0, 32], sizes = [48, 32], strides = [1, 1]} : vector<48x96xf32> to vector<48x32xf32>
    %172 = vector.extract_strided_slice %169 {offsets = [0, 64], sizes = [48, 32], strides = [1, 1]} : vector<48x96xf32> to vector<48x32xf32>
    %173 = vector.extract_strided_slice %171 {offsets = [0, 0], sizes = [24, 32], strides = [1, 1]} : vector<48x32xf32> to vector<24x32xf32>
    %174 = vector.extract_strided_slice %172 {offsets = [0, 0], sizes = [24, 32], strides = [1, 1]} : vector<48x32xf32> to vector<24x32xf32>
    %175 = vector.extract_strided_slice %171 {offsets = [24, 0], sizes = [24, 32], strides = [1, 1]} : vector<48x32xf32> to vector<24x32xf32>
    %176 = vector.extract_strided_slice %172 {offsets = [24, 0], sizes = [24, 32], strides = [1, 1]} : vector<48x32xf32> to vector<24x32xf32>
    %177 = tpu.concatenate %173, %173, %175, %175 in 0 : vector<24x32xf32>, vector<24x32xf32>, vector<24x32xf32>, vector<24x32xf32> -> vector<96x32xf32>
    %178 = tpu.concatenate %174, %174, %176, %176 in 0 : vector<24x32xf32>, vector<24x32xf32>, vector<24x32xf32>, vector<24x32xf32> -> vector<96x32xf32>
    %179 = tpu.concatenate %170, %170 in 0 : vector<48x32xf32>, vector<48x32xf32> -> vector<96x32xf32>
    %180 = arith.mulf %179, %177 : vector<96x32xf32>
    %cst_117 = arith.constant dense<0.000000e+00> : vector<96x4xf32>
    %181 = tpu.matmul %180, %19, %cst_117 {dimension_numbers = #tpu.dot_dimension_numbers<[1], [0], [0], [1], [0, 0, 1, 1], [], []>} : vector<96x32xf32>, vector<32x4xf32>, vector<96x4xf32> -> vector<96x4xf32>
    %cst_118 = arith.constant 0.353553385 : f32
    %182 = vector.broadcast %cst_118 : f32 to vector<96x4xf32>
    %183 = arith.mulf %181, %182 : vector<96x4xf32>
    %184 = vector.extract_strided_slice %183 {offsets = [0, 0], sizes = [48, 4], strides = [1, 1]} : vector<96x4xf32> to vector<48x4xf32>
    %185 = vector.extract_strided_slice %183 {offsets = [48, 0], sizes = [48, 4], strides = [1, 1]} : vector<96x4xf32> to vector<48x4xf32>
    %186 = arith.maximumf %184, %185 : vector<48x4xf32>
    %187 = arith.subf %184, %186 : vector<48x4xf32>
    %188 = math.exp %187 : vector<48x4xf32>
    %189 = arith.subf %185, %186 : vector<48x4xf32>
    %190 = math.exp %189 : vector<48x4xf32>
    %191 = arith.addf %188, %190 : vector<48x4xf32>
    %cst_119 = arith.constant 1.000000e+00 : f32
    %192 = vector.broadcast %cst_119 : f32 to vector<48x4xf32>
    %193 = arith.divf %192, %191 : vector<48x4xf32>
    %194 = arith.mulf %188, %193 : vector<48x4xf32>
    %195 = arith.mulf %190, %193 : vector<48x4xf32>
    %196 = tpu.concatenate %194, %195 in 0 : vector<48x4xf32>, vector<48x4xf32> -> vector<96x4xf32>
    %cst_120 = arith.constant dense<0.000000e+00> : vector<96x32xf32>
    %197 = tpu.matmul %196, %20, %cst_120 {dimension_numbers = #tpu.dot_dimension_numbers<[1], [0], [0], [1], [0, 0, 1, 1], [], []>} : vector<96x4xf32>, vector<4x32xf32>, vector<96x32xf32> -> vector<96x32xf32>
    %198 = arith.mulf %197, %178 : vector<96x32xf32>
    %199 = vector.extract_strided_slice %198 {offsets = [0, 0], sizes = [48, 32], strides = [1, 1]} : vector<96x32xf32> to vector<48x32xf32>
    %200 = vector.extract_strided_slice %198 {offsets = [48, 0], sizes = [48, 32], strides = [1, 1]} : vector<96x32xf32> to vector<48x32xf32>
    %201 = arith.addf %199, %200 : vector<48x32xf32>
    %cst_121 = arith.constant dense<0.000000e+00> : vector<48x32xf32>
    %202 = tpu.matmul %201, %148, %cst_121 {dimension_numbers = #tpu.dot_dimension_numbers<[1], [0], [0], [1], [0, 0, 1, 1], [], []>} : vector<48x32xf32>, vector<32x32xf32>, vector<48x32xf32> -> vector<48x32xf32>
    %203 = vector.broadcast %150 : vector<1x32xf32> to vector<48x32xf32>
    %204 = arith.addf %202, %203 : vector<48x32xf32>
    %205 = arith.addf %142, %204 : vector<48x32xf32>
    %cst_122 = arith.constant dense<0.000000e+00> : vector<48xf32>
    %206 = vector.multi_reduction <add>, %205, %cst_122 [1] : vector<48x32xf32> to vector<48xf32>
    %207 = vector.shape_cast %206 : vector<48xf32> to vector<48x1xf32>
    %cst_123 = arith.constant 3.200000e+01 : f32
    %208 = vector.broadcast %cst_123 : f32 to vector<48x1xf32>
    %209 = arith.divf %207, %208 : vector<48x1xf32>
    %210 = vector.broadcast %209 : vector<48x1xf32> to vector<48x32xf32>
    %211 = arith.subf %205, %210 : vector<48x32xf32>
    %212 = arith.mulf %211, %211 : vector<48x32xf32>
    %cst_124 = arith.constant dense<0.000000e+00> : vector<48xf32>
    %213 = vector.multi_reduction <add>, %212, %cst_124 [1] : vector<48x32xf32> to vector<48xf32>
    %214 = vector.shape_cast %213 : vector<48xf32> to vector<48x1xf32>
    %cst_125 = arith.constant 3.200000e+01 : f32
    %215 = vector.broadcast %cst_125 : f32 to vector<48x1xf32>
    %216 = arith.divf %214, %215 : vector<48x1xf32>
    %217 = vector.broadcast %209 : vector<48x1xf32> to vector<48x32xf32>
    %218 = arith.subf %205, %217 : vector<48x32xf32>
    %cst_126 = arith.constant 9.99999974E-6 : f32
    %219 = vector.broadcast %cst_126 : f32 to vector<48x1xf32>
    %220 = arith.addf %216, %219 : vector<48x1xf32>
    %221 = math.rsqrt %220 : vector<48x1xf32>
    %222 = vector.broadcast %221 : vector<48x1xf32> to vector<48x32xf32>
    %223 = arith.mulf %218, %222 : vector<48x32xf32>
    %224 = vector.broadcast %152 : vector<1x32xf32> to vector<48x32xf32>
    %225 = arith.mulf %223, %224 : vector<48x32xf32>
    %226 = vector.broadcast %154 : vector<1x32xf32> to vector<48x32xf32>
    %227 = arith.addf %225, %226 : vector<48x32xf32>
    %cst_127 = arith.constant dense<0.000000e+00> : vector<48x64xf32>
    %228 = tpu.matmul %227, %156, %cst_127 {dimension_numbers = #tpu.dot_dimension_numbers<[1], [0], [0], [1], [0, 0, 1, 1], [], []>} : vector<48x32xf32>, vector<32x64xf32>, vector<48x64xf32> -> vector<48x64xf32>
    %229 = vector.broadcast %158 : vector<1x64xf32> to vector<48x64xf32>
    %230 = arith.addf %228, %229 : vector<48x64xf32>
    %cst_128 = arith.constant 5.000000e-01 : f32
    %231 = vector.broadcast %cst_128 : f32 to vector<48x64xf32>
    %232 = arith.mulf %231, %230 : vector<48x64xf32>
    %cst_129 = arith.constant 0.707106769 : f32
    %233 = vector.broadcast %cst_129 : f32 to vector<48x64xf32>
    %234 = arith.mulf %230, %233 : vector<48x64xf32>
    %235 = math.erf %234 : vector<48x64xf32>
    %cst_130 = arith.constant 1.000000e+00 : f32
    %236 = vector.broadcast %cst_130 : f32 to vector<48x64xf32>
    %237 = arith.addf %236, %235 : vector<48x64xf32>
    %238 = arith.mulf %232, %237 : vector<48x64xf32>
    %cst_131 = arith.constant dense<0.000000e+00> : vector<48x32xf32>
    %239 = tpu.matmul %238, %160, %cst_131 {dimension_numbers = #tpu.dot_dimension_numbers<[1], [0], [0], [1], [0, 0, 1, 1], [], []>} : vector<48x64xf32>, vector<64x32xf32>, vector<48x32xf32> -> vector<48x32xf32>
    %240 = vector.broadcast %162 : vector<1x32xf32> to vector<48x32xf32>
    %241 = arith.addf %239, %240 : vector<48x32xf32>
    %242 = arith.addf %227, %241 : vector<48x32xf32>
    %cst_132 = arith.constant dense<0.000000e+00> : vector<48xf32>
    %243 = vector.multi_reduction <add>, %242, %cst_132 [1] : vector<48x32xf32> to vector<48xf32>
    %244 = vector.shape_cast %243 : vector<48xf32> to vector<48x1xf32>
    %cst_133 = arith.constant 3.200000e+01 : f32
    %245 = vector.broadcast %cst_133 : f32 to vector<48x1xf32>
    %246 = arith.divf %244, %245 : vector<48x1xf32>
    %247 = vector.broadcast %246 : vector<48x1xf32> to vector<48x32xf32>
    %248 = arith.subf %242, %247 : vector<48x32xf32>
    %249 = arith.mulf %248, %248 : vector<48x32xf32>
    %cst_134 = arith.constant dense<0.000000e+00> : vector<48xf32>
    %250 = vector.multi_reduction <add>, %249, %cst_134 [1] : vector<48x32xf32> to vector<48xf32>
    %251 = vector.shape_cast %250 : vector<48xf32> to vector<48x1xf32>
    %cst_135 = arith.constant 3.200000e+01 : f32
    %252 = vector.broadcast %cst_135 : f32 to vector<48x1xf32>
    %253 = arith.divf %251, %252 : vector<48x1xf32>
    %254 = vector.broadcast %246 : vector<48x1xf32> to vector<48x32xf32>
    %255 = arith.subf %242, %254 : vector<48x32xf32>
    %cst_136 = arith.constant 9.99999974E-6 : f32
    %256 = vector.broadcast %cst_136 : f32 to vector<48x1xf32>
    %257 = arith.addf %253, %256 : vector<48x1xf32>
    %258 = math.rsqrt %257 : vector<48x1xf32>
    %259 = vector.broadcast %258 : vector<48x1xf32> to vector<48x32xf32>
    %260 = arith.mulf %255, %259 : vector<48x32xf32>
    %261 = vector.broadcast %164 : vector<1x32xf32> to vector<48x32xf32>
    %262 = arith.mulf %260, %261 : vector<48x32xf32>
    %263 = vector.broadcast %166 : vector<1x32xf32> to vector<48x32xf32>
    %264 = arith.addf %262, %263 : vector<48x32xf32>
    %c0_137 = arith.constant 0 : index
    %c0_138 = arith.constant 0 : index
    %265 = vector.load %arg8[%c0_137, %c0_138] : memref<2x48xf32, #tpu.memory_space<vmem>>, vector<2x48xf32>
    %cst_139 = arith.constant dense<0.000000e+00> : vector<2x32xf32>
    %266 = tpu.matmul %265, %264, %cst_139 {dimension_numbers = #tpu.dot_dimension_numbers<[1], [0], [0], [1], [0, 0, 1, 1], [], []>} : vector<2x48xf32>, vector<48x32xf32>, vector<2x32xf32> -> vector<2x32xf32>
    %c0_140 = arith.constant 0 : index
    %c0_141 = arith.constant 0 : index
    %267 = vector.load %arg21[%c0_140, %c0_141] : memref<32x10xf32, #tpu.memory_space<vmem>>, vector<32x10xf32>
    %cst_142 = arith.constant dense<0.000000e+00> : vector<2x10xf32>
    %268 = tpu.matmul %266, %267, %cst_142 {dimension_numbers = #tpu.dot_dimension_numbers<[1], [0], [0], [1], [0, 0, 1, 1], [], []>} : vector<2x32xf32>, vector<32x10xf32>, vector<2x10xf32> -> vector<2x10xf32>
    %c0_143 = arith.constant 0 : index
    %c0_144 = arith.constant 0 : index
    %269 = vector.load %arg22[%c0_143, %c0_144] : memref<1x10xf32, #tpu.memory_space<vmem>>, vector<1x10xf32>
    %270 = vector.broadcast %269 : vector<1x10xf32> to vector<2x10xf32>
    %271 = arith.addf %268, %270 : vector<2x10xf32>
    %c0_145 = arith.constant 0 : index
    %c0_146 = arith.constant 0 : index
    %272 = vector.load %arg23[%c0_145, %c0_146] : memref<2x10xf32, #tpu.memory_space<vmem>>, vector<2x10xf32>
    tpu.vector_store %arg23[%c0_145, %c0_146], %271 {strides = array<i32>} : memref<2x10xf32, #tpu.memory_space<vmem>>, vector<2x10xf32>,
    return
  }
  func.func @transform_0(%arg0: i32) -> (i32, i32) {
    %c0_i32 = arith.constant 0 : i32
    %c0_i32_0 = arith.constant 0 : i32
    %c0_i32_1 = arith.constant 0 : i32
    return %c0_i32, %c0_i32_0 : i32, i32
  }
  func.func @transform_1(%arg0: i32) -> (i32, i32) {
    %c0_i32 = arith.constant 0 : i32
    %c0_i32_0 = arith.constant 0 : i32
    %c0_i32_1 = arith.constant 0 : i32
    return %c0_i32, %c0_i32_0 : i32, i32
  }
  func.func @transform_2(%arg0: i32) -> (i32, i32) {
    %c0_i32 = arith.constant 0 : i32
    %c0_i32_0 = arith.constant 0 : i32
    %c0_i32_1 = arith.constant 0 : i32
    return %c0_i32, %c0_i32_0 : i32, i32
  }
  func.func @transform_3(%arg0: i32) -> (i32, i32) {
    %c0_i32 = arith.constant 0 : i32
    %c0_i32_0 = arith.constant 0 : i32
    %c0_i32_1 = arith.constant 0 : i32
    return %c0_i32, %c0_i32_0 : i32, i32
  }
  func.func @transform_4(%arg0: i32) -> (i32, i32) {
    %c0_i32 = arith.constant 0 : i32
    %c0_i32_0 = arith.constant 0 : i32
    %c0_i32_1 = arith.constant 0 : i32
    return %c0_i32, %c0_i32_0 : i32, i32
  }
  func.func @transform_5(%arg0: i32) -> (i32, i32) {
    %c0_i32 = arith.constant 0 : i32
    %c0_i32_0 = arith.constant 0 : i32
    %c0_i32_1 = arith.constant 0 : i32
    return %c0_i32, %c0_i32_0 : i32, i32
  }
  func.func @transform_6(%arg0: i32) -> (i32, i32) {
    %c0_i32 = arith.constant 0 : i32
    %c0_i32_0 = arith.constant 0 : i32
    %c0_i32_1 = arith.constant 0 : i32
    return %c0_i32, %c0_i32_0 : i32, i32
  }
  func.func @transform_7(%arg0: i32) -> (i32, i32) {
    %c0_i32 = arith.constant 0 : i32
    %c0_i32_0 = arith.constant 0 : i32
    %c0_i32_1 = arith.constant 0 : i32
    return %c0_i32, %c0_i32_0 : i32, i32
  }
  func.func @transform_8(%arg0: i32) -> (i32, i32, i32) {
    %c0_i32 = arith.constant 0 : i32
    %c0_i32_0 = arith.constant 0 : i32
    %c0_i32_1 = arith.constant 0 : i32
    %c0_i32_2 = arith.constant 0 : i32
    return %c0_i32, %c0_i32_0, %c0_i32_1 : i32, i32, i32
  }
  func.func @transform_9(%arg0: i32) -> (i32, i32, i32) {
    %c0_i32 = arith.constant 0 : i32
    %c0_i32_0 = arith.constant 0 : i32
    %c0_i32_1 = arith.constant 0 : i32
    %c0_i32_2 = arith.constant 0 : i32
    return %c0_i32, %c0_i32_0, %c0_i32_1 : i32, i32, i32
  }
  func.func @transform_10(%arg0: i32) -> (i32, i32, i32) {
    %c0_i32 = arith.constant 0 : i32
    %c0_i32_0 = arith.constant 0 : i32
    %c0_i32_1 = arith.constant 0 : i32
    %c0_i32_2 = arith.constant 0 : i32
    return %c0_i32, %c0_i32_0, %c0_i32_1 : i32, i32, i32
  }
  func.func @transform_11(%arg0: i32) -> (i32, i32, i32) {
    %c0_i32 = arith.constant 0 : i32
    %c0_i32_0 = arith.constant 0 : i32
    %c0_i32_1 = arith.constant 0 : i32
    %c0_i32_2 = arith.constant 0 : i32
    return %c0_i32, %c0_i32_0, %c0_i32_1 : i32, i32, i32
  }
  func.func @transform_12(%arg0: i32) -> (i32, i32, i32) {
    %c0_i32 = arith.constant 0 : i32
    %c0_i32_0 = arith.constant 0 : i32
    %c0_i32_1 = arith.constant 0 : i32
    %c0_i32_2 = arith.constant 0 : i32
    return %c0_i32, %c0_i32_0, %c0_i32_1 : i32, i32, i32
  }
  func.func @transform_13(%arg0: i32) -> (i32, i32, i32) {
    %c0_i32 = arith.constant 0 : i32
    %c0_i32_0 = arith.constant 0 : i32
    %c0_i32_1 = arith.constant 0 : i32
    %c0_i32_2 = arith.constant 0 : i32
    return %c0_i32, %c0_i32_0, %c0_i32_1 : i32, i32, i32
  }
  func.func @transform_14(%arg0: i32) -> (i32, i32, i32) {
    %c0_i32 = arith.constant 0 : i32
    %c0_i32_0 = arith.constant 0 : i32
    %c0_i32_1 = arith.constant 0 : i32
    %c0_i32_2 = arith.constant 0 : i32
    return %c0_i32, %c0_i32_0, %c0_i32_1 : i32, i32, i32
  }
  func.func @transform_15(%arg0: i32) -> (i32, i32, i32) {
    %c0_i32 = arith.constant 0 : i32
    %c0_i32_0 = arith.constant 0 : i32
    %c0_i32_1 = arith.constant 0 : i32
    %c0_i32_2 = arith.constant 0 : i32
    return %c0_i32, %c0_i32_0, %c0_i32_1 : i32, i32, i32
  }
  func.func @transform_16(%arg0: i32) -> (i32, i32, i32) {
    %c0_i32 = arith.constant 0 : i32
    %c0_i32_0 = arith.constant 0 : i32
    %c0_i32_1 = arith.constant 0 : i32
    %c0_i32_2 = arith.constant 0 : i32
    return %c0_i32, %c0_i32_0, %c0_i32_1 : i32, i32, i32
  }
  func.func @transform_17(%arg0: i32) -> (i32, i32, i32) {
    %c0_i32 = arith.constant 0 : i32
    %c0_i32_0 = arith.constant 0 : i32
    %c0_i32_1 = arith.constant 0 : i32
    %c0_i32_2 = arith.constant 0 : i32
    return %c0_i32, %c0_i32_0, %c0_i32_1 : i32, i32, i32
  }
  func.func @transform_18(%arg0: i32) -> (i32, i32, i32) {
    %c0_i32 = arith.constant 0 : i32
    %c0_i32_0 = arith.constant 0 : i32
    %c0_i32_1 = arith.constant 0 : i32
    %c0_i32_2 = arith.constant 0 : i32
    return %c0_i32, %c0_i32_0, %c0_i32_1 : i32, i32, i32
  }
  func.func @transform_19(%arg0: i32) -> (i32, i32, i32) {
    %c0_i32 = arith.constant 0 : i32
    %c0_i32_0 = arith.constant 0 : i32
    %c0_i32_1 = arith.constant 0 : i32
    %c0_i32_2 = arith.constant 0 : i32
    return %c0_i32, %c0_i32_0, %c0_i32_1 : i32, i32, i32
  }
  func.func @transform_20(%arg0: i32) -> (i32, i32) {
    %c0_i32 = arith.constant 0 : i32
    %c0_i32_0 = arith.constant 0 : i32
    %c0_i32_1 = arith.constant 0 : i32
    return %c0_i32, %c0_i32_0 : i32, i32
  }
  func.func @transform_21(%arg0: i32) -> (i32, i32) {
    %c0_i32 = arith.constant 0 : i32
    %c0_i32_0 = arith.constant 0 : i32
    %c0_i32_1 = arith.constant 0 : i32
    return %c0_i32, %c0_i32_0 : i32, i32
  }
  func.func @transform_22(%arg0: i32) -> (i32, i32) {
    %c0_i32 = arith.constant 0 : i32
    %c0_i32_0 = arith.constant 0 : i32
    %c0_i32_1 = arith.constant 0 : i32
    return %c0_i32, %c0_i32_0 : i32, i32
  }
}

</mosaic_0001>

<llo_original>
// kernel: _lambda_.1
$region0: #{_lambda_.1}
  #allocation0 [shape = 'u32[]', space=smem, size = 0x4, offset = 0x4, fixed_abs, tag = 'smem constant byte address 0x4 - core index']
  #allocation1 [shape = 'u32[144,128]{1,0:T(1,128)}', space=vmem, size = 0x12000, scoped, tag = 'internal scratch']
  #allocation2 [shape = 'f32[48,32]{1,0:T(8,128)}', space=vmem, size = 0x6000, scoped, tag = 'scratch operand']
  %s0 = inlined_call_operand.vmem [shape: f32[32,64], index: 0, kind: input, shape index: {}]
  %s1 = inlined_call_operand.vmem [shape: f32[64,32], index: 1, kind: input, shape index: {}]
  %s2 = inlined_call_operand.vmem [shape: f32[1,32], index: 2, kind: input, shape index: {}]
  %s3 = inlined_call_operand.vmem [shape: f32[1,32], index: 3, kind: input, shape index: {}]
  %s4 = inlined_call_operand.vmem [shape: f32[16,32], index: 4, kind: input, shape index: {}]
  %s5 = inlined_call_operand.vmem [shape: f32[32,4], index: 5, kind: input, shape index: {}]
  %s6 = inlined_call_operand.vmem [shape: f32[4,32], index: 6, kind: input, shape index: {}]
  %s7 = inlined_call_operand.vmem [shape: f32[2,48], index: 7, kind: input, shape index: {}]
  %s8 = inlined_call_operand.vmem [shape: f32[2,32,96], index: 8, kind: input, shape index: {}]
  %s9 = inlined_call_operand.vmem [shape: f32[2,1,96], index: 9, kind: input, shape index: {}]
  %s10 = inlined_call_operand.vmem [shape: f32[2,32,32], index: 10, kind: input, shape index: {}]
  %s11 = inlined_call_operand.vmem [shape: f32[2,1,32], index: 11, kind: input, shape index: {}]
  %s12 = inlined_call_operand.vmem [shape: f32[2,1,32], index: 12, kind: input, shape index: {}]
  %s13 = inlined_call_operand.vmem [shape: f32[2,1,32], index: 13, kind: input, shape index: {}]
  %s14 = inlined_call_operand.vmem [shape: f32[2,32,64], index: 14, kind: input, shape index: {}]
  %s15 = inlined_call_operand.vmem [shape: f32[2,1,64], index: 15, kind: input, shape index: {}]
  %s16 = inlined_call_operand.vmem [shape: f32[2,64,32], index: 16, kind: input, shape index: {}]
  %s17 = inlined_call_operand.vmem [shape: f32[2,1,32], index: 17, kind: input, shape index: {}]
  %s18 = inlined_call_operand.vmem [shape: f32[2,1,32], index: 18, kind: input, shape index: {}]
  %s19 = inlined_call_operand.vmem [shape: f32[2,1,32], index: 19, kind: input, shape index: {}]
  %s20 = inlined_call_operand.vmem [shape: f32[32,10], index: 20, kind: input, shape index: {}]
  %s21 = inlined_call_operand.vmem [shape: f32[1,10], index: 21, kind: input, shape index: {}]
  %s22 = inlined_call_operand.hbm [shape: f32[2,10], index: 22, kind: output, shape index: {}]
  %s23 = sld [smem:[#allocation0]]
  $region98: #{_lambda_.1} parent=0
    _
  %s25 = ssub.s32 1, %s23
  %s26 = scalar_select 0, %s25, %s23
  $region1: #{_lambda_.1} parent=0
    #allocation3 [shape = 'u8[1024]{0}', space=vmem, size = 0x400, scoped, tag = 'output window, operand 0, single buffered']
    #allocation4 [shape = 's32[1]{0}', space=sflag, size = 0x4, scoped, tag = 'scoped memory for _lambda_.1']
    %27 = vsyncpa [#allocation4], 0
    // Predicated region
    $region2: #{_lambda_.1} parent=1 // pred_check
      _
    $region3: #{_lambda_.1} parent=1 // pred_check_branch
      %29 = sbr.rel (0) target = $region5
    $region4: #{_lambda_.1} parent=1 // pred_region
      _
    $region5: #{_lambda_.1} parent=1 // pred_fallthru
      _
    // Predicated region
    $region6: #{_lambda_.1} parent=1 // pred_check
      _
    $region7: #{_lambda_.1} parent=1 // pred_check_branch
      %31 = sbr.rel (0) target = $region9
    $region8: #{_lambda_.1} parent=1 // pred_region
      _
    $region9: #{_lambda_.1} parent=1 // pred_fallthru
      _
    // Predicated region
    $region10: #{_lambda_.1} parent=1 // pred_check
      _
    $region11: #{_lambda_.1} parent=1 // pred_check_branch
      %33 = sbr.rel (0) target = $region13
    $region12: #{_lambda_.1} parent=1 // pred_region
      _
    $region13: #{_lambda_.1} parent=1 // pred_fallthru
      _
    // Predicated region
    $region14: #{_lambda_.1} parent=1 // pred_check
      _
    $region15: #{_lambda_.1} parent=1 // pred_check_branch
      %35 = sbr.rel (0) target = $region17
    $region16: #{_lambda_.1} parent=1 // pred_region
      _
    $region17: #{_lambda_.1} parent=1 // pred_fallthru
      _
    // Predicated region
    $region18: #{_lambda_.1} parent=1 // pred_check
      _
    $region19: #{_lambda_.1} parent=1 // pred_check_branch
      %37 = sbr.rel (0) target = $region21
    $region20: #{_lambda_.1} parent=1 // pred_region
      _
    $region21: #{_lambda_.1} parent=1 // pred_fallthru
      _
    // Predicated region
    $region22: #{_lambda_.1} parent=1 // pred_check
      _
    $region23: #{_lambda_.1} parent=1 // pred_check_branch
      %39 = sbr.rel (0) target = $region25
    $region24: #{_lambda_.1} parent=1 // pred_region
      _
    $region25: #{_lambda_.1} parent=1 // pred_fallthru
      _
    // Predicated region
    $region26: #{_lambda_.1} parent=1 // pred_check
      _
    $region27: #{_lambda_.1} parent=1 // pred_check_branch
      %41 = sbr.rel (0) target = $region29
    $region28: #{_lambda_.1} parent=1 // pred_region
      _
    $region29: #{_lambda_.1} parent=1 // pred_fallthru
      _
    // Predicated region
    $region30: #{_lambda_.1} parent=1 // pred_check
      _
    $region31: #{_lambda_.1} parent=1 // pred_check_branch
      %43 = sbr.rel (0) target = $region33
    $region32: #{_lambda_.1} parent=1 // pred_region
      _
    $region33: #{_lambda_.1} parent=1 // pred_fallthru
      _
    // Predicated region
    $region34: #{_lambda_.1} parent=1 // pred_check
      _
    $region35: #{_lambda_.1} parent=1 // pred_check_branch
      %45 = sbr.rel (0) target = $region37
    $region36: #{_lambda_.1} parent=1 // pred_region
      _
    $region37: #{_lambda_.1} parent=1 // pred_fallthru
      _
    // Predicated region
    $region38: #{_lambda_.1} parent=1 // pred_check
      _
    $region39: #{_lambda_.1} parent=1 // pred_check_branch
      %47 = sbr.rel (0) target = $region41
    $region40: #{_lambda_.1} parent=1 // pred_region
      _
    $region41: #{_lambda_.1} parent=1 // pred_fallthru
      _
    // Predicated region
    $region42: #{_lambda_.1} parent=1 // pred_check
      _
    $region43: #{_lambda_.1} parent=1 // pred_check_branch
      %49 = sbr.rel (0) target = $region45
    $region44: #{_lambda_.1} parent=1 // pred_region
      _
    $region45: #{_lambda_.1} parent=1 // pred_fallthru
      _
    // Predicated region
    $region46: #{_lambda_.1} parent=1 // pred_check
      _
    $region47: #{_lambda_.1} parent=1 // pred_check_branch
      %51 = sbr.rel (0) target = $region49
    $region48: #{_lambda_.1} parent=1 // pred_region
      _
    $region49: #{_lambda_.1} parent=1 // pred_fallthru
      _
    // Predicated region
    $region50: #{_lambda_.1} parent=1 // pred_check
      _
    $region51: #{_lambda_.1} parent=1 // pred_check_branch
      %53 = sbr.rel (0) target = $region53
    $region52: #{_lambda_.1} parent=1 // pred_region
      _
    $region53: #{_lambda_.1} parent=1 // pred_fallthru
      _
    // Predicated region
    $region54: #{_lambda_.1} parent=1 // pred_check
      _
    $region55: #{_lambda_.1} parent=1 // pred_check_branch
      %55 = sbr.rel (0) target = $region57
    $region56: #{_lambda_.1} parent=1 // pred_region
      _
    $region57: #{_lambda_.1} parent=1 // pred_fallthru
      _
    // Predicated region
    $region58: #{_lambda_.1} parent=1 // pred_check
      _
    $region59: #{_lambda_.1} parent=1 // pred_check_branch
      %57 = sbr.rel (0) target = $region61
    $region60: #{_lambda_.1} parent=1 // pred_region
      _
    $region61: #{_lambda_.1} parent=1 // pred_fallthru
      _
    // Predicated region
    $region62: #{_lambda_.1} parent=1 // pred_check
      _
    $region63: #{_lambda_.1} parent=1 // pred_check_branch
      %59 = sbr.rel (0) target = $region65
    $region64: #{_lambda_.1} parent=1 // pred_region
      _
    $region65: #{_lambda_.1} parent=1 // pred_fallthru
      _
    // Predicated region
    $region66: #{_lambda_.1} parent=1 // pred_check
      _
    $region67: #{_lambda_.1} parent=1 // pred_check_branch
      %61 = sbr.rel (0) target = $region69
    $region68: #{_lambda_.1} parent=1 // pred_region
      _
    $region69: #{_lambda_.1} parent=1 // pred_fallthru
      _
    // Predicated region
    $region70: #{_lambda_.1} parent=1 // pred_check
      _
    $region71: #{_lambda_.1} parent=1 // pred_check_branch
      %63 = sbr.rel (0) target = $region73
    $region72: #{_lambda_.1} parent=1 // pred_region
      _
    $region73: #{_lambda_.1} parent=1 // pred_fallthru
      _
    // Predicated region
    $region74: #{_lambda_.1} parent=1 // pred_check
      _
    $region75: #{_lambda_.1} parent=1 // pred_check_branch
      %65 = sbr.rel (0) target = $region77
    $region76: #{_lambda_.1} parent=1 // pred_region
      _
    $region77: #{_lambda_.1} parent=1 // pred_fallthru
      _
    // Predicated region
    $region78: #{_lambda_.1} parent=1 // pred_check
      _
    $region79: #{_lambda_.1} parent=1 // pred_check_branch
      %67 = sbr.rel (0) target = $region81
    $region80: #{_lambda_.1} parent=1 // pred_region
      _
    $region81: #{_lambda_.1} parent=1 // pred_fallthru
      _
    // Predicated region
    $region82: #{_lambda_.1} parent=1 // pred_check
      _
    $region83: #{_lambda_.1} parent=1 // pred_check_branch
      %69 = sbr.rel (0) target = $region85
    $region84: #{_lambda_.1} parent=1 // pred_region
      _
    $region85: #{_lambda_.1} parent=1 // pred_fallthru
      _
    // Predicated region
    $region86: #{_lambda_.1} parent=1 // pred_check
      _
    $region87: #{_lambda_.1} parent=1 // pred_check_branch
      %71 = sbr.rel (0) target = $region89
    $region88: #{_lambda_.1} parent=1 // pred_region
      _
    $region89: #{_lambda_.1} parent=1 // pred_fallthru
      _
    %v72 = vld [vmem:[%s0] sm:$0xff]
    %v73 = vld [vmem:[%s0 + $0x8] sm:$0xff]
    %v74 = vld [vmem:[%s0 + $0x10] sm:$0xff]
    %v75 = vld [vmem:[%s0 + $0x18] sm:$0xff]
    %v76 = vld [vmem:[%s1] sm:$0xff]
    %v77 = vld [vmem:[%s1 + $0x8] sm:$0xff]
    %v78 = vld [vmem:[%s1 + $0x10] sm:$0xff]
    %v79 = vld [vmem:[%s1 + $0x18] sm:$0xff]
    %v80 = vld [vmem:[%s1 + $0x20] sm:$0xff]
    %v81 = vld [vmem:[%s1 + $0x28] sm:$0xff]
    %v82 = vld [vmem:[%s1 + $0x30] sm:$0xff]
    %v83 = vld [vmem:[%s1 + $0x38] sm:$0xff]
    %v84 = vld [vmem:[%s2] sm:$0x1]
    %v86 = vlaneseq
    %v87 = vshrl.u32 %v86, 7
    %v88 = vsub.s32 0, %v87
    %v89 = vrot.slane %v84, %v88
    %vm91 = vcmask 523264
    %v93 = vsel %vm91, %v72, 0
    %v96 = vsel %vm91, %v73, 0
    %v99 = vsel %vm91, %v74, 0
    %v102 = vsel %vm91, %v75, 0
    %104 = vmatprep.subr.mxu0 0.0
    %105 = vmatpush1.msra.mxu0 0.0
    %106 = vmatprep.subr.mxu0 0.0
    %107 = vmatpush1.msra.mxu0 0.0
    %108 = vmatprep.subr.mxu0 0.0
    %109 = vmatpush1.msra.mxu0 0.0
    %110 = vmatprep.subr.mxu0 0.0
    %111 = vmatpush1.msra.mxu0 0.0
    %112 = vmatprep.subr.mxu0 0.0
    %113 = vmatpush1.msra.mxu0 0.0
    %114 = vmatprep.subr.mxu0 0.0
    %115 = vmatpush1.msra.mxu0 0.0
    %116 = vmatprep.subr.mxu0 0.0
    %117 = vmatpush1.msra.mxu0 0.0
    %118 = vmatprep.subr.mxu0 0.0
    %119 = vmatpush1.msra.mxu0 0.0
    %120 = vmatprep.subr.mxu0 0.0
    %121 = vmatpush1.msra.mxu0 %v83
    %122 = vmatprep.subr.mxu0 0.0
    %123 = vmatpush1.msra.mxu0 %v82
    %124 = vmatprep.subr.mxu0 0.0
    %125 = vmatpush1.msra.mxu0 %v81
    %126 = vmatprep.subr.mxu0 0.0
    %127 = vmatpush1.msra.mxu0 %v80
    %128 = vmatprep.subr.mxu0 0.0
    %129 = vmatpush1.msra.mxu0 %v79
    %130 = vmatprep.subr.mxu0 0.0
    %131 = vmatpush1.msra.mxu0 %v78
    %132 = vmatprep.subr.mxu0 0.0
    %133 = vmatpush1.msra.mxu0 %v77
    %134 = vmatprep.subr.mxu0 0.0
    %135 = vmatpush1.msra.mxu0 %v76
    %136 = vmatprep.subr.mxu0 0.0
    %137 = vmatpush2.msra.mxu0 0.0
    %138 = vmatprep.subr.mxu0 0.0
    %139 = vmatpush2.msra.mxu0 0.0
    %140 = vmatprep.subr.mxu0 0.0
    %141 = vmatpush2.msra.mxu0 0.0
    %142 = vmatprep.subr.mxu0 0.0
    %143 = vmatpush2.msra.mxu0 0.0
    %144 = vmatprep.subr.mxu0 0.0
    %145 = vmatpush2.msra.mxu0 0.0
    %146 = vmatprep.subr.mxu0 0.0
    %147 = vmatpush2.msra.mxu0 0.0
    %148 = vmatprep.subr.mxu0 0.0
    %149 = vmatpush2.msra.mxu0 0.0
    %150 = vmatprep.subr.mxu0 0.0
    %151 = vmatpush2.msra.mxu0 0.0
    %152 = vmatprep.subr.mxu0 0.0
    %153 = vmatpush2.msra.mxu0 0.0
    %154 = vmatprep.subr.mxu0 0.0
    %155 = vmatpush2.msra.mxu0 0.0
    %156 = vmatprep.subr.mxu0 0.0
    %157 = vmatpush2.msra.mxu0 0.0
    %158 = vmatprep.subr.mxu0 0.0
    %159 = vmatpush2.msra.mxu0 0.0
    %160 = vmatprep.subr.mxu0 0.0
    %161 = vmatpush2.msra.mxu0 0.0
    %162 = vmatprep.subr.mxu0 0.0
    %163 = vmatpush2.msra.mxu0 0.0
    %164 = vmatprep.subr.mxu0 0.0
    %165 = vmatpush2.msra.mxu0 0.0
    %166 = vmatprep.subr.mxu0 0.0
    %167 = vmatpush2.msra.mxu0 0.0
    %168 = vmatprep.mubr.f32.mxu0 0.0
    %169 = vmatmul.mubr.f32.gmra.mxu0 %v93
    %v170 = vpop.f32.mrf.mxu0
    %v171 = vadd.f32 %v89, %v170
    %v172 = vpop.f32.mrf.mxu0
    %173 = vmatprep.mubr.f32.mxu0 0.0
    %174 = vmatmul.mubr.f32.gmra.mxu0 %v96
    %v175 = vpop.f32.mrf.mxu0
    %v176 = vadd.f32 %v89, %v175
    %v177 = vpop.f32.mrf.mxu0
    %178 = vmatprep.mubr.f32.mxu0 0.0
    %179 = vmatmul.mubr.f32.gmra.mxu0 %v99
    %v180 = vpop.f32.mrf.mxu0
    %v181 = vadd.f32 %v89, %v180
    %v182 = vpop.f32.mrf.mxu0
    %183 = vmatprep.mubr.f32.mxu0 0.0
    %184 = vmatmul.mubr.f32.gmra.mxu0 %v102
    %v185 = vpop.f32.mrf.mxu0
    %v186 = vadd.f32 %v89, %v185
    %v187 = vpop.f32.mrf.mxu0
    %188 = vdwg.mxu0
    %v189 = vld [vmem:[%s3] sm:$0x1]
    %v190 = vld [vmem:[%s4] sm:$0xff]
    %v191 = vld [vmem:[%s4 + $0x8] sm:$0xff]
    %vm192 = vcmask 261120
    %193 = vst.msk [vmem:[#allocation2] sm:$0xff] %vm192, 0.0
    %194 = vst.msk [vmem:[#allocation2 + $0x8] sm:$0xff] %vm192, 0.0
    %195 = vst.msk [vmem:[#allocation2 + $0x10] sm:$0xff] %vm192, 0.0
    %196 = vst.msk [vmem:[#allocation2 + $0x18] sm:$0xff] %vm192, 0.0
    %197 = vst.msk [vmem:[#allocation2 + $0x20] sm:$0xff] %vm192, 0.0
    %198 = vst.msk [vmem:[#allocation2 + $0x28] sm:$0xff] %vm192, 0.0
    %vm199 = vcmask 253952
    %200 = vst.msk [vmem:[#allocation2] sm:$0x1] %vm199, %v189
    %v201 = vadd.f32 %v171, %v190
    %v202 = vadd.f32 %v176, %v191
    %203 = vst.msk [vmem:[#allocation2 + $0x1] sm:$0xff] %vm192, %v201
    %204 = vst.msk [vmem:[#allocation2 + $0x9] sm:$0xff] %vm192, %v202
    %205 = vst.msk [vmem:[#allocation2 + $0x18] sm:$0x1] %vm199, %v189
    %v206 = vadd.f32 %v181, %v190
    %v207 = vadd.f32 %v186, %v191
    %208 = vst.msk [vmem:[#allocation2 + $0x19] sm:$0xff] %vm192, %v206
    %209 = vst.msk [vmem:[#allocation2 + $0x21] sm:$0xff] %vm192, %v207
    %v210 = vld [vmem:[#allocation2] sm:$0xff]
    %v211 = vld [vmem:[#allocation2 + $0x8] sm:$0xff]
    %v212 = vld [vmem:[#allocation2 + $0x10] sm:$0xff]
    %v213 = vld [vmem:[#allocation2 + $0x18] sm:$0xff]
    %v214 = vld [vmem:[#allocation2 + $0x20] sm:$0xff]
    %v215 = vld [vmem:[#allocation2 + $0x28] sm:$0xff]
    %v216 = vld [vmem:[%s5] sm:$0xff]
    %v217 = vld [vmem:[%s5 + $0x8] sm:$0xff]
    %v218 = vld [vmem:[%s5 + $0x10] sm:$0xff]
    %v219 = vld [vmem:[%s5 + $0x18] sm:$0xff]
    %v220 = vld [vmem:[%s6] sm:$0xf]
    %v221 = vld [vmem:[%s8] sm:$0xff]
    %v222 = vld [vmem:[%s8 + $0x8] sm:$0xff]
    %v223 = vld [vmem:[%s8 + $0x10] sm:$0xff]
    %v224 = vld [vmem:[%s8 + $0x18] sm:$0xff]
    %v225 = vld [vmem:[%s9] sm:$0x1]
    %v226 = vld [vmem:[%s10] sm:$0xff]
    %v227 = vld [vmem:[%s10 + $0x8] sm:$0xff]
    %v228 = vld [vmem:[%s10 + $0x10] sm:$0xff]
    %v229 = vld [vmem:[%s10 + $0x18] sm:$0xff]
    %v230 = vld [vmem:[%s11] sm:$0x1]
    %v231 = vld [vmem:[%s12] sm:$0x1]
    %v232 = vld [vmem:[%s13] sm:$0x1]
    %v233 = vld [vmem:[%s14] sm:$0xff]
    %v234 = vld [vmem:[%s14 + $0x8] sm:$0xff]
    %v235 = vld [vmem:[%s14 + $0x10] sm:$0xff]
    %v236 = vld [vmem:[%s14 + $0x18] sm:$0xff]
    %v237 = vld [vmem:[%s15] sm:$0x1]
    %v238 = vld [vmem:[%s16] sm:$0xff]
    %v239 = vld [vmem:[%s16 + $0x8] sm:$0xff]
    %v240 = vld [vmem:[%s16 + $0x10] sm:$0xff]
    %v241 = vld [vmem:[%s16 + $0x18] sm:$0xff]
    %v242 = vld [vmem:[%s16 + $0x20] sm:$0xff]
    %v243 = vld [vmem:[%s16 + $0x28] sm:$0xff]
    %v244 = vld [vmem:[%s16 + $0x30] sm:$0xff]
    %v245 = vld [vmem:[%s16 + $0x38] sm:$0xff]
    %v246 = vld [vmem:[%s17] sm:$0x1]
    %v247 = vld [vmem:[%s18] sm:$0x1]
    %v248 = vld [vmem:[%s19] sm:$0x1]
    %v250 = vlaneseq
    %v251 = vshrl.u32 %v250, 7
    %v252 = vsub.s32 0, %v251
    %v253 = vrot.slane %v225, %v252
    %v256 = vsel %vm192, %v210, 0
    %v259 = vsel %vm192, %v211, 0
    %v262 = vsel %vm192, %v212, 0
    %v265 = vsel %vm192, %v213, 0
    %v268 = vsel %vm192, %v214, 0
    %v271 = vsel %vm192, %v215, 0
    %273 = vmatprep.subr.mxu0 0.0
    %274 = vmatpush1.msra.mxu0 0.0
    %275 = vmatprep.subr.mxu0 0.0
    %276 = vmatpush1.msra.mxu0 0.0
    %277 = vmatprep.subr.mxu0 0.0
    %278 = vmatpush1.msra.mxu0 0.0
    %279 = vmatprep.subr.mxu0 0.0
    %280 = vmatpush1.msra.mxu0 0.0
    %281 = vmatprep.subr.mxu0 0.0
    %282 = vmatpush1.msra.mxu0 0.0
    %283 = vmatprep.subr.mxu0 0.0
    %284 = vmatpush1.msra.mxu0 0.0
    %285 = vmatprep.subr.mxu0 0.0
    %286 = vmatpush1.msra.mxu0 0.0
    %287 = vmatprep.subr.mxu0 0.0
    %288 = vmatpush1.msra.mxu0 0.0
    %289 = vmatprep.subr.mxu0 0.0
    %290 = vmatpush1.msra.mxu0 0.0
    %291 = vmatprep.subr.mxu0 0.0
    %292 = vmatpush1.msra.mxu0 0.0
    %293 = vmatprep.subr.mxu0 0.0
    %294 = vmatpush1.msra.mxu0 0.0
    %295 = vmatprep.subr.mxu0 0.0
    %296 = vmatpush1.msra.mxu0 0.0
    %297 = vmatprep.subr.mxu0 0.0
    %298 = vmatpush1.msra.mxu0 %v224
    %299 = vmatprep.subr.mxu0 0.0
    %300 = vmatpush1.msra.mxu0 %v223
    %301 = vmatprep.subr.mxu0 0.0
    %302 = vmatpush1.msra.mxu0 %v222
    %303 = vmatprep.subr.mxu0 0.0
    %304 = vmatpush1.msra.mxu0 %v221
    %305 = vmatprep.subr.mxu0 0.0
    %306 = vmatpush2.msra.mxu0 0.0
    %307 = vmatprep.subr.mxu0 0.0
    %308 = vmatpush2.msra.mxu0 0.0
    %309 = vmatprep.subr.mxu0 0.0
    %310 = vmatpush2.msra.mxu0 0.0
    %311 = vmatprep.subr.mxu0 0.0
    %312 = vmatpush2.msra.mxu0 0.0
    %313 = vmatprep.subr.mxu0 0.0
    %314 = vmatpush2.msra.mxu0 0.0
    %315 = vmatprep.subr.mxu0 0.0
    %316 = vmatpush2.msra.mxu0 0.0
    %317 = vmatprep.subr.mxu0 0.0
    %318 = vmatpush2.msra.mxu0 0.0
    %319 = vmatprep.subr.mxu0 0.0
    %320 = vmatpush2.msra.mxu0 0.0
    %321 = vmatprep.subr.mxu0 0.0
    %322 = vmatpush2.msra.mxu0 0.0
    %323 = vmatprep.subr.mxu0 0.0
    %324 = vmatpush2.msra.mxu0 0.0
    %325 = vmatprep.subr.mxu0 0.0
    %326 = vmatpush2.msra.mxu0 0.0
    %327 = vmatprep.subr.mxu0 0.0
    %328 = vmatpush2.msra.mxu0 0.0
    %329 = vmatprep.subr.mxu0 0.0
    %330 = vmatpush2.msra.mxu0 0.0
    %331 = vmatprep.subr.mxu0 0.0
    %332 = vmatpush2.msra.mxu0 0.0
    %333 = vmatprep.subr.mxu0 0.0
    %334 = vmatpush2.msra.mxu0 0.0
    %335 = vmatprep.subr.mxu0 0.0
    %336 = vmatpush2.msra.mxu0 0.0
    %337 = vmatprep.mubr.f32.mxu0 0.0
    %338 = vmatmul.mubr.f32.gmra.mxu0 %v256
    %v339 = vpop.f32.mrf.mxu0
    %v340 = vadd.f32 %v253, %v339
    %v341 = vpop.f32.mrf.mxu0
    %342 = vmatprep.mubr.f32.mxu0 0.0
    %343 = vmatmul.mubr.f32.gmra.mxu0 %v259
    %v344 = vpop.f32.mrf.mxu0
    %v345 = vadd.f32 %v253, %v344
    %v346 = vpop.f32.mrf.mxu0
    %347 = vmatprep.mubr.f32.mxu0 0.0
    %348 = vmatmul.mubr.f32.gmra.mxu0 %v262
    %v349 = vpop.f32.mrf.mxu0
    %v350 = vadd.f32 %v253, %v349
    %v351 = vpop.f32.mrf.mxu0
    %352 = vmatprep.mubr.f32.mxu0 0.0
    %353 = vmatmul.mubr.f32.gmra.mxu0 %v265
    %v354 = vpop.f32.mrf.mxu0
    %v355 = vadd.f32 %v253, %v354
    %v356 = vpop.f32.mrf.mxu0
    %357 = vmatprep.mubr.f32.mxu0 0.0
    %358 = vmatmul.mubr.f32.gmra.mxu0 %v268
    %v359 = vpop.f32.mrf.mxu0
    %v360 = vadd.f32 %v253, %v359
    %v361 = vpop.f32.mrf.mxu0
    %362 = vmatprep.mubr.f32.mxu0 0.0
    %363 = vmatmul.mubr.f32.gmra.mxu0 %v271
    %v364 = vpop.f32.mrf.mxu0
    %v365 = vadd.f32 %v253, %v364
    %v366 = vpop.f32.mrf.mxu0
    %367 = vdwg.mxu0
    %374 = vrot.lane.b32.xlu0 %v340, 96
    %v375 = vpop.permute.xlu0 %374
    %376 = vrot.lane.b32.xlu0 %v345, 96
    %v377 = vpop.permute.xlu0 %376
    %378 = vrot.lane.b32.xlu0 %v350, 96
    %v379 = vpop.permute.xlu0 %378
    %380 = vrot.lane.b32.xlu0 %v355, 96
    %v381 = vpop.permute.xlu0 %380
    %382 = vrot.lane.b32.xlu0 %v360, 96
    %v383 = vpop.permute.xlu0 %382
    %384 = vrot.lane.b32.xlu0 %v365, 96
    %v385 = vpop.permute.xlu0 %384
    %v392 = vmul.f32 %v340, %v375
    %v393 = vmul.f32 %v345, %v377
    %v394 = vmul.f32 %v350, %v379
    %v395 = vmul.f32 %v355, %v375
    %v396 = vmul.f32 %v360, %v377
    %v397 = vmul.f32 %v365, %v379
    %v398 = vmul.f32 %v340, %v381
    %v399 = vmul.f32 %v345, %v383
    %v400 = vmul.f32 %v350, %v385
    %v401 = vmul.f32 %v355, %v381
    %v402 = vmul.f32 %v360, %v383
    %v403 = vmul.f32 %v365, %v385
    %v405 = vsel %vm192, %v392, 0
    %v408 = vsel %vm192, %v393, 0
    %v411 = vsel %vm192, %v394, 0
    %v414 = vsel %vm192, %v395, 0
    %v417 = vsel %vm192, %v396, 0
    %v420 = vsel %vm192, %v397, 0
    %v423 = vsel %vm192, %v398, 0
    %v426 = vsel %vm192, %v399, 0
    %v429 = vsel %vm192, %v400, 0
    %v432 = vsel %vm192, %v401, 0
    %v435 = vsel %vm192, %v402, 0
    %v438 = vsel %vm192, %v403, 0
    %440 = vmatprep.subr.mxu0 0.0
    %441 = vmatpush1.msra.mxu0 0.0
    %442 = vmatprep.subr.mxu0 0.0
    %443 = vmatpush1.msra.mxu0 0.0
    %444 = vmatprep.subr.mxu0 0.0
    %445 = vmatpush1.msra.mxu0 0.0
    %446 = vmatprep.subr.mxu0 0.0
    %447 = vmatpush1.msra.mxu0 0.0
    %448 = vmatprep.subr.mxu0 0.0
    %449 = vmatpush1.msra.mxu0 0.0
    %450 = vmatprep.subr.mxu0 0.0
    %451 = vmatpush1.msra.mxu0 0.0
    %452 = vmatprep.subr.mxu0 0.0
    %453 = vmatpush1.msra.mxu0 0.0
    %454 = vmatprep.subr.mxu0 0.0
    %455 = vmatpush1.msra.mxu0 0.0
    %456 = vmatprep.subr.mxu0 0.0
    %457 = vmatpush1.msra.mxu0 0.0
    %458 = vmatprep.subr.mxu0 0.0
    %459 = vmatpush1.msra.mxu0 0.0
    %460 = vmatprep.subr.mxu0 0.0
    %461 = vmatpush1.msra.mxu0 0.0
    %462 = vmatprep.subr.mxu0 0.0
    %463 = vmatpush1.msra.mxu0 0.0
    %464 = vmatprep.subr.mxu0 0.0
    %465 = vmatpush1.msra.mxu0 %v219
    %466 = vmatprep.subr.mxu0 0.0
    %467 = vmatpush1.msra.mxu0 %v218
    %468 = vmatprep.subr.mxu0 0.0
    %469 = vmatpush1.msra.mxu0 %v217
    %470 = vmatprep.subr.mxu0 0.0
    %471 = vmatpush1.msra.mxu0 %v216
    %472 = vmatprep.subr.mxu0 0.0
    %473 = vmatpush2.msra.mxu0 0.0
    %474 = vmatprep.subr.mxu0 0.0
    %475 = vmatpush2.msra.mxu0 0.0
    %476 = vmatprep.subr.mxu0 0.0
    %477 = vmatpush2.msra.mxu0 0.0
    %478 = vmatprep.subr.mxu0 0.0
    %479 = vmatpush2.msra.mxu0 0.0
    %480 = vmatprep.subr.mxu0 0.0
    %481 = vmatpush2.msra.mxu0 0.0
    %482 = vmatprep.subr.mxu0 0.0
    %483 = vmatpush2.msra.mxu0 0.0
    %484 = vmatprep.subr.mxu0 0.0
    %485 = vmatpush2.msra.mxu0 0.0
    %486 = vmatprep.subr.mxu0 0.0
    %487 = vmatpush2.msra.mxu0 0.0
    %488 = vmatprep.subr.mxu0 0.0
    %489 = vmatpush2.msra.mxu0 0.0
    %490 = vmatprep.subr.mxu0 0.0
    %491 = vmatpush2.msra.mxu0 0.0
    %492 = vmatprep.subr.mxu0 0.0
    %493 = vmatpush2.msra.mxu0 0.0
    %494 = vmatprep.subr.mxu0 0.0
    %495 = vmatpush2.msra.mxu0 0.0
    %496 = vmatprep.subr.mxu0 0.0
    %497 = vmatpush2.msra.mxu0 0.0
    %498 = vmatprep.subr.mxu0 0.0
    %499 = vmatpush2.msra.mxu0 0.0
    %500 = vmatprep.subr.mxu0 0.0
    %501 = vmatpush2.msra.mxu0 0.0
    %502 = vmatprep.subr.mxu0 0.0
    %503 = vmatpush2.msra.mxu0 0.0
    %504 = vmatprep.mubr.f32.mxu0 0.0
    %505 = vmatmul.mubr.f32.gmra.mxu0 %v405
    %v506 = vpop.f32.mrf.mxu0
    %v507 = vadd.f32 0.0, %v506
    %v508 = vpop.f32.mrf.mxu0
    %509 = vmatprep.mubr.f32.mxu0 0.0
    %510 = vmatmul.mubr.f32.gmra.mxu0 %v408
    %v511 = vpop.f32.mrf.mxu0
    %v512 = vadd.f32 0.0, %v511
    %v513 = vpop.f32.mrf.mxu0
    %514 = vmatprep.mubr.f32.mxu0 0.0
    %515 = vmatmul.mubr.f32.gmra.mxu0 %v411
    %v516 = vpop.f32.mrf.mxu0
    %v517 = vadd.f32 0.0, %v516
    %v518 = vpop.f32.mrf.mxu0
    %519 = vmatprep.mubr.f32.mxu0 0.0
    %520 = vmatmul.mubr.f32.gmra.mxu0 %v414
    %v521 = vpop.f32.mrf.mxu0
    %v522 = vadd.f32 0.0, %v521
    %v523 = vpop.f32.mrf.mxu0
    %524 = vmatprep.mubr.f32.mxu0 0.0
    %525 = vmatmul.mubr.f32.gmra.mxu0 %v417
    %v526 = vpop.f32.mrf.mxu0
    %v527 = vadd.f32 0.0, %v526
    %v528 = vpop.f32.mrf.mxu0
    %529 = vmatprep.mubr.f32.mxu0 0.0
    %530 = vmatmul.mubr.f32.gmra.mxu0 %v420
    %v531 = vpop.f32.mrf.mxu0
    %v532 = vadd.f32 0.0, %v531
    %v533 = vpop.f32.mrf.mxu0
    %534 = vmatprep.mubr.f32.mxu0 0.0
    %535 = vmatmul.mubr.f32.gmra.mxu0 %v423
    %v536 = vpop.f32.mrf.mxu0
    %v537 = vadd.f32 0.0, %v536
    %v538 = vpop.f32.mrf.mxu0
    %539 = vmatprep.mubr.f32.mxu0 0.0
    %540 = vmatmul.mubr.f32.gmra.mxu0 %v426
    %v541 = vpop.f32.mrf.mxu0
    %v542 = vadd.f32 0.0, %v541
    %v543 = vpop.f32.mrf.mxu0
    %544 = vmatprep.mubr.f32.mxu0 0.0
    %545 = vmatmul.mubr.f32.gmra.mxu0 %v429
    %v546 = vpop.f32.mrf.mxu0
    %v547 = vadd.f32 0.0, %v546
    %v548 = vpop.f32.mrf.mxu0
    %549 = vmatprep.mubr.f32.mxu0 0.0
    %550 = vmatmul.mubr.f32.gmra.mxu0 %v432
    %v551 = vpop.f32.mrf.mxu0
    %v552 = vadd.f32 0.0, %v551
    %v553 = vpop.f32.mrf.mxu0
    %554 = vmatprep.mubr.f32.mxu0 0.0
    %555 = vmatmul.mubr.f32.gmra.mxu0 %v435
    %v556 = vpop.f32.mrf.mxu0
    %v557 = vadd.f32 0.0, %v556
    %v558 = vpop.f32.mrf.mxu0
    %559 = vmatprep.mubr.f32.mxu0 0.0
    %560 = vmatmul.mubr.f32.gmra.mxu0 %v438
    %v561 = vpop.f32.mrf.mxu0
    %v562 = vadd.f32 0.0, %v561
    %v563 = vpop.f32.mrf.mxu0
    %564 = vdwg.mxu0
    %v565 = vmul.f32 %v507, 0.35355338
    %v566 = vmul.f32 %v512, 0.35355338
    %v567 = vmul.f32 %v517, 0.35355338
    %v568 = vmul.f32 %v522, 0.35355338
    %v569 = vmul.f32 %v527, 0.35355338
    %v570 = vmul.f32 %v532, 0.35355338
    %v571 = vmul.f32 %v537, 0.35355338
    %v572 = vmul.f32 %v542, 0.35355338
    %v573 = vmul.f32 %v547, 0.35355338
    %v574 = vmul.f32 %v552, 0.35355338
    %v575 = vmul.f32 %v557, 0.35355338
    %v576 = vmul.f32 %v562, 0.35355338
    %v577 = vmax.f32 %v565, %v571
    %v578 = vmax.f32 %v566, %v572
    %v579 = vmax.f32 %v567, %v573
    %v580 = vmax.f32 %v568, %v574
    %v581 = vmax.f32 %v569, %v575
    %v582 = vmax.f32 %v570, %v576
    %v583 = vsub.f32 %v565, %v577
    %v584 = vsub.f32 %v566, %v578
    %v585 = vsub.f32 %v567, %v579
    %v586 = vsub.f32 %v568, %v580
    %v587 = vsub.f32 %v569, %v581
    %v588 = vsub.f32 %v570, %v582
    %v589 = vmul.f32 %v583, 1.442695
    %v590 = vpow.pop %v589
    %v591 = vmul.f32 %v584, 1.442695
    %v592 = vpow.pop %v591
    %v593 = vmul.f32 %v585, 1.442695
    %v594 = vpow.pop %v593
    %v595 = vmul.f32 %v586, 1.442695
    %v596 = vpow.pop %v595
    %v597 = vmul.f32 %v587, 1.442695
    %v598 = vpow.pop %v597
    %v599 = vmul.f32 %v588, 1.442695
    %v600 = vpow.pop %v599
    %v601 = vsub.f32 %v571, %v577
    %v602 = vsub.f32 %v572, %v578
    %v603 = vsub.f32 %v573, %v579
    %v604 = vsub.f32 %v574, %v580
    %v605 = vsub.f32 %v575, %v581
    %v606 = vsub.f32 %v576, %v582
    %v607 = vmul.f32 %v601, 1.442695
    %v608 = vpow.pop %v607
    %v609 = vmul.f32 %v602, 1.442695
    %v610 = vpow.pop %v609
    %v611 = vmul.f32 %v603, 1.442695
    %v612 = vpow.pop %v611
    %v613 = vmul.f32 %v604, 1.442695
    %v614 = vpow.pop %v613
    %v615 = vmul.f32 %v605, 1.442695
    %v616 = vpow.pop %v615
    %v617 = vmul.f32 %v606, 1.442695
    %v618 = vpow.pop %v617
    %v619 = vadd.f32 %v590, %v608
    %v620 = vadd.f32 %v592, %v610
    %v621 = vadd.f32 %v594, %v612
    %v622 = vadd.f32 %v596, %v614
    %v623 = vadd.f32 %v598, %v616
    %v624 = vadd.f32 %v600, %v618
    %v625 = vrcp.pop %v619
    %v626 = vmul.f32 1.0, %v625
    %v627 = vrcp.pop %v620
    %v628 = vmul.f32 1.0, %v627
    %v629 = vrcp.pop %v621
    %v630 = vmul.f32 1.0, %v629
    %v631 = vrcp.pop %v622
    %v632 = vmul.f32 1.0, %v631
    %v633 = vrcp.pop %v623
    %v634 = vmul.f32 1.0, %v633
    %v635 = vrcp.pop %v624
    %v636 = vmul.f32 1.0, %v635
    %v637 = vmul.f32 %v590, %v626
    %v638 = vmul.f32 %v592, %v628
    %v639 = vmul.f32 %v594, %v630
    %v640 = vmul.f32 %v596, %v632
    %v641 = vmul.f32 %v598, %v634
    %v642 = vmul.f32 %v600, %v636
    %v643 = vmul.f32 %v608, %v626
    %v644 = vmul.f32 %v610, %v628
    %v645 = vmul.f32 %v612, %v630
    %v646 = vmul.f32 %v614, %v632
    %v647 = vmul.f32 %v616, %v634
    %v648 = vmul.f32 %v618, %v636
    %vm649 = vcmask 31744
    %v651 = vsel %vm649, %v637, 0
    %v654 = vsel %vm649, %v638, 0
    %v657 = vsel %vm649, %v639, 0
    %v660 = vsel %vm649, %v640, 0
    %v663 = vsel %vm649, %v641, 0
    %v666 = vsel %vm649, %v642, 0
    %v669 = vsel %vm649, %v643, 0
    %v672 = vsel %vm649, %v644, 0
    %v675 = vsel %vm649, %v645, 0
    %v678 = vsel %vm649, %v646, 0
    %v681 = vsel %vm649, %v647, 0
    %v684 = vsel %vm649, %v648, 0
    %vm686 = vcmask 1043456
    %v688 = vsel %vm686, %v220, 0
    %690 = vmatprep.subr.mxu0 0.0
    %691 = vmatpush1.msra.mxu0 0.0
    %692 = vmatprep.subr.mxu0 0.0
    %693 = vmatpush1.msra.mxu0 0.0
    %694 = vmatprep.subr.mxu0 0.0
    %695 = vmatpush1.msra.mxu0 0.0
    %696 = vmatprep.subr.mxu0 0.0
    %697 = vmatpush1.msra.mxu0 0.0
    %698 = vmatprep.subr.mxu0 0.0
    %699 = vmatpush1.msra.mxu0 0.0
    %700 = vmatprep.subr.mxu0 0.0
    %701 = vmatpush1.msra.mxu0 0.0
    %702 = vmatprep.subr.mxu0 0.0
    %703 = vmatpush1.msra.mxu0 0.0
    %704 = vmatprep.subr.mxu0 0.0
    %705 = vmatpush1.msra.mxu0 0.0
    %706 = vmatprep.subr.mxu0 0.0
    %707 = vmatpush1.msra.mxu0 0.0
    %708 = vmatprep.subr.mxu0 0.0
    %709 = vmatpush1.msra.mxu0 0.0
    %710 = vmatprep.subr.mxu0 0.0
    %711 = vmatpush1.msra.mxu0 0.0
    %712 = vmatprep.subr.mxu0 0.0
    %713 = vmatpush1.msra.mxu0 0.0
    %714 = vmatprep.subr.mxu0 0.0
    %715 = vmatpush1.msra.mxu0 0.0
    %716 = vmatprep.subr.mxu0 0.0
    %717 = vmatpush1.msra.mxu0 0.0
    %718 = vmatprep.subr.mxu0 0.0
    %719 = vmatpush1.msra.mxu0 0.0
    %720 = vmatprep.subr.mxu0 0.0
    %721 = vmatpush1.msra.mxu0 %v688
    %722 = vmatprep.subr.mxu0 0.0
    %723 = vmatpush2.msra.mxu0 0.0
    %724 = vmatprep.subr.mxu0 0.0
    %725 = vmatpush2.msra.mxu0 0.0
    %726 = vmatprep.subr.mxu0 0.0
    %727 = vmatpush2.msra.mxu0 0.0
    %728 = vmatprep.subr.mxu0 0.0
    %729 = vmatpush2.msra.mxu0 0.0
    %730 = vmatprep.subr.mxu0 0.0
    %731 = vmatpush2.msra.mxu0 0.0
    %732 = vmatprep.subr.mxu0 0.0
    %733 = vmatpush2.msra.mxu0 0.0
    %734 = vmatprep.subr.mxu0 0.0
    %735 = vmatpush2.msra.mxu0 0.0
    %736 = vmatprep.subr.mxu0 0.0
    %737 = vmatpush2.msra.mxu0 0.0
    %738 = vmatprep.subr.mxu0 0.0
    %739 = vmatpush2.msra.mxu0 0.0
    %740 = vmatprep.subr.mxu0 0.0
    %741 = vmatpush2.msra.mxu0 0.0
    %742 = vmatprep.subr.mxu0 0.0
    %743 = vmatpush2.msra.mxu0 0.0
    %744 = vmatprep.subr.mxu0 0.0
    %745 = vmatpush2.msra.mxu0 0.0
    %746 = vmatprep.subr.mxu0 0.0
    %747 = vmatpush2.msra.mxu0 0.0
    %748 = vmatprep.subr.mxu0 0.0
    %749 = vmatpush2.msra.mxu0 0.0
    %750 = vmatprep.subr.mxu0 0.0
    %751 = vmatpush2.msra.mxu0 0.0
    %752 = vmatprep.subr.mxu0 0.0
    %753 = vmatpush2.msra.mxu0 0.0
    %754 = vmatprep.mubr.f32.mxu0 0.0
    %755 = vmatmul.mubr.f32.gmra.mxu0 %v651
    %v756 = vpop.f32.mrf.mxu0
    %v757 = vadd.f32 0.0, %v756
    %v758 = vpop.f32.mrf.mxu0
    %759 = vmatprep.mubr.f32.mxu0 0.0
    %760 = vmatmul.mubr.f32.gmra.mxu0 %v654
    %v761 = vpop.f32.mrf.mxu0
    %v762 = vadd.f32 0.0, %v761
    %v763 = vpop.f32.mrf.mxu0
    %764 = vmatprep.mubr.f32.mxu0 0.0
    %765 = vmatmul.mubr.f32.gmra.mxu0 %v657
    %v766 = vpop.f32.mrf.mxu0
    %v767 = vadd.f32 0.0, %v766
    %v768 = vpop.f32.mrf.mxu0
    %769 = vmatprep.mubr.f32.mxu0 0.0
    %770 = vmatmul.mubr.f32.gmra.mxu0 %v660
    %v771 = vpop.f32.mrf.mxu0
    %v772 = vadd.f32 0.0, %v771
    %v773 = vpop.f32.mrf.mxu0
    %774 = vmatprep.mubr.f32.mxu0 0.0
    %775 = vmatmul.mubr.f32.gmra.mxu0 %v663
    %v776 = vpop.f32.mrf.mxu0
    %v777 = vadd.f32 0.0, %v776
    %v778 = vpop.f32.mrf.mxu0
    %779 = vmatprep.mubr.f32.mxu0 0.0
    %780 = vmatmul.mubr.f32.gmra.mxu0 %v666
    %v781 = vpop.f32.mrf.mxu0
    %v782 = vadd.f32 0.0, %v781
    %v783 = vpop.f32.mrf.mxu0
    %784 = vmatprep.mubr.f32.mxu0 0.0
    %785 = vmatmul.mubr.f32.gmra.mxu0 %v669
    %v786 = vpop.f32.mrf.mxu0
    %v787 = vadd.f32 0.0, %v786
    %v788 = vpop.f32.mrf.mxu0
    %789 = vmatprep.mubr.f32.mxu0 0.0
    %790 = vmatmul.mubr.f32.gmra.mxu0 %v672
    %v791 = vpop.f32.mrf.mxu0
    %v792 = vadd.f32 0.0, %v791
    %v793 = vpop.f32.mrf.mxu0
    %794 = vmatprep.mubr.f32.mxu0 0.0
    %795 = vmatmul.mubr.f32.gmra.mxu0 %v675
    %v796 = vpop.f32.mrf.mxu0
    %v797 = vadd.f32 0.0, %v796
    %v798 = vpop.f32.mrf.mxu0
    %799 = vmatprep.mubr.f32.mxu0 0.0
    %800 = vmatmul.mubr.f32.gmra.mxu0 %v678
    %v801 = vpop.f32.mrf.mxu0
    %v802 = vadd.f32 0.0, %v801
    %v803 = vpop.f32.mrf.mxu0
    %804 = vmatprep.mubr.f32.mxu0 0.0
    %805 = vmatmul.mubr.f32.gmra.mxu0 %v681
    %v806 = vpop.f32.mrf.mxu0
    %v807 = vadd.f32 0.0, %v806
    %v808 = vpop.f32.mrf.mxu0
    %809 = vmatprep.mubr.f32.mxu0 0.0
    %810 = vmatmul.mubr.f32.gmra.mxu0 %v684
    %v811 = vpop.f32.mrf.mxu0
    %v812 = vadd.f32 0.0, %v811
    %v813 = vpop.f32.mrf.mxu0
    %814 = vdwg.mxu0
    %815 = vrot.lane.b32.xlu0 %v340, 64
    %v816 = vpop.permute.xlu0 %815
    %817 = vrot.lane.b32.xlu0 %v345, 64
    %v818 = vpop.permute.xlu0 %817
    %819 = vrot.lane.b32.xlu0 %v350, 64
    %v820 = vpop.permute.xlu0 %819
    %821 = vrot.lane.b32.xlu0 %v355, 64
    %v822 = vpop.permute.xlu0 %821
    %823 = vrot.lane.b32.xlu0 %v360, 64
    %v824 = vpop.permute.xlu0 %823
    %825 = vrot.lane.b32.xlu0 %v365, 64
    %v826 = vpop.permute.xlu0 %825
    %v833 = vmul.f32 %v757, %v816
    %v834 = vmul.f32 %v762, %v818
    %v835 = vmul.f32 %v767, %v820
    %v836 = vmul.f32 %v772, %v816
    %v837 = vmul.f32 %v777, %v818
    %v838 = vmul.f32 %v782, %v820
    %v839 = vmul.f32 %v787, %v822
    %v840 = vmul.f32 %v792, %v824
    %v841 = vmul.f32 %v797, %v826
    %v842 = vmul.f32 %v802, %v822
    %v843 = vmul.f32 %v807, %v824
    %v844 = vmul.f32 %v812, %v826
    %v845 = vadd.f32 %v833, %v839
    %v846 = vadd.f32 %v834, %v840
    %v847 = vadd.f32 %v835, %v841
    %v848 = vadd.f32 %v836, %v842
    %v849 = vadd.f32 %v837, %v843
    %v850 = vadd.f32 %v838, %v844
    %v852 = vlaneseq
    %v853 = vshrl.u32 %v852, 7
    %v854 = vsub.s32 0, %v853
    %v855 = vrot.slane %v230, %v854
    %v858 = vsel %vm192, %v845, 0
    %v861 = vsel %vm192, %v846, 0
    %v864 = vsel %vm192, %v847, 0
    %v867 = vsel %vm192, %v848, 0
    %v870 = vsel %vm192, %v849, 0
    %v873 = vsel %vm192, %v850, 0
    %875 = vmatprep.subr.mxu0 0.0
    %876 = vmatpush1.msra.mxu0 0.0
    %877 = vmatprep.subr.mxu0 0.0
    %878 = vmatpush1.msra.mxu0 0.0
    %879 = vmatprep.subr.mxu0 0.0
    %880 = vmatpush1.msra.mxu0 0.0
    %881 = vmatprep.subr.mxu0 0.0
    %882 = vmatpush1.msra.mxu0 0.0
    %883 = vmatprep.subr.mxu0 0.0
    %884 = vmatpush1.msra.mxu0 0.0
    %885 = vmatprep.subr.mxu0 0.0
    %886 = vmatpush1.msra.mxu0 0.0
    %887 = vmatprep.subr.mxu0 0.0
    %888 = vmatpush1.msra.mxu0 0.0
    %889 = vmatprep.subr.mxu0 0.0
    %890 = vmatpush1.msra.mxu0 0.0
    %891 = vmatprep.subr.mxu0 0.0
    %892 = vmatpush1.msra.mxu0 0.0
    %893 = vmatprep.subr.mxu0 0.0
    %894 = vmatpush1.msra.mxu0 0.0
    %895 = vmatprep.subr.mxu0 0.0
    %896 = vmatpush1.msra.mxu0 0.0
    %897 = vmatprep.subr.mxu0 0.0
    %898 = vmatpush1.msra.mxu0 0.0
    %899 = vmatprep.subr.mxu0 0.0
    %900 = vmatpush1.msra.mxu0 %v229
    %901 = vmatprep.subr.mxu0 0.0
    %902 = vmatpush1.msra.mxu0 %v228
    %903 = vmatprep.subr.mxu0 0.0
    %904 = vmatpush1.msra.mxu0 %v227
    %905 = vmatprep.subr.mxu0 0.0
    %906 = vmatpush1.msra.mxu0 %v226
    %907 = vmatprep.subr.mxu0 0.0
    %908 = vmatpush2.msra.mxu0 0.0
    %909 = vmatprep.subr.mxu0 0.0
    %910 = vmatpush2.msra.mxu0 0.0
    %911 = vmatprep.subr.mxu0 0.0
    %912 = vmatpush2.msra.mxu0 0.0
    %913 = vmatprep.subr.mxu0 0.0
    %914 = vmatpush2.msra.mxu0 0.0
    %915 = vmatprep.subr.mxu0 0.0
    %916 = vmatpush2.msra.mxu0 0.0
    %917 = vmatprep.subr.mxu0 0.0
    %918 = vmatpush2.msra.mxu0 0.0
    %919 = vmatprep.subr.mxu0 0.0
    %920 = vmatpush2.msra.mxu0 0.0
    %921 = vmatprep.subr.mxu0 0.0
    %922 = vmatpush2.msra.mxu0 0.0
    %923 = vmatprep.subr.mxu0 0.0
    %924 = vmatpush2.msra.mxu0 0.0
    %925 = vmatprep.subr.mxu0 0.0
    %926 = vmatpush2.msra.mxu0 0.0
    %927 = vmatprep.subr.mxu0 0.0
    %928 = vmatpush2.msra.mxu0 0.0
    %929 = vmatprep.subr.mxu0 0.0
    %930 = vmatpush2.msra.mxu0 0.0
    %931 = vmatprep.subr.mxu0 0.0
    %932 = vmatpush2.msra.mxu0 0.0
    %933 = vmatprep.subr.mxu0 0.0
    %934 = vmatpush2.msra.mxu0 0.0
    %935 = vmatprep.subr.mxu0 0.0
    %936 = vmatpush2.msra.mxu0 0.0
    %937 = vmatprep.subr.mxu0 0.0
    %938 = vmatpush2.msra.mxu0 0.0
    %939 = vmatprep.mubr.f32.mxu0 0.0
    %940 = vmatmul.mubr.f32.gmra.mxu0 %v858
    %v941 = vpop.f32.mrf.mxu0
    %v942 = vadd.f32 %v855, %v941
    %v943 = vpop.f32.mrf.mxu0
    %944 = vmatprep.mubr.f32.mxu0 0.0
    %945 = vmatmul.mubr.f32.gmra.mxu0 %v861
    %v946 = vpop.f32.mrf.mxu0
    %v947 = vadd.f32 %v855, %v946
    %v948 = vpop.f32.mrf.mxu0
    %949 = vmatprep.mubr.f32.mxu0 0.0
    %950 = vmatmul.mubr.f32.gmra.mxu0 %v864
    %v951 = vpop.f32.mrf.mxu0
    %v952 = vadd.f32 %v855, %v951
    %v953 = vpop.f32.mrf.mxu0
    %954 = vmatprep.mubr.f32.mxu0 0.0
    %955 = vmatmul.mubr.f32.gmra.mxu0 %v867
    %v956 = vpop.f32.mrf.mxu0
    %v957 = vadd.f32 %v855, %v956
    %v958 = vpop.f32.mrf.mxu0
    %959 = vmatprep.mubr.f32.mxu0 0.0
    %960 = vmatmul.mubr.f32.gmra.mxu0 %v870
    %v961 = vpop.f32.mrf.mxu0
    %v962 = vadd.f32 %v855, %v961
    %v963 = vpop.f32.mrf.mxu0
    %964 = vmatprep.mubr.f32.mxu0 0.0
    %965 = vmatmul.mubr.f32.gmra.mxu0 %v873
    %v966 = vpop.f32.mrf.mxu0
    %v967 = vadd.f32 %v855, %v966
    %v968 = vpop.f32.mrf.mxu0
    %969 = vdwg.mxu0
    %v970 = vadd.f32 %v210, %v942
    %v971 = vadd.f32 %v211, %v947
    %v972 = vadd.f32 %v212, %v952
    %v973 = vadd.f32 %v213, %v957
    %v974 = vadd.f32 %v214, %v962
    %v975 = vadd.f32 %v215, %v967
    %v976 = vsel %vm192, %v970, 0.0
    %977 = vadd.xlane.f32.xlu0 %v976
    %v978 = vpop.xlane.xlu0 %977
    %v979 = vsel %vm192, %v971, 0.0
    %980 = vadd.xlane.f32.xlu0 %v979
    %v981 = vpop.xlane.xlu0 %980
    %v982 = vsel %vm192, %v972, 0.0
    %983 = vadd.xlane.f32.xlu0 %v982
    %v984 = vpop.xlane.xlu0 %983
    %v985 = vsel %vm192, %v973, 0.0
    %986 = vadd.xlane.f32.xlu0 %v985
    %v987 = vpop.xlane.xlu0 %986
    %v988 = vsel %vm192, %v974, 0.0
    %989 = vadd.xlane.f32.xlu0 %v988
    %v990 = vpop.xlane.xlu0 %989
    %v991 = vsel %vm192, %v975, 0.0
    %992 = vadd.xlane.f32.xlu0 %v991
    %v993 = vpop.xlane.xlu0 %992
    %v994 = vrcp.pop 32.0
    %v995 = vmul.f32 %v978, %v994
    %v996 = vmul.f32 %v981, %v994
    %v997 = vmul.f32 %v984, %v994
    %v998 = vmul.f32 %v987, %v994
    %v999 = vmul.f32 %v990, %v994
    %v1000 = vmul.f32 %v993, %v994
    %v1001 = vsub.f32 %v970, %v995
    %v1002 = vsub.f32 %v971, %v996
    %v1003 = vsub.f32 %v972, %v997
    %v1004 = vsub.f32 %v973, %v998
    %v1005 = vsub.f32 %v974, %v999
    %v1006 = vsub.f32 %v975, %v1000
    %v1007 = vmul.f32 %v1001, %v1001
    %v1008 = vmul.f32 %v1002, %v1002
    %v1009 = vmul.f32 %v1003, %v1003
    %v1010 = vmul.f32 %v1004, %v1004
    %v1011 = vmul.f32 %v1005, %v1005
    %v1012 = vmul.f32 %v1006, %v1006
    %v1013 = vsel %vm192, %v1007, 0.0
    %1014 = vadd.xlane.f32.xlu0 %v1013
    %v1015 = vpop.xlane.xlu0 %1014
    %v1016 = vsel %vm192, %v1008, 0.0
    %1017 = vadd.xlane.f32.xlu0 %v1016
    %v1018 = vpop.xlane.xlu0 %1017
    %v1019 = vsel %vm192, %v1009, 0.0
    %1020 = vadd.xlane.f32.xlu0 %v1019
    %v1021 = vpop.xlane.xlu0 %1020
    %v1022 = vsel %vm192, %v1010, 0.0
    %1023 = vadd.xlane.f32.xlu0 %v1022
    %v1024 = vpop.xlane.xlu0 %1023
    %v1025 = vsel %vm192, %v1011, 0.0
    %1026 = vadd.xlane.f32.xlu0 %v1025
    %v1027 = vpop.xlane.xlu0 %1026
    %v1028 = vsel %vm192, %v1012, 0.0
    %1029 = vadd.xlane.f32.xlu0 %v1028
    %v1030 = vpop.xlane.xlu0 %1029
    %v1031 = vmul.f32 %v1015, %v994
    %v1032 = vmul.f32 %v1018, %v994
    %v1033 = vmul.f32 %v1021, %v994
    %v1034 = vmul.f32 %v1024, %v994
    %v1035 = vmul.f32 %v1027, %v994
    %v1036 = vmul.f32 %v1030, %v994
    %v1037 = vadd.f32 %v1031, 1e-05
    %v1038 = vadd.f32 %v1032, 1e-05
    %v1039 = vadd.f32 %v1033, 1e-05
    %v1040 = vadd.f32 %v1034, 1e-05
    %v1041 = vadd.f32 %v1035, 1e-05
    %v1042 = vadd.f32 %v1036, 1e-05
    %v1043 = vrsqrt.pop %v1037
    %v1044 = vrsqrt.pop %v1038
    %v1045 = vrsqrt.pop %v1039
    %v1046 = vrsqrt.pop %v1040
    %v1047 = vrsqrt.pop %v1041
    %v1048 = vrsqrt.pop %v1042
    %v1049 = vmul.f32 %v1001, %v1043
    %v1050 = vmul.f32 %v1002, %v1044
    %v1051 = vmul.f32 %v1003, %v1045
    %v1052 = vmul.f32 %v1004, %v1046
    %v1053 = vmul.f32 %v1005, %v1047
    %v1054 = vmul.f32 %v1006, %v1048
    %v1056 = vlaneseq
    %v1057 = vshrl.u32 %v1056, 7
    %v1058 = vsub.s32 0, %v1057
    %v1059 = vrot.slane %v231, %v1058
    %v1061 = vmul.f32 %v1049, %v1059
    %v1062 = vmul.f32 %v1050, %v1059
    %v1063 = vmul.f32 %v1051, %v1059
    %v1064 = vmul.f32 %v1052, %v1059
    %v1065 = vmul.f32 %v1053, %v1059
    %v1066 = vmul.f32 %v1054, %v1059
    %v1068 = vlaneseq
    %v1069 = vshrl.u32 %v1068, 7
    %v1070 = vsub.s32 0, %v1069
    %v1071 = vrot.slane %v232, %v1070
    %v1073 = vadd.f32 %v1061, %v1071
    %v1074 = vadd.f32 %v1062, %v1071
    %v1075 = vadd.f32 %v1063, %v1071
    %v1076 = vadd.f32 %v1064, %v1071
    %v1077 = vadd.f32 %v1065, %v1071
    %v1078 = vadd.f32 %v1066, %v1071
    %v1080 = vlaneseq
    %v1081 = vshrl.u32 %v1080, 7
    %v1082 = vsub.s32 0, %v1081
    %v1083 = vrot.slane %v237, %v1082
    %v1086 = vsel %vm192, %v1073, 0
    %v1089 = vsel %vm192, %v1074, 0
    %v1092 = vsel %vm192, %v1075, 0
    %v1095 = vsel %vm192, %v1076, 0
    %v1098 = vsel %vm192, %v1077, 0
    %v1101 = vsel %vm192, %v1078, 0
    %1103 = vmatprep.subr.mxu0 0.0
    %1104 = vmatpush1.msra.mxu0 0.0
    %1105 = vmatprep.subr.mxu0 0.0
    %1106 = vmatpush1.msra.mxu0 0.0
    %1107 = vmatprep.subr.mxu0 0.0
    %1108 = vmatpush1.msra.mxu0 0.0
    %1109 = vmatprep.subr.mxu0 0.0
    %1110 = vmatpush1.msra.mxu0 0.0
    %1111 = vmatprep.subr.mxu0 0.0
    %1112 = vmatpush1.msra.mxu0 0.0
    %1113 = vmatprep.subr.mxu0 0.0
    %1114 = vmatpush1.msra.mxu0 0.0
    %1115 = vmatprep.subr.mxu0 0.0
    %1116 = vmatpush1.msra.mxu0 0.0
    %1117 = vmatprep.subr.mxu0 0.0
    %1118 = vmatpush1.msra.mxu0 0.0
    %1119 = vmatprep.subr.mxu0 0.0
    %1120 = vmatpush1.msra.mxu0 0.0
    %1121 = vmatprep.subr.mxu0 0.0
    %1122 = vmatpush1.msra.mxu0 0.0
    %1123 = vmatprep.subr.mxu0 0.0
    %1124 = vmatpush1.msra.mxu0 0.0
    %1125 = vmatprep.subr.mxu0 0.0
    %1126 = vmatpush1.msra.mxu0 0.0
    %1127 = vmatprep.subr.mxu0 0.0
    %1128 = vmatpush1.msra.mxu0 %v236
    %1129 = vmatprep.subr.mxu0 0.0
    %1130 = vmatpush1.msra.mxu0 %v235
    %1131 = vmatprep.subr.mxu0 0.0
    %1132 = vmatpush1.msra.mxu0 %v234
    %1133 = vmatprep.subr.mxu0 0.0
    %1134 = vmatpush1.msra.mxu0 %v233
    %1135 = vmatprep.subr.mxu0 0.0
    %1136 = vmatpush2.msra.mxu0 0.0
    %1137 = vmatprep.subr.mxu0 0.0
    %1138 = vmatpush2.msra.mxu0 0.0
    %1139 = vmatprep.subr.mxu0 0.0
    %1140 = vmatpush2.msra.mxu0 0.0
    %1141 = vmatprep.subr.mxu0 0.0
    %1142 = vmatpush2.msra.mxu0 0.0
    %1143 = vmatprep.subr.mxu0 0.0
    %1144 = vmatpush2.msra.mxu0 0.0
    %1145 = vmatprep.subr.mxu0 0.0
    %1146 = vmatpush2.msra.mxu0 0.0
    %1147 = vmatprep.subr.mxu0 0.0
    %1148 = vmatpush2.msra.mxu0 0.0
    %1149 = vmatprep.subr.mxu0 0.0
    %1150 = vmatpush2.msra.mxu0 0.0
    %1151 = vmatprep.subr.mxu0 0.0
    %1152 = vmatpush2.msra.mxu0 0.0
    %1153 = vmatprep.subr.mxu0 0.0
    %1154 = vmatpush2.msra.mxu0 0.0
    %1155 = vmatprep.subr.mxu0 0.0
    %1156 = vmatpush2.msra.mxu0 0.0
    %1157 = vmatprep.subr.mxu0 0.0
    %1158 = vmatpush2.msra.mxu0 0.0
    %1159 = vmatprep.subr.mxu0 0.0
    %1160 = vmatpush2.msra.mxu0 0.0
    %1161 = vmatprep.subr.mxu0 0.0
    %1162 = vmatpush2.msra.mxu0 0.0
    %1163 = vmatprep.subr.mxu0 0.0
    %1164 = vmatpush2.msra.mxu0 0.0
    %1165 = vmatprep.subr.mxu0 0.0
    %1166 = vmatpush2.msra.mxu0 0.0
    %1167 = vmatprep.mubr.f32.mxu0 0.0
    %1168 = vmatmul.mubr.f32.gmra.mxu0 %v1086
    %v1169 = vpop.f32.mrf.mxu0
    %v1170 = vadd.f32 %v1083, %v1169
    %v1171 = vpop.f32.mrf.mxu0
    %1172 = vmatprep.mubr.f32.mxu0 0.0
    %1173 = vmatmul.mubr.f32.gmra.mxu0 %v1089
    %v1174 = vpop.f32.mrf.mxu0
    %v1175 = vadd.f32 %v1083, %v1174
    %v1176 = vpop.f32.mrf.mxu0
    %1177 = vmatprep.mubr.f32.mxu0 0.0
    %1178 = vmatmul.mubr.f32.gmra.mxu0 %v1092
    %v1179 = vpop.f32.mrf.mxu0
    %v1180 = vadd.f32 %v1083, %v1179
    %v1181 = vpop.f32.mrf.mxu0
    %1182 = vmatprep.mubr.f32.mxu0 0.0
    %1183 = vmatmul.mubr.f32.gmra.mxu0 %v1095
    %v1184 = vpop.f32.mrf.mxu0
    %v1185 = vadd.f32 %v1083, %v1184
    %v1186 = vpop.f32.mrf.mxu0
    %1187 = vmatprep.mubr.f32.mxu0 0.0
    %1188 = vmatmul.mubr.f32.gmra.mxu0 %v1098
    %v1189 = vpop.f32.mrf.mxu0
    %v1190 = vadd.f32 %v1083, %v1189
    %v1191 = vpop.f32.mrf.mxu0
    %1192 = vmatprep.mubr.f32.mxu0 0.0
    %1193 = vmatmul.mubr.f32.gmra.mxu0 %v1101
    %v1194 = vpop.f32.mrf.mxu0
    %v1195 = vadd.f32 %v1083, %v1194
    %v1196 = vpop.f32.mrf.mxu0
    %1197 = vdwg.mxu0
    %v1198 = vmul.f32 %v1170, 0.5
    %v1199 = vmul.f32 %v1175, 0.5
    %v1200 = vmul.f32 %v1180, 0.5
    %v1201 = vmul.f32 %v1185, 0.5
    %v1202 = vmul.f32 %v1190, 0.5
    %v1203 = vmul.f32 %v1195, 0.5
    %v1204 = vmul.f32 %v1170, 0.70710677
    %v1205 = vmul.f32 %v1175, 0.70710677
    %v1206 = vmul.f32 %v1180, 0.70710677
    %v1207 = vmul.f32 %v1185, 0.70710677
    %v1208 = vmul.f32 %v1190, 0.70710677
    %v1209 = vmul.f32 %v1195, 0.70710677
    %v1210 = verf.f32.pop %v1204
    %v1211 = verf.f32.pop %v1205
    %v1212 = verf.f32.pop %v1206
    %v1213 = verf.f32.pop %v1207
    %v1214 = verf.f32.pop %v1208
    %v1215 = verf.f32.pop %v1209
    %v1216 = vadd.f32 %v1210, 1.0
    %v1217 = vadd.f32 %v1211, 1.0
    %v1218 = vadd.f32 %v1212, 1.0
    %v1219 = vadd.f32 %v1213, 1.0
    %v1220 = vadd.f32 %v1214, 1.0
    %v1221 = vadd.f32 %v1215, 1.0
    %v1222 = vmul.f32 %v1198, %v1216
    %v1223 = vmul.f32 %v1199, %v1217
    %v1224 = vmul.f32 %v1200, %v1218
    %v1225 = vmul.f32 %v1201, %v1219
    %v1226 = vmul.f32 %v1202, %v1220
    %v1227 = vmul.f32 %v1203, %v1221
    %v1229 = vlaneseq
    %v1230 = vshrl.u32 %v1229, 7
    %v1231 = vsub.s32 0, %v1230
    %v1232 = vrot.slane %v246, %v1231
    %v1235 = vsel %vm91, %v1222, 0
    %v1238 = vsel %vm91, %v1223, 0
    %v1241 = vsel %vm91, %v1224, 0
    %v1244 = vsel %vm91, %v1225, 0
    %v1247 = vsel %vm91, %v1226, 0
    %v1250 = vsel %vm91, %v1227, 0
    %1252 = vmatprep.subr.mxu0 0.0
    %1253 = vmatpush1.msra.mxu0 0.0
    %1254 = vmatprep.subr.mxu0 0.0
    %1255 = vmatpush1.msra.mxu0 0.0
    %1256 = vmatprep.subr.mxu0 0.0
    %1257 = vmatpush1.msra.mxu0 0.0
    %1258 = vmatprep.subr.mxu0 0.0
    %1259 = vmatpush1.msra.mxu0 0.0
    %1260 = vmatprep.subr.mxu0 0.0
    %1261 = vmatpush1.msra.mxu0 0.0
    %1262 = vmatprep.subr.mxu0 0.0
    %1263 = vmatpush1.msra.mxu0 0.0
    %1264 = vmatprep.subr.mxu0 0.0
    %1265 = vmatpush1.msra.mxu0 0.0
    %1266 = vmatprep.subr.mxu0 0.0
    %1267 = vmatpush1.msra.mxu0 0.0
    %1268 = vmatprep.subr.mxu0 0.0
    %1269 = vmatpush1.msra.mxu0 %v245
    %1270 = vmatprep.subr.mxu0 0.0
    %1271 = vmatpush1.msra.mxu0 %v244
    %1272 = vmatprep.subr.mxu0 0.0
    %1273 = vmatpush1.msra.mxu0 %v243
    %1274 = vmatprep.subr.mxu0 0.0
    %1275 = vmatpush1.msra.mxu0 %v242
    %1276 = vmatprep.subr.mxu0 0.0
    %1277 = vmatpush1.msra.mxu0 %v241
    %1278 = vmatprep.subr.mxu0 0.0
    %1279 = vmatpush1.msra.mxu0 %v240
    %1280 = vmatprep.subr.mxu0 0.0
    %1281 = vmatpush1.msra.mxu0 %v239
    %1282 = vmatprep.subr.mxu0 0.0
    %1283 = vmatpush1.msra.mxu0 %v238
    %1284 = vmatprep.subr.mxu0 0.0
    %1285 = vmatpush2.msra.mxu0 0.0
    %1286 = vmatprep.subr.mxu0 0.0
    %1287 = vmatpush2.msra.mxu0 0.0
    %1288 = vmatprep.subr.mxu0 0.0
    %1289 = vmatpush2.msra.mxu0 0.0
    %1290 = vmatprep.subr.mxu0 0.0
    %1291 = vmatpush2.msra.mxu0 0.0
    %1292 = vmatprep.subr.mxu0 0.0
    %1293 = vmatpush2.msra.mxu0 0.0
    %1294 = vmatprep.subr.mxu0 0.0
    %1295 = vmatpush2.msra.mxu0 0.0
    %1296 = vmatprep.subr.mxu0 0.0
    %1297 = vmatpush2.msra.mxu0 0.0
    %1298 = vmatprep.subr.mxu0 0.0
    %1299 = vmatpush2.msra.mxu0 0.0
    %1300 = vmatprep.subr.mxu0 0.0
    %1301 = vmatpush2.msra.mxu0 0.0
    %1302 = vmatprep.subr.mxu0 0.0
    %1303 = vmatpush2.msra.mxu0 0.0
    %1304 = vmatprep.subr.mxu0 0.0
    %1305 = vmatpush2.msra.mxu0 0.0
    %1306 = vmatprep.subr.mxu0 0.0
    %1307 = vmatpush2.msra.mxu0 0.0
    %1308 = vmatprep.subr.mxu0 0.0
    %1309 = vmatpush2.msra.mxu0 0.0
    %1310 = vmatprep.subr.mxu0 0.0
    %1311 = vmatpush2.msra.mxu0 0.0
    %1312 = vmatprep.subr.mxu0 0.0
    %1313 = vmatpush2.msra.mxu0 0.0
    %1314 = vmatprep.subr.mxu0 0.0
    %1315 = vmatpush2.msra.mxu0 0.0
    %1316 = vmatprep.mubr.f32.mxu0 0.0
    %1317 = vmatmul.mubr.f32.gmra.mxu0 %v1235
    %v1318 = vpop.f32.mrf.mxu0
    %v1319 = vadd.f32 %v1232, %v1318
    %v1320 = vpop.f32.mrf.mxu0
    %1321 = vmatprep.mubr.f32.mxu0 0.0
    %1322 = vmatmul.mubr.f32.gmra.mxu0 %v1238
    %v1323 = vpop.f32.mrf.mxu0
    %v1324 = vadd.f32 %v1232, %v1323
    %v1325 = vpop.f32.mrf.mxu0
    %1326 = vmatprep.mubr.f32.mxu0 0.0
    %1327 = vmatmul.mubr.f32.gmra.mxu0 %v1241
    %v1328 = vpop.f32.mrf.mxu0
    %v1329 = vadd.f32 %v1232, %v1328
    %v1330 = vpop.f32.mrf.mxu0
    %1331 = vmatprep.mubr.f32.mxu0 0.0
    %1332 = vmatmul.mubr.f32.gmra.mxu0 %v1244
    %v1333 = vpop.f32.mrf.mxu0
    %v1334 = vadd.f32 %v1232, %v1333
    %v1335 = vpop.f32.mrf.mxu0
    %1336 = vmatprep.mubr.f32.mxu0 0.0
    %1337 = vmatmul.mubr.f32.gmra.mxu0 %v1247
    %v1338 = vpop.f32.mrf.mxu0
    %v1339 = vadd.f32 %v1232, %v1338
    %v1340 = vpop.f32.mrf.mxu0
    %1341 = vmatprep.mubr.f32.mxu0 0.0
    %1342 = vmatmul.mubr.f32.gmra.mxu0 %v1250
    %v1343 = vpop.f32.mrf.mxu0
    %v1344 = vadd.f32 %v1232, %v1343
    %v1345 = vpop.f32.mrf.mxu0
    %1346 = vdwg.mxu0
    %v1347 = vadd.f32 %v1073, %v1319
    %v1348 = vadd.f32 %v1074, %v1324
    %v1349 = vadd.f32 %v1075, %v1329
    %v1350 = vadd.f32 %v1076, %v1334
    %v1351 = vadd.f32 %v1077, %v1339
    %v1352 = vadd.f32 %v1078, %v1344
    %v1353 = vsel %vm192, %v1347, 0.0
    %1354 = vadd.xlane.f32.xlu0 %v1353
    %v1355 = vpop.xlane.xlu0 %1354
    %v1356 = vsel %vm192, %v1348, 0.0
    %1357 = vadd.xlane.f32.xlu0 %v1356
    %v1358 = vpop.xlane.xlu0 %1357
    %v1359 = vsel %vm192, %v1349, 0.0
    %1360 = vadd.xlane.f32.xlu0 %v1359
    %v1361 = vpop.xlane.xlu0 %1360
    %v1362 = vsel %vm192, %v1350, 0.0
    %1363 = vadd.xlane.f32.xlu0 %v1362
    %v1364 = vpop.xlane.xlu0 %1363
    %v1365 = vsel %vm192, %v1351, 0.0
    %1366 = vadd.xlane.f32.xlu0 %v1365
    %v1367 = vpop.xlane.xlu0 %1366
    %v1368 = vsel %vm192, %v1352, 0.0
    %1369 = vadd.xlane.f32.xlu0 %v1368
    %v1370 = vpop.xlane.xlu0 %1369
    %v1371 = vmul.f32 %v1355, %v994
    %v1372 = vmul.f32 %v1358, %v994
    %v1373 = vmul.f32 %v1361, %v994
    %v1374 = vmul.f32 %v1364, %v994
    %v1375 = vmul.f32 %v1367, %v994
    %v1376 = vmul.f32 %v1370, %v994
    %v1377 = vsub.f32 %v1347, %v1371
    %v1378 = vsub.f32 %v1348, %v1372
    %v1379 = vsub.f32 %v1349, %v1373
    %v1380 = vsub.f32 %v1350, %v1374
    %v1381 = vsub.f32 %v1351, %v1375
    %v1382 = vsub.f32 %v1352, %v1376
    %v1383 = vmul.f32 %v1377, %v1377
    %v1384 = vmul.f32 %v1378, %v1378
    %v1385 = vmul.f32 %v1379, %v1379
    %v1386 = vmul.f32 %v1380, %v1380
    %v1387 = vmul.f32 %v1381, %v1381
    %v1388 = vmul.f32 %v1382, %v1382
    %v1389 = vsel %vm192, %v1383, 0.0
    %1390 = vadd.xlane.f32.xlu0 %v1389
    %v1391 = vpop.xlane.xlu0 %1390
    %v1392 = vsel %vm192, %v1384, 0.0
    %1393 = vadd.xlane.f32.xlu0 %v1392
    %v1394 = vpop.xlane.xlu0 %1393
    %v1395 = vsel %vm192, %v1385, 0.0
    %1396 = vadd.xlane.f32.xlu0 %v1395
    %v1397 = vpop.xlane.xlu0 %1396
    %v1398 = vsel %vm192, %v1386, 0.0
    %1399 = vadd.xlane.f32.xlu0 %v1398
    %v1400 = vpop.xlane.xlu0 %1399
    %v1401 = vsel %vm192, %v1387, 0.0
    %1402 = vadd.xlane.f32.xlu0 %v1401
    %v1403 = vpop.xlane.xlu0 %1402
    %v1404 = vsel %vm192, %v1388, 0.0
    %1405 = vadd.xlane.f32.xlu0 %v1404
    %v1406 = vpop.xlane.xlu0 %1405
    %v1407 = vmul.f32 %v1391, %v994
    %v1408 = vmul.f32 %v1394, %v994
    %v1409 = vmul.f32 %v1397, %v994
    %v1410 = vmul.f32 %v1400, %v994
    %v1411 = vmul.f32 %v1403, %v994
    %v1412 = vmul.f32 %v1406, %v994
    %v1413 = vadd.f32 %v1407, 1e-05
    %v1414 = vadd.f32 %v1408, 1e-05
    %v1415 = vadd.f32 %v1409, 1e-05
    %v1416 = vadd.f32 %v1410, 1e-05
    %v1417 = vadd.f32 %v1411, 1e-05
    %v1418 = vadd.f32 %v1412, 1e-05
    %v1419 = vrsqrt.pop %v1413
    %v1420 = vrsqrt.pop %v1414
    %v1421 = vrsqrt.pop %v1415
    %v1422 = vrsqrt.pop %v1416
    %v1423 = vrsqrt.pop %v1417
    %v1424 = vrsqrt.pop %v1418
    %v1425 = vmul.f32 %v1377, %v1419
    %v1426 = vmul.f32 %v1378, %v1420
    %v1427 = vmul.f32 %v1379, %v1421
    %v1428 = vmul.f32 %v1380, %v1422
    %v1429 = vmul.f32 %v1381, %v1423
    %v1430 = vmul.f32 %v1382, %v1424
    %v1432 = vlaneseq
    %v1433 = vshrl.u32 %v1432, 7
    %v1434 = vsub.s32 0, %v1433
    %v1435 = vrot.slane %v247, %v1434
    %v1437 = vmul.f32 %v1425, %v1435
    %v1438 = vmul.f32 %v1426, %v1435
    %v1439 = vmul.f32 %v1427, %v1435
    %v1440 = vmul.f32 %v1428, %v1435
    %v1441 = vmul.f32 %v1429, %v1435
    %v1442 = vmul.f32 %v1430, %v1435
    %v1444 = vlaneseq
    %v1445 = vshrl.u32 %v1444, 7
    %v1446 = vsub.s32 0, %v1445
    %v1447 = vrot.slane %v248, %v1446
    %v1449 = vadd.f32 %v1437, %v1447
    %v1450 = vadd.f32 %v1438, %v1447
    %v1451 = vadd.f32 %v1439, %v1447
    %v1452 = vadd.f32 %v1440, %v1447
    %v1453 = vadd.f32 %v1441, %v1447
    %v1454 = vadd.f32 %v1442, %v1447
    %s1455 = scalar_lea.vmem %s8, 32
    %v1456 = vld [vmem:[%s1455] sm:$0xff]
    %v1457 = vld [vmem:[%s1455 + $0x8] sm:$0xff]
    %v1458 = vld [vmem:[%s1455 + $0x10] sm:$0xff]
    %v1459 = vld [vmem:[%s1455 + $0x18] sm:$0xff]
    %s1460 = scalar_lea.vmem %s9, 1
    %v1461 = vld [vmem:[%s1460] sm:$0x1]
    %s1462 = scalar_lea.vmem %s10, 32
    %v1463 = vld [vmem:[%s1462] sm:$0xff]
    %v1464 = vld [vmem:[%s1462 + $0x8] sm:$0xff]
    %v1465 = vld [vmem:[%s1462 + $0x10] sm:$0xff]
    %v1466 = vld [vmem:[%s1462 + $0x18] sm:$0xff]
    %s1467 = scalar_lea.vmem %s11, 1
    %v1468 = vld [vmem:[%s1467] sm:$0x1]
    %s1469 = scalar_lea.vmem %s12, 1
    %v1470 = vld [vmem:[%s1469] sm:$0x1]
    %s1471 = scalar_lea.vmem %s13, 1
    %v1472 = vld [vmem:[%s1471] sm:$0x1]
    %s1473 = scalar_lea.vmem %s14, 32
    %v1474 = vld [vmem:[%s1473] sm:$0xff]
    %v1475 = vld [vmem:[%s1473 + $0x8] sm:$0xff]
    %v1476 = vld [vmem:[%s1473 + $0x10] sm:$0xff]
    %v1477 = vld [vmem:[%s1473 + $0x18] sm:$0xff]
    %s1478 = scalar_lea.vmem %s15, 1
    %v1479 = vld [vmem:[%s1478] sm:$0x1]
    %s1480 = scalar_lea.vmem %s16, 64
    %v1481 = vld [vmem:[%s1480] sm:$0xff]
    %v1482 = vld [vmem:[%s1480 + $0x8] sm:$0xff]
    %v1483 = vld [vmem:[%s1480 + $0x10] sm:$0xff]
    %v1484 = vld [vmem:[%s1480 + $0x18] sm:$0xff]
    %v1485 = vld [vmem:[%s1480 + $0x20] sm:$0xff]
    %v1486 = vld [vmem:[%s1480 + $0x28] sm:$0xff]
    %v1487 = vld [vmem:[%s1480 + $0x30] sm:$0xff]
    %v1488 = vld [vmem:[%s1480 + $0x38] sm:$0xff]
    %s1489 = scalar_lea.vmem %s17, 1
    %v1490 = vld [vmem:[%s1489] sm:$0x1]
    %s1491 = scalar_lea.vmem %s18, 1
    %v1492 = vld [vmem:[%s1491] sm:$0x1]
    %s1493 = scalar_lea.vmem %s19, 1
    %v1494 = vld [vmem:[%s1493] sm:$0x1]
    %v1496 = vlaneseq
    %v1497 = vshrl.u32 %v1496, 7
    %v1498 = vsub.s32 0, %v1497
    %v1499 = vrot.slane %v1461, %v1498
    %v1502 = vsel %vm192, %v1449, 0
    %v1505 = vsel %vm192, %v1450, 0
    %v1508 = vsel %vm192, %v1451, 0
    %v1511 = vsel %vm192, %v1452, 0
    %v1514 = vsel %vm192, %v1453, 0
    %v1517 = vsel %vm192, %v1454, 0
    %1519 = vmatprep.subr.mxu0 0.0
    %1520 = vmatpush1.msra.mxu0 0.0
    %1521 = vmatprep.subr.mxu0 0.0
    %1522 = vmatpush1.msra.mxu0 0.0
    %1523 = vmatprep.subr.mxu0 0.0
    %1524 = vmatpush1.msra.mxu0 0.0
    %1525 = vmatprep.subr.mxu0 0.0
    %1526 = vmatpush1.msra.mxu0 0.0
    %1527 = vmatprep.subr.mxu0 0.0
    %1528 = vmatpush1.msra.mxu0 0.0
    %1529 = vmatprep.subr.mxu0 0.0
    %1530 = vmatpush1.msra.mxu0 0.0
    %1531 = vmatprep.subr.mxu0 0.0
    %1532 = vmatpush1.msra.mxu0 0.0
    %1533 = vmatprep.subr.mxu0 0.0
    %1534 = vmatpush1.msra.mxu0 0.0
    %1535 = vmatprep.subr.mxu0 0.0
    %1536 = vmatpush1.msra.mxu0 0.0
    %1537 = vmatprep.subr.mxu0 0.0
    %1538 = vmatpush1.msra.mxu0 0.0
    %1539 = vmatprep.subr.mxu0 0.0
    %1540 = vmatpush1.msra.mxu0 0.0
    %1541 = vmatprep.subr.mxu0 0.0
    %1542 = vmatpush1.msra.mxu0 0.0
    %1543 = vmatprep.subr.mxu0 0.0
    %1544 = vmatpush1.msra.mxu0 %v1459
    %1545 = vmatprep.subr.mxu0 0.0
    %1546 = vmatpush1.msra.mxu0 %v1458
    %1547 = vmatprep.subr.mxu0 0.0
    %1548 = vmatpush1.msra.mxu0 %v1457
    %1549 = vmatprep.subr.mxu0 0.0
    %1550 = vmatpush1.msra.mxu0 %v1456
    %1551 = vmatprep.subr.mxu0 0.0
    %1552 = vmatpush2.msra.mxu0 0.0
    %1553 = vmatprep.subr.mxu0 0.0
    %1554 = vmatpush2.msra.mxu0 0.0
    %1555 = vmatprep.subr.mxu0 0.0
    %1556 = vmatpush2.msra.mxu0 0.0
    %1557 = vmatprep.subr.mxu0 0.0
    %1558 = vmatpush2.msra.mxu0 0.0
    %1559 = vmatprep.subr.mxu0 0.0
    %1560 = vmatpush2.msra.mxu0 0.0
    %1561 = vmatprep.subr.mxu0 0.0
    %1562 = vmatpush2.msra.mxu0 0.0
    %1563 = vmatprep.subr.mxu0 0.0
    %1564 = vmatpush2.msra.mxu0 0.0
    %1565 = vmatprep.subr.mxu0 0.0
    %1566 = vmatpush2.msra.mxu0 0.0
    %1567 = vmatprep.subr.mxu0 0.0
    %1568 = vmatpush2.msra.mxu0 0.0
    %1569 = vmatprep.subr.mxu0 0.0
    %1570 = vmatpush2.msra.mxu0 0.0
    %1571 = vmatprep.subr.mxu0 0.0
    %1572 = vmatpush2.msra.mxu0 0.0
    %1573 = vmatprep.subr.mxu0 0.0
    %1574 = vmatpush2.msra.mxu0 0.0
    %1575 = vmatprep.subr.mxu0 0.0
    %1576 = vmatpush2.msra.mxu0 0.0
    %1577 = vmatprep.subr.mxu0 0.0
    %1578 = vmatpush2.msra.mxu0 0.0
    %1579 = vmatprep.subr.mxu0 0.0
    %1580 = vmatpush2.msra.mxu0 0.0
    %1581 = vmatprep.subr.mxu0 0.0
    %1582 = vmatpush2.msra.mxu0 0.0
    %1583 = vmatprep.mubr.f32.mxu0 0.0
    %1584 = vmatmul.mubr.f32.gmra.mxu0 %v1502
    %v1585 = vpop.f32.mrf.mxu0
    %v1586 = vadd.f32 %v1499, %v1585
    %v1587 = vpop.f32.mrf.mxu0
    %1588 = vmatprep.mubr.f32.mxu0 0.0
    %1589 = vmatmul.mubr.f32.gmra.mxu0 %v1505
    %v1590 = vpop.f32.mrf.mxu0
    %v1591 = vadd.f32 %v1499, %v1590
    %v1592 = vpop.f32.mrf.mxu0
    %1593 = vmatprep.mubr.f32.mxu0 0.0
    %1594 = vmatmul.mubr.f32.gmra.mxu0 %v1508
    %v1595 = vpop.f32.mrf.mxu0
    %v1596 = vadd.f32 %v1499, %v1595
    %v1597 = vpop.f32.mrf.mxu0
    %1598 = vmatprep.mubr.f32.mxu0 0.0
    %1599 = vmatmul.mubr.f32.gmra.mxu0 %v1511
    %v1600 = vpop.f32.mrf.mxu0
    %v1601 = vadd.f32 %v1499, %v1600
    %v1602 = vpop.f32.mrf.mxu0
    %1603 = vmatprep.mubr.f32.mxu0 0.0
    %1604 = vmatmul.mubr.f32.gmra.mxu0 %v1514
    %v1605 = vpop.f32.mrf.mxu0
    %v1606 = vadd.f32 %v1499, %v1605
    %v1607 = vpop.f32.mrf.mxu0
    %1608 = vmatprep.mubr.f32.mxu0 0.0
    %1609 = vmatmul.mubr.f32.gmra.mxu0 %v1517
    %v1610 = vpop.f32.mrf.mxu0
    %v1611 = vadd.f32 %v1499, %v1610
    %v1612 = vpop.f32.mrf.mxu0
    %1613 = vdwg.mxu0
    %1620 = vrot.lane.b32.xlu0 %v1586, 96
    %v1621 = vpop.permute.xlu0 %1620
    %1622 = vrot.lane.b32.xlu0 %v1591, 96
    %v1623 = vpop.permute.xlu0 %1622
    %1624 = vrot.lane.b32.xlu0 %v1596, 96
    %v1625 = vpop.permute.xlu0 %1624
    %1626 = vrot.lane.b32.xlu0 %v1601, 96
    %v1627 = vpop.permute.xlu0 %1626
    %1628 = vrot.lane.b32.xlu0 %v1606, 96
    %v1629 = vpop.permute.xlu0 %1628
    %1630 = vrot.lane.b32.xlu0 %v1611, 96
    %v1631 = vpop.permute.xlu0 %1630
    %v1638 = vmul.f32 %v1586, %v1621
    %v1639 = vmul.f32 %v1591, %v1623
    %v1640 = vmul.f32 %v1596, %v1625
    %v1641 = vmul.f32 %v1601, %v1621
    %v1642 = vmul.f32 %v1606, %v1623
    %v1643 = vmul.f32 %v1611, %v1625
    %v1644 = vmul.f32 %v1586, %v1627
    %v1645 = vmul.f32 %v1591, %v1629
    %v1646 = vmul.f32 %v1596, %v1631
    %v1647 = vmul.f32 %v1601, %v1627
    %v1648 = vmul.f32 %v1606, %v1629
    %v1649 = vmul.f32 %v1611, %v1631
    %v1651 = vsel %vm192, %v1638, 0
    %v1654 = vsel %vm192, %v1639, 0
    %v1657 = vsel %vm192, %v1640, 0
    %v1660 = vsel %vm192, %v1641, 0
    %v1663 = vsel %vm192, %v1642, 0
    %v1666 = vsel %vm192, %v1643, 0
    %v1669 = vsel %vm192, %v1644, 0
    %v1672 = vsel %vm192, %v1645, 0
    %v1675 = vsel %vm192, %v1646, 0
    %v1678 = vsel %vm192, %v1647, 0
    %v1681 = vsel %vm192, %v1648, 0
    %v1684 = vsel %vm192, %v1649, 0
    %1686 = vmatprep.subr.mxu0 0.0
    %1687 = vmatpush1.msra.mxu0 0.0
    %1688 = vmatprep.subr.mxu0 0.0
    %1689 = vmatpush1.msra.mxu0 0.0
    %1690 = vmatprep.subr.mxu0 0.0
    %1691 = vmatpush1.msra.mxu0 0.0
    %1692 = vmatprep.subr.mxu0 0.0
    %1693 = vmatpush1.msra.mxu0 0.0
    %1694 = vmatprep.subr.mxu0 0.0
    %1695 = vmatpush1.msra.mxu0 0.0
    %1696 = vmatprep.subr.mxu0 0.0
    %1697 = vmatpush1.msra.mxu0 0.0
    %1698 = vmatprep.subr.mxu0 0.0
    %1699 = vmatpush1.msra.mxu0 0.0
    %1700 = vmatprep.subr.mxu0 0.0
    %1701 = vmatpush1.msra.mxu0 0.0
    %1702 = vmatprep.subr.mxu0 0.0
    %1703 = vmatpush1.msra.mxu0 0.0
    %1704 = vmatprep.subr.mxu0 0.0
    %1705 = vmatpush1.msra.mxu0 0.0
    %1706 = vmatprep.subr.mxu0 0.0
    %1707 = vmatpush1.msra.mxu0 0.0
    %1708 = vmatprep.subr.mxu0 0.0
    %1709 = vmatpush1.msra.mxu0 0.0
    %1710 = vmatprep.subr.mxu0 0.0
    %1711 = vmatpush1.msra.mxu0 %v219
    %1712 = vmatprep.subr.mxu0 0.0
    %1713 = vmatpush1.msra.mxu0 %v218
    %1714 = vmatprep.subr.mxu0 0.0
    %1715 = vmatpush1.msra.mxu0 %v217
    %1716 = vmatprep.subr.mxu0 0.0
    %1717 = vmatpush1.msra.mxu0 %v216
    %1718 = vmatprep.subr.mxu0 0.0
    %1719 = vmatpush2.msra.mxu0 0.0
    %1720 = vmatprep.subr.mxu0 0.0
    %1721 = vmatpush2.msra.mxu0 0.0
    %1722 = vmatprep.subr.mxu0 0.0
    %1723 = vmatpush2.msra.mxu0 0.0
    %1724 = vmatprep.subr.mxu0 0.0
    %1725 = vmatpush2.msra.mxu0 0.0
    %1726 = vmatprep.subr.mxu0 0.0
    %1727 = vmatpush2.msra.mxu0 0.0
    %1728 = vmatprep.subr.mxu0 0.0
    %1729 = vmatpush2.msra.mxu0 0.0
    %1730 = vmatprep.subr.mxu0 0.0
    %1731 = vmatpush2.msra.mxu0 0.0
    %1732 = vmatprep.subr.mxu0 0.0
    %1733 = vmatpush2.msra.mxu0 0.0
    %1734 = vmatprep.subr.mxu0 0.0
    %1735 = vmatpush2.msra.mxu0 0.0
    %1736 = vmatprep.subr.mxu0 0.0
    %1737 = vmatpush2.msra.mxu0 0.0
    %1738 = vmatprep.subr.mxu0 0.0
    %1739 = vmatpush2.msra.mxu0 0.0
    %1740 = vmatprep.subr.mxu0 0.0
    %1741 = vmatpush2.msra.mxu0 0.0
    %1742 = vmatprep.subr.mxu0 0.0
    %1743 = vmatpush2.msra.mxu0 0.0
    %1744 = vmatprep.subr.mxu0 0.0
    %1745 = vmatpush2.msra.mxu0 0.0
    %1746 = vmatprep.subr.mxu0 0.0
    %1747 = vmatpush2.msra.mxu0 0.0
    %1748 = vmatprep.subr.mxu0 0.0
    %1749 = vmatpush2.msra.mxu0 0.0
    %1750 = vmatprep.mubr.f32.mxu0 0.0
    %1751 = vmatmul.mubr.f32.gmra.mxu0 %v1651
    %v1752 = vpop.f32.mrf.mxu0
    %v1753 = vadd.f32 0.0, %v1752
    %v1754 = vpop.f32.mrf.mxu0
    %1755 = vmatprep.mubr.f32.mxu0 0.0
    %1756 = vmatmul.mubr.f32.gmra.mxu0 %v1654
    %v1757 = vpop.f32.mrf.mxu0
    %v1758 = vadd.f32 0.0, %v1757
    %v1759 = vpop.f32.mrf.mxu0
    %1760 = vmatprep.mubr.f32.mxu0 0.0
    %1761 = vmatmul.mubr.f32.gmra.mxu0 %v1657
    %v1762 = vpop.f32.mrf.mxu0
    %v1763 = vadd.f32 0.0, %v1762
    %v1764 = vpop.f32.mrf.mxu0
    %1765 = vmatprep.mubr.f32.mxu0 0.0
    %1766 = vmatmul.mubr.f32.gmra.mxu0 %v1660
    %v1767 = vpop.f32.mrf.mxu0
    %v1768 = vadd.f32 0.0, %v1767
    %v1769 = vpop.f32.mrf.mxu0
    %1770 = vmatprep.mubr.f32.mxu0 0.0
    %1771 = vmatmul.mubr.f32.gmra.mxu0 %v1663
    %v1772 = vpop.f32.mrf.mxu0
    %v1773 = vadd.f32 0.0, %v1772
    %v1774 = vpop.f32.mrf.mxu0
    %1775 = vmatprep.mubr.f32.mxu0 0.0
    %1776 = vmatmul.mubr.f32.gmra.mxu0 %v1666
    %v1777 = vpop.f32.mrf.mxu0
    %v1778 = vadd.f32 0.0, %v1777
    %v1779 = vpop.f32.mrf.mxu0
    %1780 = vmatprep.mubr.f32.mxu0 0.0
    %1781 = vmatmul.mubr.f32.gmra.mxu0 %v1669
    %v1782 = vpop.f32.mrf.mxu0
    %v1783 = vadd.f32 0.0, %v1782
    %v1784 = vpop.f32.mrf.mxu0
    %1785 = vmatprep.mubr.f32.mxu0 0.0
    %1786 = vmatmul.mubr.f32.gmra.mxu0 %v1672
    %v1787 = vpop.f32.mrf.mxu0
    %v1788 = vadd.f32 0.0, %v1787
    %v1789 = vpop.f32.mrf.mxu0
    %1790 = vmatprep.mubr.f32.mxu0 0.0
    %1791 = vmatmul.mubr.f32.gmra.mxu0 %v1675
    %v1792 = vpop.f32.mrf.mxu0
    %v1793 = vadd.f32 0.0, %v1792
    %v1794 = vpop.f32.mrf.mxu0
    %1795 = vmatprep.mubr.f32.mxu0 0.0
    %1796 = vmatmul.mubr.f32.gmra.mxu0 %v1678
    %v1797 = vpop.f32.mrf.mxu0
    %v1798 = vadd.f32 0.0, %v1797
    %v1799 = vpop.f32.mrf.mxu0
    %1800 = vmatprep.mubr.f32.mxu0 0.0
    %1801 = vmatmul.mubr.f32.gmra.mxu0 %v1681
    %v1802 = vpop.f32.mrf.mxu0
    %v1803 = vadd.f32 0.0, %v1802
    %v1804 = vpop.f32.mrf.mxu0
    %1805 = vmatprep.mubr.f32.mxu0 0.0
    %1806 = vmatmul.mubr.f32.gmra.mxu0 %v1684
    %v1807 = vpop.f32.mrf.mxu0
    %v1808 = vadd.f32 0.0, %v1807
    %v1809 = vpop.f32.mrf.mxu0
    %1810 = vdwg.mxu0
    %v1811 = vmul.f32 %v1753, 0.35355338
    %v1812 = vmul.f32 %v1758, 0.35355338
    %v1813 = vmul.f32 %v1763, 0.35355338
    %v1814 = vmul.f32 %v1768, 0.35355338
    %v1815 = vmul.f32 %v1773, 0.35355338
    %v1816 = vmul.f32 %v1778, 0.35355338
    %v1817 = vmul.f32 %v1783, 0.35355338
    %v1818 = vmul.f32 %v1788, 0.35355338
    %v1819 = vmul.f32 %v1793, 0.35355338
    %v1820 = vmul.f32 %v1798, 0.35355338
    %v1821 = vmul.f32 %v1803, 0.35355338
    %v1822 = vmul.f32 %v1808, 0.35355338
    %v1823 = vmax.f32 %v1811, %v1817
    %v1824 = vmax.f32 %v1812, %v1818
    %v1825 = vmax.f32 %v1813, %v1819
    %v1826 = vmax.f32 %v1814, %v1820
    %v1827 = vmax.f32 %v1815, %v1821
    %v1828 = vmax.f32 %v1816, %v1822
    %v1829 = vsub.f32 %v1811, %v1823
    %v1830 = vsub.f32 %v1812, %v1824
    %v1831 = vsub.f32 %v1813, %v1825
    %v1832 = vsub.f32 %v1814, %v1826
    %v1833 = vsub.f32 %v1815, %v1827
    %v1834 = vsub.f32 %v1816, %v1828
    %v1835 = vmul.f32 %v1829, 1.442695
    %v1836 = vpow.pop %v1835
    %v1837 = vmul.f32 %v1830, 1.442695
    %v1838 = vpow.pop %v1837
    %v1839 = vmul.f32 %v1831, 1.442695
    %v1840 = vpow.pop %v1839
    %v1841 = vmul.f32 %v1832, 1.442695
    %v1842 = vpow.pop %v1841
    %v1843 = vmul.f32 %v1833, 1.442695
    %v1844 = vpow.pop %v1843
    %v1845 = vmul.f32 %v1834, 1.442695
    %v1846 = vpow.pop %v1845
    %v1847 = vsub.f32 %v1817, %v1823
    %v1848 = vsub.f32 %v1818, %v1824
    %v1849 = vsub.f32 %v1819, %v1825
    %v1850 = vsub.f32 %v1820, %v1826
    %v1851 = vsub.f32 %v1821, %v1827
    %v1852 = vsub.f32 %v1822, %v1828
    %v1853 = vmul.f32 %v1847, 1.442695
    %v1854 = vpow.pop %v1853
    %v1855 = vmul.f32 %v1848, 1.442695
    %v1856 = vpow.pop %v1855
    %v1857 = vmul.f32 %v1849, 1.442695
    %v1858 = vpow.pop %v1857
    %v1859 = vmul.f32 %v1850, 1.442695
    %v1860 = vpow.pop %v1859
    %v1861 = vmul.f32 %v1851, 1.442695
    %v1862 = vpow.pop %v1861
    %v1863 = vmul.f32 %v1852, 1.442695
    %v1864 = vpow.pop %v1863
    %v1865 = vadd.f32 %v1836, %v1854
    %v1866 = vadd.f32 %v1838, %v1856
    %v1867 = vadd.f32 %v1840, %v1858
    %v1868 = vadd.f32 %v1842, %v1860
    %v1869 = vadd.f32 %v1844, %v1862
    %v1870 = vadd.f32 %v1846, %v1864
    %v1871 = vrcp.pop %v1865
    %v1872 = vmul.f32 1.0, %v1871
    %v1873 = vrcp.pop %v1866
    %v1874 = vmul.f32 1.0, %v1873
    %v1875 = vrcp.pop %v1867
    %v1876 = vmul.f32 1.0, %v1875
    %v1877 = vrcp.pop %v1868
    %v1878 = vmul.f32 1.0, %v1877
    %v1879 = vrcp.pop %v1869
    %v1880 = vmul.f32 1.0, %v1879
    %v1881 = vrcp.pop %v1870
    %v1882 = vmul.f32 1.0, %v1881
    %v1883 = vmul.f32 %v1836, %v1872
    %v1884 = vmul.f32 %v1838, %v1874
    %v1885 = vmul.f32 %v1840, %v1876
    %v1886 = vmul.f32 %v1842, %v1878
    %v1887 = vmul.f32 %v1844, %v1880
    %v1888 = vmul.f32 %v1846, %v1882
    %v1889 = vmul.f32 %v1854, %v1872
    %v1890 = vmul.f32 %v1856, %v1874
    %v1891 = vmul.f32 %v1858, %v1876
    %v1892 = vmul.f32 %v1860, %v1878
    %v1893 = vmul.f32 %v1862, %v1880
    %v1894 = vmul.f32 %v1864, %v1882
    %v1896 = vsel %vm649, %v1883, 0
    %v1899 = vsel %vm649, %v1884, 0
    %v1902 = vsel %vm649, %v1885, 0
    %v1905 = vsel %vm649, %v1886, 0
    %v1908 = vsel %vm649, %v1887, 0
    %v1911 = vsel %vm649, %v1888, 0
    %v1914 = vsel %vm649, %v1889, 0
    %v1917 = vsel %vm649, %v1890, 0
    %v1920 = vsel %vm649, %v1891, 0
    %v1923 = vsel %vm649, %v1892, 0
    %v1926 = vsel %vm649, %v1893, 0
    %v1929 = vsel %vm649, %v1894, 0
    %1931 = vmatprep.subr.mxu0 0.0
    %1932 = vmatpush1.msra.mxu0 0.0
    %1933 = vmatprep.subr.mxu0 0.0
    %1934 = vmatpush1.msra.mxu0 0.0
    %1935 = vmatprep.subr.mxu0 0.0
    %1936 = vmatpush1.msra.mxu0 0.0
    %1937 = vmatprep.subr.mxu0 0.0
    %1938 = vmatpush1.msra.mxu0 0.0
    %1939 = vmatprep.subr.mxu0 0.0
    %1940 = vmatpush1.msra.mxu0 0.0
    %1941 = vmatprep.subr.mxu0 0.0
    %1942 = vmatpush1.msra.mxu0 0.0
    %1943 = vmatprep.subr.mxu0 0.0
    %1944 = vmatpush1.msra.mxu0 0.0
    %1945 = vmatprep.subr.mxu0 0.0
    %1946 = vmatpush1.msra.mxu0 0.0
    %1947 = vmatprep.subr.mxu0 0.0
    %1948 = vmatpush1.msra.mxu0 0.0
    %1949 = vmatprep.subr.mxu0 0.0
    %1950 = vmatpush1.msra.mxu0 0.0
    %1951 = vmatprep.subr.mxu0 0.0
    %1952 = vmatpush1.msra.mxu0 0.0
    %1953 = vmatprep.subr.mxu0 0.0
    %1954 = vmatpush1.msra.mxu0 0.0
    %1955 = vmatprep.subr.mxu0 0.0
    %1956 = vmatpush1.msra.mxu0 0.0
    %1957 = vmatprep.subr.mxu0 0.0
    %1958 = vmatpush1.msra.mxu0 0.0
    %1959 = vmatprep.subr.mxu0 0.0
    %1960 = vmatpush1.msra.mxu0 0.0
    %1961 = vmatprep.subr.mxu0 0.0
    %1962 = vmatpush1.msra.mxu0 %v688
    %1963 = vmatprep.subr.mxu0 0.0
    %1964 = vmatpush2.msra.mxu0 0.0
    %1965 = vmatprep.subr.mxu0 0.0
    %1966 = vmatpush2.msra.mxu0 0.0
    %1967 = vmatprep.subr.mxu0 0.0
    %1968 = vmatpush2.msra.mxu0 0.0
    %1969 = vmatprep.subr.mxu0 0.0
    %1970 = vmatpush2.msra.mxu0 0.0
    %1971 = vmatprep.subr.mxu0 0.0
    %1972 = vmatpush2.msra.mxu0 0.0
    %1973 = vmatprep.subr.mxu0 0.0
    %1974 = vmatpush2.msra.mxu0 0.0
    %1975 = vmatprep.subr.mxu0 0.0
    %1976 = vmatpush2.msra.mxu0 0.0
    %1977 = vmatprep.subr.mxu0 0.0
    %1978 = vmatpush2.msra.mxu0 0.0
    %1979 = vmatprep.subr.mxu0 0.0
    %1980 = vmatpush2.msra.mxu0 0.0
    %1981 = vmatprep.subr.mxu0 0.0
    %1982 = vmatpush2.msra.mxu0 0.0
    %1983 = vmatprep.subr.mxu0 0.0
    %1984 = vmatpush2.msra.mxu0 0.0
    %1985 = vmatprep.subr.mxu0 0.0
    %1986 = vmatpush2.msra.mxu0 0.0
    %1987 = vmatprep.subr.mxu0 0.0
    %1988 = vmatpush2.msra.mxu0 0.0
    %1989 = vmatprep.subr.mxu0 0.0
    %1990 = vmatpush2.msra.mxu0 0.0
    %1991 = vmatprep.subr.mxu0 0.0
    %1992 = vmatpush2.msra.mxu0 0.0
    %1993 = vmatprep.subr.mxu0 0.0
    %1994 = vmatpush2.msra.mxu0 0.0
    %1995 = vmatprep.mubr.f32.mxu0 0.0
    %1996 = vmatmul.mubr.f32.gmra.mxu0 %v1896
    %v1997 = vpop.f32.mrf.mxu0
    %v1998 = vadd.f32 0.0, %v1997
    %v1999 = vpop.f32.mrf.mxu0
    %2000 = vmatprep.mubr.f32.mxu0 0.0
    %2001 = vmatmul.mubr.f32.gmra.mxu0 %v1899
    %v2002 = vpop.f32.mrf.mxu0
    %v2003 = vadd.f32 0.0, %v2002
    %v2004 = vpop.f32.mrf.mxu0
    %2005 = vmatprep.mubr.f32.mxu0 0.0
    %2006 = vmatmul.mubr.f32.gmra.mxu0 %v1902
    %v2007 = vpop.f32.mrf.mxu0
    %v2008 = vadd.f32 0.0, %v2007
    %v2009 = vpop.f32.mrf.mxu0
    %2010 = vmatprep.mubr.f32.mxu0 0.0
    %2011 = vmatmul.mubr.f32.gmra.mxu0 %v1905
    %v2012 = vpop.f32.mrf.mxu0
    %v2013 = vadd.f32 0.0, %v2012
    %v2014 = vpop.f32.mrf.mxu0
    %2015 = vmatprep.mubr.f32.mxu0 0.0
    %2016 = vmatmul.mubr.f32.gmra.mxu0 %v1908
    %v2017 = vpop.f32.mrf.mxu0
    %v2018 = vadd.f32 0.0, %v2017
    %v2019 = vpop.f32.mrf.mxu0
    %2020 = vmatprep.mubr.f32.mxu0 0.0
    %2021 = vmatmul.mubr.f32.gmra.mxu0 %v1911
    %v2022 = vpop.f32.mrf.mxu0
    %v2023 = vadd.f32 0.0, %v2022
    %v2024 = vpop.f32.mrf.mxu0
    %2025 = vmatprep.mubr.f32.mxu0 0.0
    %2026 = vmatmul.mubr.f32.gmra.mxu0 %v1914
    %v2027 = vpop.f32.mrf.mxu0
    %v2028 = vadd.f32 0.0, %v2027
    %v2029 = vpop.f32.mrf.mxu0
    %2030 = vmatprep.mubr.f32.mxu0 0.0
    %2031 = vmatmul.mubr.f32.gmra.mxu0 %v1917
    %v2032 = vpop.f32.mrf.mxu0
    %v2033 = vadd.f32 0.0, %v2032
    %v2034 = vpop.f32.mrf.mxu0
    %2035 = vmatprep.mubr.f32.mxu0 0.0
    %2036 = vmatmul.mubr.f32.gmra.mxu0 %v1920
    %v2037 = vpop.f32.mrf.mxu0
    %v2038 = vadd.f32 0.0, %v2037
    %v2039 = vpop.f32.mrf.mxu0
    %2040 = vmatprep.mubr.f32.mxu0 0.0
    %2041 = vmatmul.mubr.f32.gmra.mxu0 %v1923
    %v2042 = vpop.f32.mrf.mxu0
    %v2043 = vadd.f32 0.0, %v2042
    %v2044 = vpop.f32.mrf.mxu0
    %2045 = vmatprep.mubr.f32.mxu0 0.0
    %2046 = vmatmul.mubr.f32.gmra.mxu0 %v1926
    %v2047 = vpop.f32.mrf.mxu0
    %v2048 = vadd.f32 0.0, %v2047
    %v2049 = vpop.f32.mrf.mxu0
    %2050 = vmatprep.mubr.f32.mxu0 0.0
    %2051 = vmatmul.mubr.f32.gmra.mxu0 %v1929
    %v2052 = vpop.f32.mrf.mxu0
    %v2053 = vadd.f32 0.0, %v2052
    %v2054 = vpop.f32.mrf.mxu0
    %2055 = vdwg.mxu0
    %2056 = vrot.lane.b32.xlu0 %v1586, 64
    %v2057 = vpop.permute.xlu0 %2056
    %2058 = vrot.lane.b32.xlu0 %v1591, 64
    %v2059 = vpop.permute.xlu0 %2058
    %2060 = vrot.lane.b32.xlu0 %v1596, 64
    %v2061 = vpop.permute.xlu0 %2060
    %2062 = vrot.lane.b32.xlu0 %v1601, 64
    %v2063 = vpop.permute.xlu0 %2062
    %2064 = vrot.lane.b32.xlu0 %v1606, 64
    %v2065 = vpop.permute.xlu0 %2064
    %2066 = vrot.lane.b32.xlu0 %v1611, 64
    %v2067 = vpop.permute.xlu0 %2066
    %v2074 = vmul.f32 %v1998, %v2057
    %v2075 = vmul.f32 %v2003, %v2059
    %v2076 = vmul.f32 %v2008, %v2061
    %v2077 = vmul.f32 %v2013, %v2057
    %v2078 = vmul.f32 %v2018, %v2059
    %v2079 = vmul.f32 %v2023, %v2061
    %v2080 = vmul.f32 %v2028, %v2063
    %v2081 = vmul.f32 %v2033, %v2065
    %v2082 = vmul.f32 %v2038, %v2067
    %v2083 = vmul.f32 %v2043, %v2063
    %v2084 = vmul.f32 %v2048, %v2065
    %v2085 = vmul.f32 %v2053, %v2067
    %v2086 = vadd.f32 %v2074, %v2080
    %v2087 = vadd.f32 %v2075, %v2081
    %v2088 = vadd.f32 %v2076, %v2082
    %v2089 = vadd.f32 %v2077, %v2083
    %v2090 = vadd.f32 %v2078, %v2084
    %v2091 = vadd.f32 %v2079, %v2085
    %v2093 = vlaneseq
    %v2094 = vshrl.u32 %v2093, 7
    %v2095 = vsub.s32 0, %v2094
    %v2096 = vrot.slane %v1468, %v2095
    %v2099 = vsel %vm192, %v2086, 0
    %v2102 = vsel %vm192, %v2087, 0
    %v2105 = vsel %vm192, %v2088, 0
    %v2108 = vsel %vm192, %v2089, 0
    %v2111 = vsel %vm192, %v2090, 0
    %v2114 = vsel %vm192, %v2091, 0
    %2116 = vmatprep.subr.mxu0 0.0
    %2117 = vmatpush1.msra.mxu0 0.0
    %2118 = vmatprep.subr.mxu0 0.0
    %2119 = vmatpush1.msra.mxu0 0.0
    %2120 = vmatprep.subr.mxu0 0.0
    %2121 = vmatpush1.msra.mxu0 0.0
    %2122 = vmatprep.subr.mxu0 0.0
    %2123 = vmatpush1.msra.mxu0 0.0
    %2124 = vmatprep.subr.mxu0 0.0
    %2125 = vmatpush1.msra.mxu0 0.0
    %2126 = vmatprep.subr.mxu0 0.0
    %2127 = vmatpush1.msra.mxu0 0.0
    %2128 = vmatprep.subr.mxu0 0.0
    %2129 = vmatpush1.msra.mxu0 0.0
    %2130 = vmatprep.subr.mxu0 0.0
    %2131 = vmatpush1.msra.mxu0 0.0
    %2132 = vmatprep.subr.mxu0 0.0
    %2133 = vmatpush1.msra.mxu0 0.0
    %2134 = vmatprep.subr.mxu0 0.0
    %2135 = vmatpush1.msra.mxu0 0.0
    %2136 = vmatprep.subr.mxu0 0.0
    %2137 = vmatpush1.msra.mxu0 0.0
    %2138 = vmatprep.subr.mxu0 0.0
    %2139 = vmatpush1.msra.mxu0 0.0
    %2140 = vmatprep.subr.mxu0 0.0
    %2141 = vmatpush1.msra.mxu0 %v1466
    %2142 = vmatprep.subr.mxu0 0.0
    %2143 = vmatpush1.msra.mxu0 %v1465
    %2144 = vmatprep.subr.mxu0 0.0
    %2145 = vmatpush1.msra.mxu0 %v1464
    %2146 = vmatprep.subr.mxu0 0.0
    %2147 = vmatpush1.msra.mxu0 %v1463
    %2148 = vmatprep.subr.mxu0 0.0
    %2149 = vmatpush2.msra.mxu0 0.0
    %2150 = vmatprep.subr.mxu0 0.0
    %2151 = vmatpush2.msra.mxu0 0.0
    %2152 = vmatprep.subr.mxu0 0.0
    %2153 = vmatpush2.msra.mxu0 0.0
    %2154 = vmatprep.subr.mxu0 0.0
    %2155 = vmatpush2.msra.mxu0 0.0
    %2156 = vmatprep.subr.mxu0 0.0
    %2157 = vmatpush2.msra.mxu0 0.0
    %2158 = vmatprep.subr.mxu0 0.0
    %2159 = vmatpush2.msra.mxu0 0.0
    %2160 = vmatprep.subr.mxu0 0.0
    %2161 = vmatpush2.msra.mxu0 0.0
    %2162 = vmatprep.subr.mxu0 0.0
    %2163 = vmatpush2.msra.mxu0 0.0
    %2164 = vmatprep.subr.mxu0 0.0
    %2165 = vmatpush2.msra.mxu0 0.0
    %2166 = vmatprep.subr.mxu0 0.0
    %2167 = vmatpush2.msra.mxu0 0.0
    %2168 = vmatprep.subr.mxu0 0.0
    %2169 = vmatpush2.msra.mxu0 0.0
    %2170 = vmatprep.subr.mxu0 0.0
    %2171 = vmatpush2.msra.mxu0 0.0
    %2172 = vmatprep.subr.mxu0 0.0
    %2173 = vmatpush2.msra.mxu0 0.0
    %2174 = vmatprep.subr.mxu0 0.0
    %2175 = vmatpush2.msra.mxu0 0.0
    %2176 = vmatprep.subr.mxu0 0.0
    %2177 = vmatpush2.msra.mxu0 0.0
    %2178 = vmatprep.subr.mxu0 0.0
    %2179 = vmatpush2.msra.mxu0 0.0
    %2180 = vmatprep.mubr.f32.mxu0 0.0
    %2181 = vmatmul.mubr.f32.gmra.mxu0 %v2099
    %v2182 = vpop.f32.mrf.mxu0
    %v2183 = vadd.f32 %v2096, %v2182
    %v2184 = vpop.f32.mrf.mxu0
    %2185 = vmatprep.mubr.f32.mxu0 0.0
    %2186 = vmatmul.mubr.f32.gmra.mxu0 %v2102
    %v2187 = vpop.f32.mrf.mxu0
    %v2188 = vadd.f32 %v2096, %v2187
    %v2189 = vpop.f32.mrf.mxu0
    %2190 = vmatprep.mubr.f32.mxu0 0.0
    %2191 = vmatmul.mubr.f32.gmra.mxu0 %v2105
    %v2192 = vpop.f32.mrf.mxu0
    %v2193 = vadd.f32 %v2096, %v2192
    %v2194 = vpop.f32.mrf.mxu0
    %2195 = vmatprep.mubr.f32.mxu0 0.0
    %2196 = vmatmul.mubr.f32.gmra.mxu0 %v2108
    %v2197 = vpop.f32.mrf.mxu0
    %v2198 = vadd.f32 %v2096, %v2197
    %v2199 = vpop.f32.mrf.mxu0
    %2200 = vmatprep.mubr.f32.mxu0 0.0
    %2201 = vmatmul.mubr.f32.gmra.mxu0 %v2111
    %v2202 = vpop.f32.mrf.mxu0
    %v2203 = vadd.f32 %v2096, %v2202
    %v2204 = vpop.f32.mrf.mxu0
    %2205 = vmatprep.mubr.f32.mxu0 0.0
    %2206 = vmatmul.mubr.f32.gmra.mxu0 %v2114
    %v2207 = vpop.f32.mrf.mxu0
    %v2208 = vadd.f32 %v2096, %v2207
    %v2209 = vpop.f32.mrf.mxu0
    %2210 = vdwg.mxu0
    %v2211 = vadd.f32 %v1449, %v2183
    %v2212 = vadd.f32 %v1450, %v2188
    %v2213 = vadd.f32 %v1451, %v2193
    %v2214 = vadd.f32 %v1452, %v2198
    %v2215 = vadd.f32 %v1453, %v2203
    %v2216 = vadd.f32 %v1454, %v2208
    %v2217 = vsel %vm192, %v2211, 0.0
    %2218 = vadd.xlane.f32.xlu0 %v2217
    %v2219 = vpop.xlane.xlu0 %2218
    %v2220 = vsel %vm192, %v2212, 0.0
    %2221 = vadd.xlane.f32.xlu0 %v2220
    %v2222 = vpop.xlane.xlu0 %2221
    %v2223 = vsel %vm192, %v2213, 0.0
    %2224 = vadd.xlane.f32.xlu0 %v2223
    %v2225 = vpop.xlane.xlu0 %2224
    %v2226 = vsel %vm192, %v2214, 0.0
    %2227 = vadd.xlane.f32.xlu0 %v2226
    %v2228 = vpop.xlane.xlu0 %2227
    %v2229 = vsel %vm192, %v2215, 0.0
    %2230 = vadd.xlane.f32.xlu0 %v2229
    %v2231 = vpop.xlane.xlu0 %2230
    %v2232 = vsel %vm192, %v2216, 0.0
    %2233 = vadd.xlane.f32.xlu0 %v2232
    %v2234 = vpop.xlane.xlu0 %2233
    %v2235 = vmul.f32 %v2219, %v994
    %v2236 = vmul.f32 %v2222, %v994
    %v2237 = vmul.f32 %v2225, %v994
    %v2238 = vmul.f32 %v2228, %v994
    %v2239 = vmul.f32 %v2231, %v994
    %v2240 = vmul.f32 %v2234, %v994
    %v2241 = vsub.f32 %v2211, %v2235
    %v2242 = vsub.f32 %v2212, %v2236
    %v2243 = vsub.f32 %v2213, %v2237
    %v2244 = vsub.f32 %v2214, %v2238
    %v2245 = vsub.f32 %v2215, %v2239
    %v2246 = vsub.f32 %v2216, %v2240
    %v2247 = vmul.f32 %v2241, %v2241
    %v2248 = vmul.f32 %v2242, %v2242
    %v2249 = vmul.f32 %v2243, %v2243
    %v2250 = vmul.f32 %v2244, %v2244
    %v2251 = vmul.f32 %v2245, %v2245
    %v2252 = vmul.f32 %v2246, %v2246
    %v2253 = vsel %vm192, %v2247, 0.0
    %2254 = vadd.xlane.f32.xlu0 %v2253
    %v2255 = vpop.xlane.xlu0 %2254
    %v2256 = vsel %vm192, %v2248, 0.0
    %2257 = vadd.xlane.f32.xlu0 %v2256
    %v2258 = vpop.xlane.xlu0 %2257
    %v2259 = vsel %vm192, %v2249, 0.0
    %2260 = vadd.xlane.f32.xlu0 %v2259
    %v2261 = vpop.xlane.xlu0 %2260
    %v2262 = vsel %vm192, %v2250, 0.0
    %2263 = vadd.xlane.f32.xlu0 %v2262
    %v2264 = vpop.xlane.xlu0 %2263
    %v2265 = vsel %vm192, %v2251, 0.0
    %2266 = vadd.xlane.f32.xlu0 %v2265
    %v2267 = vpop.xlane.xlu0 %2266
    %v2268 = vsel %vm192, %v2252, 0.0
    %2269 = vadd.xlane.f32.xlu0 %v2268
    %v2270 = vpop.xlane.xlu0 %2269
    %v2271 = vmul.f32 %v2255, %v994
    %v2272 = vmul.f32 %v2258, %v994
    %v2273 = vmul.f32 %v2261, %v994
    %v2274 = vmul.f32 %v2264, %v994
    %v2275 = vmul.f32 %v2267, %v994
    %v2276 = vmul.f32 %v2270, %v994
    %v2277 = vadd.f32 %v2271, 1e-05
    %v2278 = vadd.f32 %v2272, 1e-05
    %v2279 = vadd.f32 %v2273, 1e-05
    %v2280 = vadd.f32 %v2274, 1e-05
    %v2281 = vadd.f32 %v2275, 1e-05
    %v2282 = vadd.f32 %v2276, 1e-05
    %v2283 = vrsqrt.pop %v2277
    %v2284 = vrsqrt.pop %v2278
    %v2285 = vrsqrt.pop %v2279
    %v2286 = vrsqrt.pop %v2280
    %v2287 = vrsqrt.pop %v2281
    %v2288 = vrsqrt.pop %v2282
    %v2289 = vmul.f32 %v2241, %v2283
    %v2290 = vmul.f32 %v2242, %v2284
    %v2291 = vmul.f32 %v2243, %v2285
    %v2292 = vmul.f32 %v2244, %v2286
    %v2293 = vmul.f32 %v2245, %v2287
    %v2294 = vmul.f32 %v2246, %v2288
    %v2296 = vlaneseq
    %v2297 = vshrl.u32 %v2296, 7
    %v2298 = vsub.s32 0, %v2297
    %v2299 = vrot.slane %v1470, %v2298
    %v2301 = vmul.f32 %v2289, %v2299
    %v2302 = vmul.f32 %v2290, %v2299
    %v2303 = vmul.f32 %v2291, %v2299
    %v2304 = vmul.f32 %v2292, %v2299
    %v2305 = vmul.f32 %v2293, %v2299
    %v2306 = vmul.f32 %v2294, %v2299
    %v2308 = vlaneseq
    %v2309 = vshrl.u32 %v2308, 7
    %v2310 = vsub.s32 0, %v2309
    %v2311 = vrot.slane %v1472, %v2310
    %v2313 = vadd.f32 %v2301, %v2311
    %v2314 = vadd.f32 %v2302, %v2311
    %v2315 = vadd.f32 %v2303, %v2311
    %v2316 = vadd.f32 %v2304, %v2311
    %v2317 = vadd.f32 %v2305, %v2311
    %v2318 = vadd.f32 %v2306, %v2311
    %v2320 = vlaneseq
    %v2321 = vshrl.u32 %v2320, 7
    %v2322 = vsub.s32 0, %v2321
    %v2323 = vrot.slane %v1479, %v2322
    %v2326 = vsel %vm192, %v2313, 0
    %v2329 = vsel %vm192, %v2314, 0
    %v2332 = vsel %vm192, %v2315, 0
    %v2335 = vsel %vm192, %v2316, 0
    %v2338 = vsel %vm192, %v2317, 0
    %v2341 = vsel %vm192, %v2318, 0
    %2343 = vmatprep.subr.mxu0 0.0
    %2344 = vmatpush1.msra.mxu0 0.0
    %2345 = vmatprep.subr.mxu0 0.0
    %2346 = vmatpush1.msra.mxu0 0.0
    %2347 = vmatprep.subr.mxu0 0.0
    %2348 = vmatpush1.msra.mxu0 0.0
    %2349 = vmatprep.subr.mxu0 0.0
    %2350 = vmatpush1.msra.mxu0 0.0
    %2351 = vmatprep.subr.mxu0 0.0
    %2352 = vmatpush1.msra.mxu0 0.0
    %2353 = vmatprep.subr.mxu0 0.0
    %2354 = vmatpush1.msra.mxu0 0.0
    %2355 = vmatprep.subr.mxu0 0.0
    %2356 = vmatpush1.msra.mxu0 0.0
    %2357 = vmatprep.subr.mxu0 0.0
    %2358 = vmatpush1.msra.mxu0 0.0
    %2359 = vmatprep.subr.mxu0 0.0
    %2360 = vmatpush1.msra.mxu0 0.0
    %2361 = vmatprep.subr.mxu0 0.0
    %2362 = vmatpush1.msra.mxu0 0.0
    %2363 = vmatprep.subr.mxu0 0.0
    %2364 = vmatpush1.msra.mxu0 0.0
    %2365 = vmatprep.subr.mxu0 0.0
    %2366 = vmatpush1.msra.mxu0 0.0
    %2367 = vmatprep.subr.mxu0 0.0
    %2368 = vmatpush1.msra.mxu0 %v1477
    %2369 = vmatprep.subr.mxu0 0.0
    %2370 = vmatpush1.msra.mxu0 %v1476
    %2371 = vmatprep.subr.mxu0 0.0
    %2372 = vmatpush1.msra.mxu0 %v1475
    %2373 = vmatprep.subr.mxu0 0.0
    %2374 = vmatpush1.msra.mxu0 %v1474
    %2375 = vmatprep.subr.mxu0 0.0
    %2376 = vmatpush2.msra.mxu0 0.0
    %2377 = vmatprep.subr.mxu0 0.0
    %2378 = vmatpush2.msra.mxu0 0.0
    %2379 = vmatprep.subr.mxu0 0.0
    %2380 = vmatpush2.msra.mxu0 0.0
    %2381 = vmatprep.subr.mxu0 0.0
    %2382 = vmatpush2.msra.mxu0 0.0
    %2383 = vmatprep.subr.mxu0 0.0
    %2384 = vmatpush2.msra.mxu0 0.0
    %2385 = vmatprep.subr.mxu0 0.0
    %2386 = vmatpush2.msra.mxu0 0.0
    %2387 = vmatprep.subr.mxu0 0.0
    %2388 = vmatpush2.msra.mxu0 0.0
    %2389 = vmatprep.subr.mxu0 0.0
    %2390 = vmatpush2.msra.mxu0 0.0
    %2391 = vmatprep.subr.mxu0 0.0
    %2392 = vmatpush2.msra.mxu0 0.0
    %2393 = vmatprep.subr.mxu0 0.0
    %2394 = vmatpush2.msra.mxu0 0.0
    %2395 = vmatprep.subr.mxu0 0.0
    %2396 = vmatpush2.msra.mxu0 0.0
    %2397 = vmatprep.subr.mxu0 0.0
    %2398 = vmatpush2.msra.mxu0 0.0
    %2399 = vmatprep.subr.mxu0 0.0
    %2400 = vmatpush2.msra.mxu0 0.0
    %2401 = vmatprep.subr.mxu0 0.0
    %2402 = vmatpush2.msra.mxu0 0.0
    %2403 = vmatprep.subr.mxu0 0.0
    %2404 = vmatpush2.msra.mxu0 0.0
    %2405 = vmatprep.subr.mxu0 0.0
    %2406 = vmatpush2.msra.mxu0 0.0
    %2407 = vmatprep.mubr.f32.mxu0 0.0
    %2408 = vmatmul.mubr.f32.gmra.mxu0 %v2326
    %v2409 = vpop.f32.mrf.mxu0
    %v2410 = vadd.f32 %v2323, %v2409
    %v2411 = vpop.f32.mrf.mxu0
    %2412 = vmatprep.mubr.f32.mxu0 0.0
    %2413 = vmatmul.mubr.f32.gmra.mxu0 %v2329
    %v2414 = vpop.f32.mrf.mxu0
    %v2415 = vadd.f32 %v2323, %v2414
    %v2416 = vpop.f32.mrf.mxu0
    %2417 = vmatprep.mubr.f32.mxu0 0.0
    %2418 = vmatmul.mubr.f32.gmra.mxu0 %v2332
    %v2419 = vpop.f32.mrf.mxu0
    %v2420 = vadd.f32 %v2323, %v2419
    %v2421 = vpop.f32.mrf.mxu0
    %2422 = vmatprep.mubr.f32.mxu0 0.0
    %2423 = vmatmul.mubr.f32.gmra.mxu0 %v2335
    %v2424 = vpop.f32.mrf.mxu0
    %v2425 = vadd.f32 %v2323, %v2424
    %v2426 = vpop.f32.mrf.mxu0
    %2427 = vmatprep.mubr.f32.mxu0 0.0
    %2428 = vmatmul.mubr.f32.gmra.mxu0 %v2338
    %v2429 = vpop.f32.mrf.mxu0
    %v2430 = vadd.f32 %v2323, %v2429
    %v2431 = vpop.f32.mrf.mxu0
    %2432 = vmatprep.mubr.f32.mxu0 0.0
    %2433 = vmatmul.mubr.f32.gmra.mxu0 %v2341
    %v2434 = vpop.f32.mrf.mxu0
    %v2435 = vadd.f32 %v2323, %v2434
    %v2436 = vpop.f32.mrf.mxu0
    %2437 = vdwg.mxu0
    %v2438 = vmul.f32 %v2410, 0.5
    %v2439 = vmul.f32 %v2415, 0.5
    %v2440 = vmul.f32 %v2420, 0.5
    %v2441 = vmul.f32 %v2425, 0.5
    %v2442 = vmul.f32 %v2430, 0.5
    %v2443 = vmul.f32 %v2435, 0.5
    %v2444 = vmul.f32 %v2410, 0.70710677
    %v2445 = vmul.f32 %v2415, 0.70710677
    %v2446 = vmul.f32 %v2420, 0.70710677
    %v2447 = vmul.f32 %v2425, 0.70710677
    %v2448 = vmul.f32 %v2430, 0.70710677
    %v2449 = vmul.f32 %v2435, 0.70710677
    %v2450 = verf.f32.pop %v2444
    %v2451 = verf.f32.pop %v2445
    %v2452 = verf.f32.pop %v2446
    %v2453 = verf.f32.pop %v2447
    %v2454 = verf.f32.pop %v2448
    %v2455 = verf.f32.pop %v2449
    %v2456 = vadd.f32 %v2450, 1.0
    %v2457 = vadd.f32 %v2451, 1.0
    %v2458 = vadd.f32 %v2452, 1.0
    %v2459 = vadd.f32 %v2453, 1.0
    %v2460 = vadd.f32 %v2454, 1.0
    %v2461 = vadd.f32 %v2455, 1.0
    %v2462 = vmul.f32 %v2438, %v2456
    %v2463 = vmul.f32 %v2439, %v2457
    %v2464 = vmul.f32 %v2440, %v2458
    %v2465 = vmul.f32 %v2441, %v2459
    %v2466 = vmul.f32 %v2442, %v2460
    %v2467 = vmul.f32 %v2443, %v2461
    %v2469 = vlaneseq
    %v2470 = vshrl.u32 %v2469, 7
    %v2471 = vsub.s32 0, %v2470
    %v2472 = vrot.slane %v1490, %v2471
    %v2475 = vsel %vm91, %v2462, 0
    %v2478 = vsel %vm91, %v2463, 0
    %v2481 = vsel %vm91, %v2464, 0
    %v2484 = vsel %vm91, %v2465, 0
    %v2487 = vsel %vm91, %v2466, 0
    %v2490 = vsel %vm91, %v2467, 0
    %2492 = vmatprep.subr.mxu0 0.0
    %2493 = vmatpush1.msra.mxu0 0.0
    %2494 = vmatprep.subr.mxu0 0.0
    %2495 = vmatpush1.msra.mxu0 0.0
    %2496 = vmatprep.subr.mxu0 0.0
    %2497 = vmatpush1.msra.mxu0 0.0
    %2498 = vmatprep.subr.mxu0 0.0
    %2499 = vmatpush1.msra.mxu0 0.0
    %2500 = vmatprep.subr.mxu0 0.0
    %2501 = vmatpush1.msra.mxu0 0.0
    %2502 = vmatprep.subr.mxu0 0.0
    %2503 = vmatpush1.msra.mxu0 0.0
    %2504 = vmatprep.subr.mxu0 0.0
    %2505 = vmatpush1.msra.mxu0 0.0
    %2506 = vmatprep.subr.mxu0 0.0
    %2507 = vmatpush1.msra.mxu0 0.0
    %2508 = vmatprep.subr.mxu0 0.0
    %2509 = vmatpush1.msra.mxu0 %v1488
    %2510 = vmatprep.subr.mxu0 0.0
    %2511 = vmatpush1.msra.mxu0 %v1487
    %2512 = vmatprep.subr.mxu0 0.0
    %2513 = vmatpush1.msra.mxu0 %v1486
    %2514 = vmatprep.subr.mxu0 0.0
    %2515 = vmatpush1.msra.mxu0 %v1485
    %2516 = vmatprep.subr.mxu0 0.0
    %2517 = vmatpush1.msra.mxu0 %v1484
    %2518 = vmatprep.subr.mxu0 0.0
    %2519 = vmatpush1.msra.mxu0 %v1483
    %2520 = vmatprep.subr.mxu0 0.0
    %2521 = vmatpush1.msra.mxu0 %v1482
    %2522 = vmatprep.subr.mxu0 0.0
    %2523 = vmatpush1.msra.mxu0 %v1481
    %2524 = vmatprep.subr.mxu0 0.0
    %2525 = vmatpush2.msra.mxu0 0.0
    %2526 = vmatprep.subr.mxu0 0.0
    %2527 = vmatpush2.msra.mxu0 0.0
    %2528 = vmatprep.subr.mxu0 0.0
    %2529 = vmatpush2.msra.mxu0 0.0
    %2530 = vmatprep.subr.mxu0 0.0
    %2531 = vmatpush2.msra.mxu0 0.0
    %2532 = vmatprep.subr.mxu0 0.0
    %2533 = vmatpush2.msra.mxu0 0.0
    %2534 = vmatprep.subr.mxu0 0.0
    %2535 = vmatpush2.msra.mxu0 0.0
    %2536 = vmatprep.subr.mxu0 0.0
    %2537 = vmatpush2.msra.mxu0 0.0
    %2538 = vmatprep.subr.mxu0 0.0
    %2539 = vmatpush2.msra.mxu0 0.0
    %2540 = vmatprep.subr.mxu0 0.0
    %2541 = vmatpush2.msra.mxu0 0.0
    %2542 = vmatprep.subr.mxu0 0.0
    %2543 = vmatpush2.msra.mxu0 0.0
    %2544 = vmatprep.subr.mxu0 0.0
    %2545 = vmatpush2.msra.mxu0 0.0
    %2546 = vmatprep.subr.mxu0 0.0
    %2547 = vmatpush2.msra.mxu0 0.0
    %2548 = vmatprep.subr.mxu0 0.0
    %2549 = vmatpush2.msra.mxu0 0.0
    %2550 = vmatprep.subr.mxu0 0.0
    %2551 = vmatpush2.msra.mxu0 0.0
    %2552 = vmatprep.subr.mxu0 0.0
    %2553 = vmatpush2.msra.mxu0 0.0
    %2554 = vmatprep.subr.mxu0 0.0
    %2555 = vmatpush2.msra.mxu0 0.0
    %2556 = vmatprep.mubr.f32.mxu0 0.0
    %2557 = vmatmul.mubr.f32.gmra.mxu0 %v2475
    %v2558 = vpop.f32.mrf.mxu0
    %v2559 = vadd.f32 %v2472, %v2558
    %v2560 = vpop.f32.mrf.mxu0
    %2561 = vmatprep.mubr.f32.mxu0 0.0
    %2562 = vmatmul.mubr.f32.gmra.mxu0 %v2478
    %v2563 = vpop.f32.mrf.mxu0
    %v2564 = vadd.f32 %v2472, %v2563
    %v2565 = vpop.f32.mrf.mxu0
    %2566 = vmatprep.mubr.f32.mxu0 0.0
    %2567 = vmatmul.mubr.f32.gmra.mxu0 %v2481
    %v2568 = vpop.f32.mrf.mxu0
    %v2569 = vadd.f32 %v2472, %v2568
    %v2570 = vpop.f32.mrf.mxu0
    %2571 = vmatprep.mubr.f32.mxu0 0.0
    %2572 = vmatmul.mubr.f32.gmra.mxu0 %v2484
    %v2573 = vpop.f32.mrf.mxu0
    %v2574 = vadd.f32 %v2472, %v2573
    %v2575 = vpop.f32.mrf.mxu0
    %2576 = vmatprep.mubr.f32.mxu0 0.0
    %2577 = vmatmul.mubr.f32.gmra.mxu0 %v2487
    %v2578 = vpop.f32.mrf.mxu0
    %v2579 = vadd.f32 %v2472, %v2578
    %v2580 = vpop.f32.mrf.mxu0
    %2581 = vmatprep.mubr.f32.mxu0 0.0
    %2582 = vmatmul.mubr.f32.gmra.mxu0 %v2490
    %v2583 = vpop.f32.mrf.mxu0
    %v2584 = vadd.f32 %v2472, %v2583
    %v2585 = vpop.f32.mrf.mxu0
    %2586 = vdwg.mxu0
    %v2587 = vadd.f32 %v2313, %v2559
    %v2588 = vadd.f32 %v2314, %v2564
    %v2589 = vadd.f32 %v2315, %v2569
    %v2590 = vadd.f32 %v2316, %v2574
    %v2591 = vadd.f32 %v2317, %v2579
    %v2592 = vadd.f32 %v2318, %v2584
    %v2593 = vsel %vm192, %v2587, 0.0
    %2594 = vadd.xlane.f32.xlu0 %v2593
    %v2595 = vpop.xlane.xlu0 %2594
    %v2596 = vsel %vm192, %v2588, 0.0
    %2597 = vadd.xlane.f32.xlu0 %v2596
    %v2598 = vpop.xlane.xlu0 %2597
    %v2599 = vsel %vm192, %v2589, 0.0
    %2600 = vadd.xlane.f32.xlu0 %v2599
    %v2601 = vpop.xlane.xlu0 %2600
    %v2602 = vsel %vm192, %v2590, 0.0
    %2603 = vadd.xlane.f32.xlu0 %v2602
    %v2604 = vpop.xlane.xlu0 %2603
    %v2605 = vsel %vm192, %v2591, 0.0
    %2606 = vadd.xlane.f32.xlu0 %v2605
    %v2607 = vpop.xlane.xlu0 %2606
    %v2608 = vsel %vm192, %v2592, 0.0
    %2609 = vadd.xlane.f32.xlu0 %v2608
    %v2610 = vpop.xlane.xlu0 %2609
    %v2611 = vmul.f32 %v2595, %v994
    %v2612 = vmul.f32 %v2598, %v994
    %v2613 = vmul.f32 %v2601, %v994
    %v2614 = vmul.f32 %v2604, %v994
    %v2615 = vmul.f32 %v2607, %v994
    %v2616 = vmul.f32 %v2610, %v994
    %v2617 = vsub.f32 %v2587, %v2611
    %v2618 = vsub.f32 %v2588, %v2612
    %v2619 = vsub.f32 %v2589, %v2613
    %v2620 = vsub.f32 %v2590, %v2614
    %v2621 = vsub.f32 %v2591, %v2615
    %v2622 = vsub.f32 %v2592, %v2616
    %v2623 = vmul.f32 %v2617, %v2617
    %v2624 = vmul.f32 %v2618, %v2618
    %v2625 = vmul.f32 %v2619, %v2619
    %v2626 = vmul.f32 %v2620, %v2620
    %v2627 = vmul.f32 %v2621, %v2621
    %v2628 = vmul.f32 %v2622, %v2622
    %v2629 = vsel %vm192, %v2623, 0.0
    %2630 = vadd.xlane.f32.xlu0 %v2629
    %v2631 = vpop.xlane.xlu0 %2630
    %v2632 = vsel %vm192, %v2624, 0.0
    %2633 = vadd.xlane.f32.xlu0 %v2632
    %v2634 = vpop.xlane.xlu0 %2633
    %v2635 = vsel %vm192, %v2625, 0.0
    %2636 = vadd.xlane.f32.xlu0 %v2635
    %v2637 = vpop.xlane.xlu0 %2636
    %v2638 = vsel %vm192, %v2626, 0.0
    %2639 = vadd.xlane.f32.xlu0 %v2638
    %v2640 = vpop.xlane.xlu0 %2639
    %v2641 = vsel %vm192, %v2627, 0.0
    %2642 = vadd.xlane.f32.xlu0 %v2641
    %v2643 = vpop.xlane.xlu0 %2642
    %v2644 = vsel %vm192, %v2628, 0.0
    %2645 = vadd.xlane.f32.xlu0 %v2644
    %v2646 = vpop.xlane.xlu0 %2645
    %v2647 = vmul.f32 %v2631, %v994
    %v2648 = vmul.f32 %v2634, %v994
    %v2649 = vmul.f32 %v2637, %v994
    %v2650 = vmul.f32 %v2640, %v994
    %v2651 = vmul.f32 %v2643, %v994
    %v2652 = vmul.f32 %v2646, %v994
    %v2653 = vadd.f32 %v2647, 1e-05
    %v2654 = vadd.f32 %v2648, 1e-05
    %v2655 = vadd.f32 %v2649, 1e-05
    %v2656 = vadd.f32 %v2650, 1e-05
    %v2657 = vadd.f32 %v2651, 1e-05
    %v2658 = vadd.f32 %v2652, 1e-05
    %v2659 = vrsqrt.pop %v2653
    %v2660 = vrsqrt.pop %v2654
    %v2661 = vrsqrt.pop %v2655
    %v2662 = vrsqrt.pop %v2656
    %v2663 = vrsqrt.pop %v2657
    %v2664 = vrsqrt.pop %v2658
    %v2665 = vmul.f32 %v2617, %v2659
    %v2666 = vmul.f32 %v2618, %v2660
    %v2667 = vmul.f32 %v2619, %v2661
    %v2668 = vmul.f32 %v2620, %v2662
    %v2669 = vmul.f32 %v2621, %v2663
    %v2670 = vmul.f32 %v2622, %v2664
    %v2672 = vlaneseq
    %v2673 = vshrl.u32 %v2672, 7
    %v2674 = vsub.s32 0, %v2673
    %v2675 = vrot.slane %v1492, %v2674
    %v2677 = vmul.f32 %v2665, %v2675
    %v2678 = vmul.f32 %v2666, %v2675
    %v2679 = vmul.f32 %v2667, %v2675
    %v2680 = vmul.f32 %v2668, %v2675
    %v2681 = vmul.f32 %v2669, %v2675
    %v2682 = vmul.f32 %v2670, %v2675
    %v2684 = vlaneseq
    %v2685 = vshrl.u32 %v2684, 7
    %v2686 = vsub.s32 0, %v2685
    %v2687 = vrot.slane %v1494, %v2686
    %v2689 = vadd.f32 %v2677, %v2687
    %v2690 = vadd.f32 %v2678, %v2687
    %v2691 = vadd.f32 %v2679, %v2687
    %v2692 = vadd.f32 %v2680, %v2687
    %v2693 = vadd.f32 %v2681, %v2687
    %v2694 = vadd.f32 %v2682, %v2687
    %v2695 = vld [vmem:[%s7] sm:$0x3]
    %vm2696 = vcmask 392192
    %v2698 = vsel %vm2696, %v2695, 0
    %2700 = vmatprep.subr.mxu0 0.0
    %2701 = vmatpush1.msra.mxu0 0.0
    %2702 = vmatprep.subr.mxu0 0.0
    %2703 = vmatpush1.msra.mxu0 0.0
    %2704 = vmatprep.subr.mxu0 0.0
    %2705 = vmatpush1.msra.mxu0 0.0
    %2706 = vmatprep.subr.mxu0 0.0
    %2707 = vmatpush1.msra.mxu0 0.0
    %2708 = vmatprep.subr.mxu0 0.0
    %2709 = vmatpush1.msra.mxu0 0.0
    %2710 = vmatprep.subr.mxu0 0.0
    %2711 = vmatpush1.msra.mxu0 0.0
    %2712 = vmatprep.subr.mxu0 0.0
    %2713 = vmatpush1.msra.mxu0 0.0
    %2714 = vmatprep.subr.mxu0 0.0
    %2715 = vmatpush1.msra.mxu0 0.0
    %2716 = vmatprep.subr.mxu0 0.0
    %2717 = vmatpush1.msra.mxu0 0.0
    %2718 = vmatprep.subr.mxu0 0.0
    %2719 = vmatpush1.msra.mxu0 0.0
    %2720 = vmatprep.subr.mxu0 0.0
    %2721 = vmatpush1.msra.mxu0 %v2694
    %2722 = vmatprep.subr.mxu0 0.0
    %2723 = vmatpush1.msra.mxu0 %v2693
    %2724 = vmatprep.subr.mxu0 0.0
    %2725 = vmatpush1.msra.mxu0 %v2692
    %2726 = vmatprep.subr.mxu0 0.0
    %2727 = vmatpush1.msra.mxu0 %v2691
    %2728 = vmatprep.subr.mxu0 0.0
    %2729 = vmatpush1.msra.mxu0 %v2690
    %2730 = vmatprep.subr.mxu0 0.0
    %2731 = vmatpush1.msra.mxu0 %v2689
    %2732 = vmatprep.subr.mxu0 0.0
    %2733 = vmatpush2.msra.mxu0 0.0
    %2734 = vmatprep.subr.mxu0 0.0
    %2735 = vmatpush2.msra.mxu0 0.0
    %2736 = vmatprep.subr.mxu0 0.0
    %2737 = vmatpush2.msra.mxu0 0.0
    %2738 = vmatprep.subr.mxu0 0.0
    %2739 = vmatpush2.msra.mxu0 0.0
    %2740 = vmatprep.subr.mxu0 0.0
    %2741 = vmatpush2.msra.mxu0 0.0
    %2742 = vmatprep.subr.mxu0 0.0
    %2743 = vmatpush2.msra.mxu0 0.0
    %2744 = vmatprep.subr.mxu0 0.0
    %2745 = vmatpush2.msra.mxu0 0.0
    %2746 = vmatprep.subr.mxu0 0.0
    %2747 = vmatpush2.msra.mxu0 0.0
    %2748 = vmatprep.subr.mxu0 0.0
    %2749 = vmatpush2.msra.mxu0 0.0
    %2750 = vmatprep.subr.mxu0 0.0
    %2751 = vmatpush2.msra.mxu0 0.0
    %2752 = vmatprep.subr.mxu0 0.0
    %2753 = vmatpush2.msra.mxu0 0.0
    %2754 = vmatprep.subr.mxu0 0.0
    %2755 = vmatpush2.msra.mxu0 0.0
    %2756 = vmatprep.subr.mxu0 0.0
    %2757 = vmatpush2.msra.mxu0 0.0
    %2758 = vmatprep.subr.mxu0 0.0
    %2759 = vmatpush2.msra.mxu0 0.0
    %2760 = vmatprep.subr.mxu0 0.0
    %2761 = vmatpush2.msra.mxu0 0.0
    %2762 = vmatprep.subr.mxu0 0.0
    %2763 = vmatpush2.msra.mxu0 0.0
    %2764 = vmatprep.mubr.f32.mxu0 0.0
    %2765 = vmatmul.mubr.f32.gmra.mxu0 %v2698
    %v2766 = vpop.f32.mrf.mxu0
    %v2767 = vadd.f32 0.0, %v2766
    %v2768 = vpop.f32.mrf.mxu0
    %2769 = vdwg.mxu0
    %v2770 = vld [vmem:[%s20] sm:$0xff]
    %v2771 = vld [vmem:[%s20 + $0x8] sm:$0xff]
    %v2772 = vld [vmem:[%s20 + $0x10] sm:$0xff]
    %v2773 = vld [vmem:[%s20 + $0x18] sm:$0xff]
    %v2774 = vld [vmem:[%s21] sm:$0x1]
    %v2776 = vlaneseq
    %v2777 = vshrl.u32 %v2776, 7
    %v2778 = vsub.s32 0, %v2777
    %v2779 = vrot.slane %v2774, %v2778
    %v2782 = vsel %vm192, %v2767, 0
    %2784 = vmatprep.subr.mxu0 0.0
    %2785 = vmatpush1.msra.mxu0 0.0
    %2786 = vmatprep.subr.mxu0 0.0
    %2787 = vmatpush1.msra.mxu0 0.0
    %2788 = vmatprep.subr.mxu0 0.0
    %2789 = vmatpush1.msra.mxu0 0.0
    %2790 = vmatprep.subr.mxu0 0.0
    %2791 = vmatpush1.msra.mxu0 0.0
    %2792 = vmatprep.subr.mxu0 0.0
    %2793 = vmatpush1.msra.mxu0 0.0
    %2794 = vmatprep.subr.mxu0 0.0
    %2795 = vmatpush1.msra.mxu0 0.0
    %2796 = vmatprep.subr.mxu0 0.0
    %2797 = vmatpush1.msra.mxu0 0.0
    %2798 = vmatprep.subr.mxu0 0.0
    %2799 = vmatpush1.msra.mxu0 0.0
    %2800 = vmatprep.subr.mxu0 0.0
    %2801 = vmatpush1.msra.mxu0 0.0
    %2802 = vmatprep.subr.mxu0 0.0
    %2803 = vmatpush1.msra.mxu0 0.0
    %2804 = vmatprep.subr.mxu0 0.0
    %2805 = vmatpush1.msra.mxu0 0.0
    %2806 = vmatprep.subr.mxu0 0.0
    %2807 = vmatpush1.msra.mxu0 0.0
    %2808 = vmatprep.subr.mxu0 0.0
    %2809 = vmatpush1.msra.mxu0 %v2773
    %2810 = vmatprep.subr.mxu0 0.0
    %2811 = vmatpush1.msra.mxu0 %v2772
    %2812 = vmatprep.subr.mxu0 0.0
    %2813 = vmatpush1.msra.mxu0 %v2771
    %2814 = vmatprep.subr.mxu0 0.0
    %2815 = vmatpush1.msra.mxu0 %v2770
    %2816 = vmatprep.subr.mxu0 0.0
    %2817 = vmatpush2.msra.mxu0 0.0
    %2818 = vmatprep.subr.mxu0 0.0
    %2819 = vmatpush2.msra.mxu0 0.0
    %2820 = vmatprep.subr.mxu0 0.0
    %2821 = vmatpush2.msra.mxu0 0.0
    %2822 = vmatprep.subr.mxu0 0.0
    %2823 = vmatpush2.msra.mxu0 0.0
    %2824 = vmatprep.subr.mxu0 0.0
    %2825 = vmatpush2.msra.mxu0 0.0
    %2826 = vmatprep.subr.mxu0 0.0
    %2827 = vmatpush2.msra.mxu0 0.0
    %2828 = vmatprep.subr.mxu0 0.0
    %2829 = vmatpush2.msra.mxu0 0.0
    %2830 = vmatprep.subr.mxu0 0.0
    %2831 = vmatpush2.msra.mxu0 0.0
    %2832 = vmatprep.subr.mxu0 0.0
    %2833 = vmatpush2.msra.mxu0 0.0
    %2834 = vmatprep.subr.mxu0 0.0
    %2835 = vmatpush2.msra.mxu0 0.0
    %2836 = vmatprep.subr.mxu0 0.0
    %2837 = vmatpush2.msra.mxu0 0.0
    %2838 = vmatprep.subr.mxu0 0.0
    %2839 = vmatpush2.msra.mxu0 0.0
    %2840 = vmatprep.subr.mxu0 0.0
    %2841 = vmatpush2.msra.mxu0 0.0
    %2842 = vmatprep.subr.mxu0 0.0
    %2843 = vmatpush2.msra.mxu0 0.0
    %2844 = vmatprep.subr.mxu0 0.0
    %2845 = vmatpush2.msra.mxu0 0.0
    %2846 = vmatprep.subr.mxu0 0.0
    %2847 = vmatpush2.msra.mxu0 0.0
    %2848 = vmatprep.mubr.f32.mxu0 0.0
    %2849 = vmatmul.mubr.f32.gmra.mxu0 %v2782
    %v2850 = vpop.f32.mrf.mxu0
    %v2851 = vadd.f32 %v2779, %v2850
    %v2852 = vpop.f32.mrf.mxu0
    %2853 = vdwg.mxu0
    %vm2854 = vcmask 74752
    %2855 = vst.msk [vmem:[#allocation3] sm:$0x3] %vm2854, %v2851
    // Predicated region
    $region90: #{_lambda_.1} parent=1 // pred_check
      _
    $region91: #{_lambda_.1} parent=1 // pred_check_branch
      %2857 = sbr.rel (0) target = $region93
    $region92: #{_lambda_.1} parent=1 // pred_region
      %s2859 = ssub.s32 32, 32
      %2860 = vsyncadd [#allocation4], %s2859
      %s2862 = sshll.u32 [#allocation3], 4
      %s2863 = int_to_ptr.vmem [resolvable:$true] %s2862
      %2865 = dma.vmem_to_hbm [thread:$0]  %s2863, 32, %s22, [#allocation4]
    $region93: #{_lambda_.1} parent=1 // pred_fallthru
      _
    // Predicated region
    $region94: #{_lambda_.1} parent=1 // pred_check
      _
    $region95: #{_lambda_.1} parent=1 // pred_check_branch
      %2867 = sbr.rel (0) target = $region97
    $region96: #{_lambda_.1} parent=1 // pred_region
      %2868 = dma.done [#allocation4], 32
    $region97: #{_lambda_.1} parent=1 // pred_fallthru
      _
    %2869 = vsyncpa [#allocation4], 1

</llo_original>
